<compile_context>
chip_gen: v7x
topology: tpu7x:2x2x1
jax: 0.10.0
libtpu: 0.0.40
codegen_flags: <defaults>
</compile_context>

<pallas_src>
import functools
import math

import jax
import jax.numpy as jnp
from jax import lax
from jax.experimental import pallas as pl
from jax.experimental.pallas import tpu as pltpu


# ------------------------------ in-kernel helpers ------------------------------

def _layernorm(y, gamma, beta, eps=1e-12):
    # torch.nn.LayerNorm with eps=1e-12 (biased variance); gamma/beta: (1, H)
    mu = jnp.mean(y, axis=-1, keepdims=True)
    var = jnp.mean(jnp.square(y - mu), axis=-1, keepdims=True)
    return (y - mu) * lax.rsqrt(var + eps) * gamma + beta


def _mha_into_dense(q_scaled, k, v, add_mask, w_o, num_heads):
    """Multi-head attention fused with the output dense matmul.

    q_scaled: (Sq, H) already multiplied by 1/sqrt(dH)
    k, v    : (Sk, H)
    add_mask: (Sq, Sk) additive, pre-broadcast
    w_o     : (H, H)
    Returns sum_h softmax(q_h k_h^T + mask) @ v_h @ w_o[h*dH:(h+1)*dH]
    == concat_h(ctx_h) @ w_o, without materialising the head concat.
    """
    H = q_scaled.shape[-1]
    dH = H // num_heads
    out = None
    for h in range(num_heads):                      # unrolled at trace time
        sl = slice(h * dH, (h + 1) * dH)
        s = jnp.dot(q_scaled[:, sl], k[:, sl].T,
                    preferred_element_type=jnp.float32) + add_mask
        s = s - jnp.max(s, axis=-1, keepdims=True)
        p = jnp.exp(s)
        p = p * pl.reciprocal(jnp.sum(p, axis=-1, keepdims=True), approx=True)
        ctx_h = jnp.dot(p, v[:, sl], preferred_element_type=jnp.float32)     # (Sq, dH)
        part = jnp.dot(ctx_h, w_o[sl, :], preferred_element_type=jnp.float32)
        out = part if out is None else out + part
    return out


# ----------------------------------- kernel ------------------------------------

def _cross_kernel(
        # per-batch blocked data
        lang_ref, vis_ref, vmask_ref, lmask_ref,
        # merged QKV projection weights
        wl_qkv_ref, bl_qkv_ref, wv_qkv_ref, bv_qkv_ref,
        # lang branch: output dense + LayerNorm
        wlo_ref, blo_ref, glln_ref, blln_ref,
        # vis branch: output dense + LayerNorm
        wvo_ref, bvo_ref, gvln_ref, bvln_ref,
        # final "liner" projections over the layer concat
        wll_ref, bll_ref, wvl_ref, bvl_ref,
        # outputs
        lang_out_ref, vis_out_ref,
        *, number, Ht, Hv, num_heads):
    x_l = lang_ref[0]                        # (Sl, Ht)
    x_v_all = vis_ref[0]                     # (N*Sv, Hv)  all detr layers stacked
    Sl = x_l.shape[0]
    Sv = vmask_ref.shape[-1]
    NSv = x_v_all.shape[0]

    scale_l = 1.0 / math.sqrt(Ht // num_heads)
    scale_v = 1.0 / math.sqrt(Hv // num_heads)

    # additive masks broadcast once (not re-broadcast inside the head loops)
    vmask = jnp.broadcast_to(vmask_ref[0], (Sl, Sv))    # keys = vis positions
    lmask = jnp.broadcast_to(lmask_ref[0], (NSv, Sl))   # keys = lang positions

    # hoist all weights into values once
    w_lo, b_lo = wlo_ref[...], blo_ref[...]
    g_lln, b_lln = glln_ref[...], blln_ref[...]
    w_vo, b_vo = wvo_ref[...], bvo_ref[...]
    g_vln, b_vln = gvln_ref[...], bvln_ref[...]
    w_ll, w_vl = wll_ref[...], wvl_ref[...]

    # loop-invariant lang-side projections, one merged GEMM:
    #   lang_input -> [lang-branch Q | vis-branch K | vis-branch V]
    proj_l = jnp.dot(x_l, wl_qkv_ref[...],
                     preferred_element_type=jnp.float32) + bl_qkv_ref[...]
    la_q = proj_l[:, :Ht] * scale_l
    va_k = proj_l[:, Ht:Ht + Hv]
    va_v = proj_l[:, Ht + Hv:Ht + 2 * Hv]

    # ALL detr layers in one merged GEMM (rows stacked, sublane-aligned):
    #   vis_stacked -> [lang-branch K | lang-branch V | vis-branch Q]
    proj_v = jnp.dot(x_v_all, wv_qkv_ref[...],
                     preferred_element_type=jnp.float32) + bv_qkv_ref[...]
    la_k_all = proj_v[:, :Ht]
    la_v_all = proj_v[:, Ht:2 * Ht]
    va_q_all = proj_v[:, 2 * Ht:2 * Ht + Hv] * scale_v

    # ---- vis branch: query = vis_input[i], context = lang_input ----
    # lang-side K/V and the lang mask are shared by every layer, so the whole
    # branch runs layer-batched over the stacked query axis (no per-layer loop).
    ctx_v = _mha_into_dense(va_q_all, va_k, va_v, lmask, w_vo, num_heads) + b_vo
    vis_att_all = _layernorm(ctx_v + x_v_all, g_vln, b_vln)          # (N*Sv, Hv)

    # ---- lang branch: query = lang_input, context = vis_input[i] ----
    # softmax normalises over each layer's own keys -> per-layer (unrolled, N static)
    lang_acc = jnp.zeros((Sl, Ht), jnp.float32)
    vis_acc = jnp.zeros((Sv, Hv), jnp.float32)
    for i in range(number):
        r = slice(i * Sv, (i + 1) * Sv)              # sublane-aligned row slice
        ctx_l = _mha_into_dense(la_q, la_k_all[r], la_v_all[r],
                                vmask, w_lo, num_heads) + b_lo
        lang_att = _layernorm(ctx_l + x_l, g_lln, b_lln)
        # final liners folded in: concat over layers == sum of per-layer GEMMs
        lang_acc = lang_acc + jnp.dot(lang_att, w_ll[i * Ht:(i + 1) * Ht, :],
                                      preferred_element_type=jnp.float32)
        vis_acc = vis_acc + jnp.dot(vis_att_all[r], w_vl[i * Hv:(i + 1) * Hv, :],
                                    preferred_element_type=jnp.float32)

    lang_out_ref[0] = lang_acc + bll_ref[...]
    vis_out_ref[0] = vis_acc + bvl_ref[...]


# ----------------------------------- wrapper ------------------------------------

def init_params(key, Hv, Ht, nH, N):
    # Same parameterisation as the PyTorch module (Linear weights stored (in, out)).
    keys = jax.random.split(key, 32)
    it = iter(keys)

    def w(shape):
        return jax.random.normal(next(it), shape, jnp.float32) * 0.02

    return dict(
        # lang_att (query_vis=False): q: Ht->Ht, k/v: Hv->Ht
        la_q_w=w((Ht, Ht)), la_q_b=w((Ht,)),
        la_k_w=w((Hv, Ht)), la_k_b=w((Ht,)),
        la_v_w=w((Hv, Ht)), la_v_b=w((Ht,)),
        la_o_w=w((Ht, Ht)), la_o_b=w((Ht,)),
        la_ln_g=jnp.ones((Ht,), jnp.float32), la_ln_b=jnp.zeros((Ht,), jnp.float32),
        # vis_att (query_vis=True): q: Hv->Hv, k/v: Ht->Hv
        va_q_w=w((Hv, Hv)), va_q_b=w((Hv,)),
        va_k_w=w((Ht, Hv)), va_k_b=w((Hv,)),
        va_v_w=w((Ht, Hv)), va_v_b=w((Hv,)),
        va_o_w=w((Hv, Hv)), va_o_b=w((Hv,)),
        va_ln_g=jnp.ones((Hv,), jnp.float32), va_ln_b=jnp.zeros((Hv,), jnp.float32),
        # final "liner"s over concatenated detr layers
        lang_liner_w=w((N * Ht, Ht)), lang_liner_b=w((Ht,)),
        vis_liner_w=w((N * Hv, Hv)), vis_liner_b=w((Hv,)),
    )


def cross_module_forward(params, vis_input, lang_input, vis_mask, lang_mask,
                         num_heads, number):
    p = params
    B, Sl, Ht = lang_input.shape
    N, Sv, _, Hv = vis_input.shape
    assert N == number

    # batch-first, all detr layers stacked along the sequence (sublane) axis:
    # (N, Sv, B, Hv) -> (B, N*Sv, Hv). One tiny XLA transpose at the boundary.
    vis_stacked = jnp.transpose(vis_input, (2, 0, 1, 3)).reshape(B, N * Sv, Hv)

    # merged projection weights: projections that share an input become one GEMM
    wl_qkv = jnp.concatenate([p["la_q_w"], p["va_k_w"], p["va_v_w"]], axis=1)
    bl_qkv = jnp.concatenate([p["la_q_b"], p["va_k_b"], p["va_v_b"]])[None, :]
    wv_qkv = jnp.concatenate([p["la_k_w"], p["la_v_w"], p["va_q_w"]], axis=1)
    bv_qkv = jnp.concatenate([p["la_k_b"], p["la_v_b"], p["va_q_b"]])[None, :]

    row = lambda a: a.reshape(1, -1)

    inputs = (
        lang_input,                                                  # (B, Sl, Ht)
        vis_stacked,                                                 # (B, N*Sv, Hv)
        vis_mask.reshape(B, 1, Sv).astype(jnp.float32),
        lang_mask.reshape(B, 1, Sl).astype(jnp.float32),
        wl_qkv, bl_qkv, wv_qkv, bv_qkv,
        p["la_o_w"], row(p["la_o_b"]), row(p["la_ln_g"]), row(p["la_ln_b"]),
        p["va_o_w"], row(p["va_o_b"]), row(p["va_ln_g"]), row(p["va_ln_b"]),
        p["lang_liner_w"], row(p["lang_liner_b"]),
        p["vis_liner_w"], row(p["vis_liner_b"]),
    )

    def batch_spec(shape):
        # block = (1, rest...) over batch axis 0
        block = (1,) + tuple(shape[1:])
        nd = len(shape)
        return pl.BlockSpec(block, lambda b, _nd=nd: (b,) + (0,) * (_nd - 1))

    def full_spec(shape):
        nd = len(shape)
        return pl.BlockSpec(tuple(shape), lambda b, _nd=nd: (0,) * _nd)

    in_specs = [
        batch_spec(lang_input.shape),          # lang_input : block (1, Sl, Ht)
        batch_spec(vis_stacked.shape),         # vis stack  : block (1, N*Sv, Hv)
        batch_spec((B, 1, Sv)),                # vis mask
        batch_spec((B, 1, Sl)),                # lang mask
    ] + [full_spec(x.shape) for x in inputs[4:]]

    out_shape = (
        jax.ShapeDtypeStruct((B, Sl, Ht), jnp.float32),
        jax.ShapeDtypeStruct((B, Sv, Hv), jnp.float32),
    )
    out_specs = (
        batch_spec((B, Sl, Ht)),
        batch_spec((B, Sv, Hv)),
    )

    kernel = functools.partial(
        _cross_kernel, number=number, Ht=Ht, Hv=Hv, num_heads=num_heads)

    lang_out, vis_out_bf = pl.pallas_call(
        kernel,
        out_shape=out_shape,
        grid=(B,),
        in_specs=in_specs,
        out_specs=out_specs,
        compiler_params=pltpu.CompilerParams(
            dimension_semantics=("parallel",)),      # batch split across TCs on v7x
    )(*inputs)

    # back to the PyTorch (Sv, B, Hv) layout for the vis output
    vis_out = jnp.transpose(vis_out_bf, (1, 0, 2))
    return lang_out, vis_out


# ------------------------------------- main -------------------------------------

if __name__ == "__main__":
    B, Sl, Sv = 2, 8, 8
    Hv, Ht = 32, 32            # cross_vis_hidden_size, cross_text_hidden_size
    nH = 4                     # cross_num_attention_heads
    N = 2                      # detr_enc_num

    key = jax.random.PRNGKey(0)
    kp, kv, kl, km1, km2 = jax.random.split(key, 5)

    params = init_params(kp, Hv, Ht, nH, N)
    vis_input = jax.random.normal(kv, (N, Sv, B, Hv), jnp.float32)
    lang_input = jax.random.normal(kl, (B, Sl, Ht), jnp.float32)
    vis_mask = jnp.where(jax.random.uniform(km1, (B, Sv)) > 0.2, 0.0, -1e4
                         ).astype(jnp.float32)
    lang_mask = jnp.where(jax.random.uniform(km2, (B, Sl)) > 0.2, 0.0, -1e4
                          ).astype(jnp.float32)

    fwd = jax.jit(lambda vi, li, vm, lm: cross_module_forward(
        params, vi, li, vm, lm, nH, N))
    lang_out, vis_out = fwd(vis_input, lang_input, vis_mask, lang_mask)
    jax.block_until_ready((lang_out, vis_out))

    assert lang_out.shape == (B, Sl, Ht), lang_out.shape
    assert vis_out.shape == (Sv, B, Hv), vis_out.shape
    assert bool(jnp.isfinite(lang_out).all()) and bool(jnp.isfinite(vis_out).all())
    print("KERNEL_OK")
</pallas_src>

<mosaic_0001>
module attributes {stable_mosaic.version = 11 : i64} {
  func.func @_cross_kernel(%arg0: i32, %arg1: memref<1x8x32xf32, #tpu.memory_space<vmem>>, %arg2: memref<1x16x32xf32, #tpu.memory_space<vmem>>, %arg3: memref<1x1x8xf32, #tpu.memory_space<vmem>>, %arg4: memref<1x1x8xf32, #tpu.memory_space<vmem>>, %arg5: memref<32x96xf32, #tpu.memory_space<vmem>>, %arg6: memref<1x96xf32, #tpu.memory_space<vmem>>, %arg7: memref<32x96xf32, #tpu.memory_space<vmem>>, %arg8: memref<1x96xf32, #tpu.memory_space<vmem>>, %arg9: memref<32x32xf32, #tpu.memory_space<vmem>>, %arg10: memref<1x32xf32, #tpu.memory_space<vmem>>, %arg11: memref<1x32xf32, #tpu.memory_space<vmem>>, %arg12: memref<1x32xf32, #tpu.memory_space<vmem>>, %arg13: memref<32x32xf32, #tpu.memory_space<vmem>>, %arg14: memref<1x32xf32, #tpu.memory_space<vmem>>, %arg15: memref<1x32xf32, #tpu.memory_space<vmem>>, %arg16: memref<1x32xf32, #tpu.memory_space<vmem>>, %arg17: memref<64x32xf32, #tpu.memory_space<vmem>>, %arg18: memref<1x32xf32, #tpu.memory_space<vmem>>, %arg19: memref<64x32xf32, #tpu.memory_space<vmem>>, %arg20: memref<1x32xf32, #tpu.memory_space<vmem>>, %arg21: memref<1x8x32xf32, #tpu.memory_space<vmem>>, %arg22: memref<1x8x32xf32, #tpu.memory_space<vmem>>) attributes {dimension_semantics = [#tpu.dimension_semantics<parallel>], iteration_bounds = array<i64: 2>, scalar_prefetch = 0 : i64, scratch_operands = 0 : i64, tpu.core_type = #tpu.core_type<tc>, window_params = [{transform_indices = @transform_0, window_bounds = array<i64: 1, 8, 32>}, {transform_indices = @transform_1, window_bounds = array<i64: 1, 16, 32>}, {transform_indices = @transform_2, window_bounds = array<i64: 1, 1, 8>}, {transform_indices = @transform_3, window_bounds = array<i64: 1, 1, 8>}, {pipeline_mode = #tpu.pipeline_mode<synchronous>, transform_indices = @transform_4, window_bounds = array<i64: 32, 96>}, {pipeline_mode = #tpu.pipeline_mode<synchronous>, transform_indices = @transform_5, window_bounds = array<i64: 1, 96>}, {pipeline_mode = #tpu.pipeline_mode<synchronous>, transform_indices = @transform_6, window_bounds = array<i64: 32, 96>}, {pipeline_mode = #tpu.pipeline_mode<synchronous>, transform_indices = @transform_7, window_bounds = array<i64: 1, 96>}, {pipeline_mode = #tpu.pipeline_mode<synchronous>, transform_indices = @transform_8, window_bounds = array<i64: 32, 32>}, {pipeline_mode = #tpu.pipeline_mode<synchronous>, transform_indices = @transform_9, window_bounds = array<i64: 1, 32>}, {pipeline_mode = #tpu.pipeline_mode<synchronous>, transform_indices = @transform_10, window_bounds = array<i64: 1, 32>}, {pipeline_mode = #tpu.pipeline_mode<synchronous>, transform_indices = @transform_11, window_bounds = array<i64: 1, 32>}, {pipeline_mode = #tpu.pipeline_mode<synchronous>, transform_indices = @transform_12, window_bounds = array<i64: 32, 32>}, {pipeline_mode = #tpu.pipeline_mode<synchronous>, transform_indices = @transform_13, window_bounds = array<i64: 1, 32>}, {pipeline_mode = #tpu.pipeline_mode<synchronous>, transform_indices = @transform_14, window_bounds = array<i64: 1, 32>}, {pipeline_mode = #tpu.pipeline_mode<synchronous>, transform_indices = @transform_15, window_bounds = array<i64: 1, 32>}, {pipeline_mode = #tpu.pipeline_mode<synchronous>, transform_indices = @transform_16, window_bounds = array<i64: 64, 32>}, {pipeline_mode = #tpu.pipeline_mode<synchronous>, transform_indices = @transform_17, window_bounds = array<i64: 1, 32>}, {pipeline_mode = #tpu.pipeline_mode<synchronous>, transform_indices = @transform_18, window_bounds = array<i64: 64, 32>}, {pipeline_mode = #tpu.pipeline_mode<synchronous>, transform_indices = @transform_19, window_bounds = array<i64: 1, 32>}, {transform_indices = @transform_20, window_bounds = array<i64: 1, 8, 32>}, {transform_indices = @transform_21, window_bounds = array<i64: 1, 8, 32>}]} {
    %c0 = arith.constant 0 : index
    %c0_0 = arith.constant 0 : index
    %c0_1 = arith.constant 0 : index
    %0 = vector.load %arg1[%c0, %c0_0, %c0_1] : memref<1x8x32xf32, #tpu.memory_space<vmem>>, vector<1x8x32xf32>
    %1 = vector.shape_cast %0 : vector<1x8x32xf32> to vector<8x32xf32>
    %c0_2 = arith.constant 0 : index
    %c0_3 = arith.constant 0 : index
    %c0_4 = arith.constant 0 : index
    %2 = vector.load %arg2[%c0_2, %c0_3, %c0_4] : memref<1x16x32xf32, #tpu.memory_space<vmem>>, vector<1x16x32xf32>
    %3 = vector.shape_cast %2 : vector<1x16x32xf32> to vector<16x32xf32>
    %c0_5 = arith.constant 0 : index
    %c0_6 = arith.constant 0 : index
    %c0_7 = arith.constant 0 : index
    %4 = vector.load %arg3[%c0_5, %c0_6, %c0_7] : memref<1x1x8xf32, #tpu.memory_space<vmem>>, vector<1x1x8xf32>
    %5 = vector.shape_cast %4 : vector<1x1x8xf32> to vector<1x8xf32>
    %6 = vector.shape_cast %5 : vector<1x8xf32> to vector<1x8xf32>
    %7 = vector.broadcast %6 : vector<1x8xf32> to vector<8x8xf32>
    %c0_8 = arith.constant 0 : index
    %c0_9 = arith.constant 0 : index
    %c0_10 = arith.constant 0 : index
    %8 = vector.load %arg4[%c0_8, %c0_9, %c0_10] : memref<1x1x8xf32, #tpu.memory_space<vmem>>, vector<1x1x8xf32>
    %9 = vector.shape_cast %8 : vector<1x1x8xf32> to vector<1x8xf32>
    %10 = vector.shape_cast %9 : vector<1x8xf32> to vector<1x8xf32>
    %11 = vector.broadcast %10 : vector<1x8xf32> to vector<16x8xf32>
    %c0_11 = arith.constant 0 : index
    %c0_12 = arith.constant 0 : index
    %12 = vector.load %arg9[%c0_11, %c0_12] : memref<32x32xf32, #tpu.memory_space<vmem>>, vector<32x32xf32>
    %c0_13 = arith.constant 0 : index
    %c0_14 = arith.constant 0 : index
    %13 = vector.load %arg10[%c0_13, %c0_14] : memref<1x32xf32, #tpu.memory_space<vmem>>, vector<1x32xf32>
    %c0_15 = arith.constant 0 : index
    %c0_16 = arith.constant 0 : index
    %14 = vector.load %arg11[%c0_15, %c0_16] : memref<1x32xf32, #tpu.memory_space<vmem>>, vector<1x32xf32>
    %c0_17 = arith.constant 0 : index
    %c0_18 = arith.constant 0 : index
    %15 = vector.load %arg12[%c0_17, %c0_18] : memref<1x32xf32, #tpu.memory_space<vmem>>, vector<1x32xf32>
    %c0_19 = arith.constant 0 : index
    %c0_20 = arith.constant 0 : index
    %16 = vector.load %arg13[%c0_19, %c0_20] : memref<32x32xf32, #tpu.memory_space<vmem>>, vector<32x32xf32>
    %c0_21 = arith.constant 0 : index
    %c0_22 = arith.constant 0 : index
    %17 = vector.load %arg14[%c0_21, %c0_22] : memref<1x32xf32, #tpu.memory_space<vmem>>, vector<1x32xf32>
    %c0_23 = arith.constant 0 : index
    %c0_24 = arith.constant 0 : index
    %18 = vector.load %arg15[%c0_23, %c0_24] : memref<1x32xf32, #tpu.memory_space<vmem>>, vector<1x32xf32>
    %c0_25 = arith.constant 0 : index
    %c0_26 = arith.constant 0 : index
    %19 = vector.load %arg16[%c0_25, %c0_26] : memref<1x32xf32, #tpu.memory_space<vmem>>, vector<1x32xf32>
    %c0_27 = arith.constant 0 : index
    %c0_28 = arith.constant 0 : index
    %20 = vector.load %arg17[%c0_27, %c0_28] : memref<64x32xf32, #tpu.memory_space<vmem>>, vector<64x32xf32>
    %c0_29 = arith.constant 0 : index
    %c0_30 = arith.constant 0 : index
    %21 = vector.load %arg19[%c0_29, %c0_30] : memref<64x32xf32, #tpu.memory_space<vmem>>, vector<64x32xf32>
    %c0_31 = arith.constant 0 : index
    %c0_32 = arith.constant 0 : index
    %22 = vector.load %arg5[%c0_31, %c0_32] : memref<32x96xf32, #tpu.memory_space<vmem>>, vector<32x96xf32>
    %cst = arith.constant dense<0.000000e+00> : vector<8x96xf32>
    %23 = tpu.matmul %1, %22, %cst {dimension_numbers = #tpu.dot_dimension_numbers<[1], [0], [0], [1], [0, 0, 1, 1], [], []>} : vector<8x32xf32>, vector<32x96xf32>, vector<8x96xf32> -> vector<8x96xf32>
    %c0_33 = arith.constant 0 : index
    %c0_34 = arith.constant 0 : index
    %24 = vector.load %arg6[%c0_33, %c0_34] : memref<1x96xf32, #tpu.memory_space<vmem>>, vector<1x96xf32>
    %25 = vector.broadcast %24 : vector<1x96xf32> to vector<8x96xf32>
    %26 = arith.addf %23, %25 : vector<8x96xf32>
    %27 = vector.extract_strided_slice %26 {offsets = [0, 0], sizes = [8, 32], strides = [1, 1]} : vector<8x96xf32> to vector<8x32xf32>
    %cst_35 = arith.constant 0.353553385 : f32
    %28 = vector.broadcast %cst_35 : f32 to vector<8x32xf32>
    %29 = arith.mulf %27, %28 : vector<8x32xf32>
    %30 = vector.extract_strided_slice %26 {offsets = [0, 32], sizes = [8, 32], strides = [1, 1]} : vector<8x96xf32> to vector<8x32xf32>
    %31 = vector.extract_strided_slice %26 {offsets = [0, 64], sizes = [8, 32], strides = [1, 1]} : vector<8x96xf32> to vector<8x32xf32>
    %c0_36 = arith.constant 0 : index
    %c0_37 = arith.constant 0 : index
    %32 = vector.load %arg7[%c0_36, %c0_37] : memref<32x96xf32, #tpu.memory_space<vmem>>, vector<32x96xf32>
    %cst_38 = arith.constant dense<0.000000e+00> : vector<16x96xf32>
    %33 = tpu.matmul %3, %32, %cst_38 {dimension_numbers = #tpu.dot_dimension_numbers<[1], [0], [0], [1], [0, 0, 1, 1], [], []>} : vector<16x32xf32>, vector<32x96xf32>, vector<16x96xf32> -> vector<16x96xf32>
    %c0_39 = arith.constant 0 : index
    %c0_40 = arith.constant 0 : index
    %34 = vector.load %arg8[%c0_39, %c0_40] : memref<1x96xf32, #tpu.memory_space<vmem>>, vector<1x96xf32>
    %35 = vector.broadcast %34 : vector<1x96xf32> to vector<16x96xf32>
    %36 = arith.addf %33, %35 : vector<16x96xf32>
    %37 = vector.extract_strided_slice %36 {offsets = [0, 0], sizes = [16, 32], strides = [1, 1]} : vector<16x96xf32> to vector<16x32xf32>
    %38 = vector.extract_strided_slice %36 {offsets = [0, 32], sizes = [16, 32], strides = [1, 1]} : vector<16x96xf32> to vector<16x32xf32>
    %39 = vector.extract_strided_slice %36 {offsets = [0, 64], sizes = [16, 32], strides = [1, 1]} : vector<16x96xf32> to vector<16x32xf32>
    %cst_41 = arith.constant 0.353553385 : f32
    %40 = vector.broadcast %cst_41 : f32 to vector<16x32xf32>
    %41 = arith.mulf %39, %40 : vector<16x32xf32>
    %42 = vector.extract_strided_slice %41 {offsets = [0, 0], sizes = [16, 8], strides = [1, 1]} : vector<16x32xf32> to vector<16x8xf32>
    %43 = vector.extract_strided_slice %30 {offsets = [0, 0], sizes = [8, 8], strides = [1, 1]} : vector<8x32xf32> to vector<8x8xf32>
    %44 = tpu.transpose %43, [1, 0] : vector<8x8xf32> -> vector<8x8xf32>
    %cst_42 = arith.constant dense<0.000000e+00> : vector<16x8xf32>
    %45 = tpu.matmul %42, %44, %cst_42 {dimension_numbers = #tpu.dot_dimension_numbers<[1], [0], [0], [1], [0, 0, 1, 1], [], []>} : vector<16x8xf32>, vector<8x8xf32>, vector<16x8xf32> -> vector<16x8xf32>
    %46 = arith.addf %45, %11 : vector<16x8xf32>
    %cst_43 = arith.constant dense<0xFF800000> : vector<16xf32>
    %47 = vector.multi_reduction <maximumf>, %46, %cst_43 [1] : vector<16x8xf32> to vector<16xf32>
    %48 = vector.shape_cast %47 : vector<16xf32> to vector<16x1xf32>
    %49 = vector.broadcast %48 : vector<16x1xf32> to vector<16x8xf32>
    %50 = arith.subf %46, %49 : vector<16x8xf32>
    %51 = math.exp %50 : vector<16x8xf32>
    %cst_44 = arith.constant dense<0.000000e+00> : vector<16xf32>
    %52 = vector.multi_reduction <add>, %51, %cst_44 [1] : vector<16x8xf32> to vector<16xf32>
    %53 = vector.shape_cast %52 : vector<16xf32> to vector<16x1xf32>
    %54 = tpu.reciprocal %53 {approx = true} : vector<16x1xf32> -> vector<16x1xf32>
    %55 = vector.broadcast %54 : vector<16x1xf32> to vector<16x8xf32>
    %56 = arith.mulf %51, %55 : vector<16x8xf32>
    %57 = vector.extract_strided_slice %31 {offsets = [0, 0], sizes = [8, 8], strides = [1, 1]} : vector<8x32xf32> to vector<8x8xf32>
    %cst_45 = arith.constant dense<0.000000e+00> : vector<16x8xf32>
    %58 = tpu.matmul %56, %57, %cst_45 {dimension_numbers = #tpu.dot_dimension_numbers<[1], [0], [0], [1], [0, 0, 1, 1], [], []>} : vector<16x8xf32>, vector<8x8xf32>, vector<16x8xf32> -> vector<16x8xf32>
    %59 = vector.extract_strided_slice %16 {offsets = [0, 0], sizes = [8, 32], strides = [1, 1]} : vector<32x32xf32> to vector<8x32xf32>
    %cst_46 = arith.constant dense<0.000000e+00> : vector<16x32xf32>
    %60 = tpu.matmul %58, %59, %cst_46 {dimension_numbers = #tpu.dot_dimension_numbers<[1], [0], [0], [1], [0, 0, 1, 1], [], []>} : vector<16x8xf32>, vector<8x32xf32>, vector<16x32xf32> -> vector<16x32xf32>
    %61 = vector.extract_strided_slice %41 {offsets = [0, 8], sizes = [16, 8], strides = [1, 1]} : vector<16x32xf32> to vector<16x8xf32>
    %62 = vector.extract_strided_slice %30 {offsets = [0, 8], sizes = [8, 8], strides = [1, 1]} : vector<8x32xf32> to vector<8x8xf32>
    %63 = tpu.transpose %62, [1, 0] : vector<8x8xf32> -> vector<8x8xf32>
    %cst_47 = arith.constant dense<0.000000e+00> : vector<16x8xf32>
    %64 = tpu.matmul %61, %63, %cst_47 {dimension_numbers = #tpu.dot_dimension_numbers<[1], [0], [0], [1], [0, 0, 1, 1], [], []>} : vector<16x8xf32>, vector<8x8xf32>, vector<16x8xf32> -> vector<16x8xf32>
    %65 = arith.addf %64, %11 : vector<16x8xf32>
    %cst_48 = arith.constant dense<0xFF800000> : vector<16xf32>
    %66 = vector.multi_reduction <maximumf>, %65, %cst_48 [1] : vector<16x8xf32> to vector<16xf32>
    %67 = vector.shape_cast %66 : vector<16xf32> to vector<16x1xf32>
    %68 = vector.broadcast %67 : vector<16x1xf32> to vector<16x8xf32>
    %69 = arith.subf %65, %68 : vector<16x8xf32>
    %70 = math.exp %69 : vector<16x8xf32>
    %cst_49 = arith.constant dense<0.000000e+00> : vector<16xf32>
    %71 = vector.multi_reduction <add>, %70, %cst_49 [1] : vector<16x8xf32> to vector<16xf32>
    %72 = vector.shape_cast %71 : vector<16xf32> to vector<16x1xf32>
    %73 = tpu.reciprocal %72 {approx = true} : vector<16x1xf32> -> vector<16x1xf32>
    %74 = vector.broadcast %73 : vector<16x1xf32> to vector<16x8xf32>
    %75 = arith.mulf %70, %74 : vector<16x8xf32>
    %76 = vector.extract_strided_slice %31 {offsets = [0, 8], sizes = [8, 8], strides = [1, 1]} : vector<8x32xf32> to vector<8x8xf32>
    %cst_50 = arith.constant dense<0.000000e+00> : vector<16x8xf32>
    %77 = tpu.matmul %75, %76, %cst_50 {dimension_numbers = #tpu.dot_dimension_numbers<[1], [0], [0], [1], [0, 0, 1, 1], [], []>} : vector<16x8xf32>, vector<8x8xf32>, vector<16x8xf32> -> vector<16x8xf32>
    %78 = vector.extract_strided_slice %16 {offsets = [8, 0], sizes = [8, 32], strides = [1, 1]} : vector<32x32xf32> to vector<8x32xf32>
    %cst_51 = arith.constant dense<0.000000e+00> : vector<16x32xf32>
    %79 = tpu.matmul %77, %78, %cst_51 {dimension_numbers = #tpu.dot_dimension_numbers<[1], [0], [0], [1], [0, 0, 1, 1], [], []>} : vector<16x8xf32>, vector<8x32xf32>, vector<16x32xf32> -> vector<16x32xf32>
    %80 = arith.addf %60, %79 : vector<16x32xf32>
    %81 = vector.extract_strided_slice %41 {offsets = [0, 16], sizes = [16, 8], strides = [1, 1]} : vector<16x32xf32> to vector<16x8xf32>
    %82 = vector.extract_strided_slice %30 {offsets = [0, 16], sizes = [8, 8], strides = [1, 1]} : vector<8x32xf32> to vector<8x8xf32>
    %83 = tpu.transpose %82, [1, 0] : vector<8x8xf32> -> vector<8x8xf32>
    %cst_52 = arith.constant dense<0.000000e+00> : vector<16x8xf32>
    %84 = tpu.matmul %81, %83, %cst_52 {dimension_numbers = #tpu.dot_dimension_numbers<[1], [0], [0], [1], [0, 0, 1, 1], [], []>} : vector<16x8xf32>, vector<8x8xf32>, vector<16x8xf32> -> vector<16x8xf32>
    %85 = arith.addf %84, %11 : vector<16x8xf32>
    %cst_53 = arith.constant dense<0xFF800000> : vector<16xf32>
    %86 = vector.multi_reduction <maximumf>, %85, %cst_53 [1] : vector<16x8xf32> to vector<16xf32>
    %87 = vector.shape_cast %86 : vector<16xf32> to vector<16x1xf32>
    %88 = vector.broadcast %87 : vector<16x1xf32> to vector<16x8xf32>
    %89 = arith.subf %85, %88 : vector<16x8xf32>
    %90 = math.exp %89 : vector<16x8xf32>
    %cst_54 = arith.constant dense<0.000000e+00> : vector<16xf32>
    %91 = vector.multi_reduction <add>, %90, %cst_54 [1] : vector<16x8xf32> to vector<16xf32>
    %92 = vector.shape_cast %91 : vector<16xf32> to vector<16x1xf32>
    %93 = tpu.reciprocal %92 {approx = true} : vector<16x1xf32> -> vector<16x1xf32>
    %94 = vector.broadcast %93 : vector<16x1xf32> to vector<16x8xf32>
    %95 = arith.mulf %90, %94 : vector<16x8xf32>
    %96 = vector.extract_strided_slice %31 {offsets = [0, 16], sizes = [8, 8], strides = [1, 1]} : vector<8x32xf32> to vector<8x8xf32>
    %cst_55 = arith.constant dense<0.000000e+00> : vector<16x8xf32>
    %97 = tpu.matmul %95, %96, %cst_55 {dimension_numbers = #tpu.dot_dimension_numbers<[1], [0], [0], [1], [0, 0, 1, 1], [], []>} : vector<16x8xf32>, vector<8x8xf32>, vector<16x8xf32> -> vector<16x8xf32>
    %98 = vector.extract_strided_slice %16 {offsets = [16, 0], sizes = [8, 32], strides = [1, 1]} : vector<32x32xf32> to vector<8x32xf32>
    %cst_56 = arith.constant dense<0.000000e+00> : vector<16x32xf32>
    %99 = tpu.matmul %97, %98, %cst_56 {dimension_numbers = #tpu.dot_dimension_numbers<[1], [0], [0], [1], [0, 0, 1, 1], [], []>} : vector<16x8xf32>, vector<8x32xf32>, vector<16x32xf32> -> vector<16x32xf32>
    %100 = arith.addf %80, %99 : vector<16x32xf32>
    %101 = vector.extract_strided_slice %41 {offsets = [0, 24], sizes = [16, 8], strides = [1, 1]} : vector<16x32xf32> to vector<16x8xf32>
    %102 = vector.extract_strided_slice %30 {offsets = [0, 24], sizes = [8, 8], strides = [1, 1]} : vector<8x32xf32> to vector<8x8xf32>
    %103 = tpu.transpose %102, [1, 0] : vector<8x8xf32> -> vector<8x8xf32>
    %cst_57 = arith.constant dense<0.000000e+00> : vector<16x8xf32>
    %104 = tpu.matmul %101, %103, %cst_57 {dimension_numbers = #tpu.dot_dimension_numbers<[1], [0], [0], [1], [0, 0, 1, 1], [], []>} : vector<16x8xf32>, vector<8x8xf32>, vector<16x8xf32> -> vector<16x8xf32>
    %105 = arith.addf %104, %11 : vector<16x8xf32>
    %cst_58 = arith.constant dense<0xFF800000> : vector<16xf32>
    %106 = vector.multi_reduction <maximumf>, %105, %cst_58 [1] : vector<16x8xf32> to vector<16xf32>
    %107 = vector.shape_cast %106 : vector<16xf32> to vector<16x1xf32>
    %108 = vector.broadcast %107 : vector<16x1xf32> to vector<16x8xf32>
    %109 = arith.subf %105, %108 : vector<16x8xf32>
    %110 = math.exp %109 : vector<16x8xf32>
    %cst_59 = arith.constant dense<0.000000e+00> : vector<16xf32>
    %111 = vector.multi_reduction <add>, %110, %cst_59 [1] : vector<16x8xf32> to vector<16xf32>
    %112 = vector.shape_cast %111 : vector<16xf32> to vector<16x1xf32>
    %113 = tpu.reciprocal %112 {approx = true} : vector<16x1xf32> -> vector<16x1xf32>
    %114 = vector.broadcast %113 : vector<16x1xf32> to vector<16x8xf32>
    %115 = arith.mulf %110, %114 : vector<16x8xf32>
    %116 = vector.extract_strided_slice %31 {offsets = [0, 24], sizes = [8, 8], strides = [1, 1]} : vector<8x32xf32> to vector<8x8xf32>
    %cst_60 = arith.constant dense<0.000000e+00> : vector<16x8xf32>
    %117 = tpu.matmul %115, %116, %cst_60 {dimension_numbers = #tpu.dot_dimension_numbers<[1], [0], [0], [1], [0, 0, 1, 1], [], []>} : vector<16x8xf32>, vector<8x8xf32>, vector<16x8xf32> -> vector<16x8xf32>
    %118 = vector.extract_strided_slice %16 {offsets = [24, 0], sizes = [8, 32], strides = [1, 1]} : vector<32x32xf32> to vector<8x32xf32>
    %cst_61 = arith.constant dense<0.000000e+00> : vector<16x32xf32>
    %119 = tpu.matmul %117, %118, %cst_61 {dimension_numbers = #tpu.dot_dimension_numbers<[1], [0], [0], [1], [0, 0, 1, 1], [], []>} : vector<16x8xf32>, vector<8x32xf32>, vector<16x32xf32> -> vector<16x32xf32>
    %120 = arith.addf %100, %119 : vector<16x32xf32>
    %121 = vector.broadcast %17 : vector<1x32xf32> to vector<16x32xf32>
    %122 = arith.addf %120, %121 : vector<16x32xf32>
    %123 = arith.addf %122, %3 : vector<16x32xf32>
    %cst_62 = arith.constant dense<0.000000e+00> : vector<16xf32>
    %124 = vector.multi_reduction <add>, %123, %cst_62 [1] : vector<16x32xf32> to vector<16xf32>
    %125 = vector.shape_cast %124 : vector<16xf32> to vector<16x1xf32>
    %cst_63 = arith.constant 3.200000e+01 : f32
    %126 = vector.broadcast %cst_63 : f32 to vector<16x1xf32>
    %127 = arith.divf %125, %126 : vector<16x1xf32>
    %128 = vector.broadcast %127 : vector<16x1xf32> to vector<16x32xf32>
    %129 = arith.subf %123, %128 : vector<16x32xf32>
    %130 = arith.mulf %129, %129 : vector<16x32xf32>
    %cst_64 = arith.constant dense<0.000000e+00> : vector<16xf32>
    %131 = vector.multi_reduction <add>, %130, %cst_64 [1] : vector<16x32xf32> to vector<16xf32>
    %132 = vector.shape_cast %131 : vector<16xf32> to vector<16x1xf32>
    %cst_65 = arith.constant 3.200000e+01 : f32
    %133 = vector.broadcast %cst_65 : f32 to vector<16x1xf32>
    %134 = arith.divf %132, %133 : vector<16x1xf32>
    %135 = vector.broadcast %127 : vector<16x1xf32> to vector<16x32xf32>
    %136 = arith.subf %123, %135 : vector<16x32xf32>
    %cst_66 = arith.constant 9.99999996E-13 : f32
    %137 = vector.broadcast %cst_66 : f32 to vector<16x1xf32>
    %138 = arith.addf %134, %137 : vector<16x1xf32>
    %139 = math.rsqrt %138 : vector<16x1xf32>
    %140 = vector.broadcast %139 : vector<16x1xf32> to vector<16x32xf32>
    %141 = arith.mulf %136, %140 : vector<16x32xf32>
    %142 = vector.broadcast %18 : vector<1x32xf32> to vector<16x32xf32>
    %143 = arith.mulf %141, %142 : vector<16x32xf32>
    %144 = vector.broadcast %19 : vector<1x32xf32> to vector<16x32xf32>
    %145 = arith.addf %143, %144 : vector<16x32xf32>
    %cst_67 = arith.constant 0.000000e+00 : f32
    %146 = vector.broadcast %cst_67 : f32 to vector<8x32xf32>
    %cst_68 = arith.constant 0.000000e+00 : f32
    %147 = vector.broadcast %cst_68 : f32 to vector<8x32xf32>
    %148 = vector.extract_strided_slice %37 {offsets = [0, 0], sizes = [8, 32], strides = [1, 1]} : vector<16x32xf32> to vector<8x32xf32>
    %149 = vector.extract_strided_slice %38 {offsets = [0, 0], sizes = [8, 32], strides = [1, 1]} : vector<16x32xf32> to vector<8x32xf32>
    %150 = vector.extract_strided_slice %29 {offsets = [0, 0], sizes = [8, 8], strides = [1, 1]} : vector<8x32xf32> to vector<8x8xf32>
    %151 = vector.extract_strided_slice %148 {offsets = [0, 0], sizes = [8, 8], strides = [1, 1]} : vector<8x32xf32> to vector<8x8xf32>
    %152 = tpu.transpose %151, [1, 0] : vector<8x8xf32> -> vector<8x8xf32>
    %cst_69 = arith.constant dense<0.000000e+00> : vector<8x8xf32>
    %153 = tpu.matmul %150, %152, %cst_69 {dimension_numbers = #tpu.dot_dimension_numbers<[1], [0], [0], [1], [0, 0, 1, 1], [], []>} : vector<8x8xf32>, vector<8x8xf32>, vector<8x8xf32> -> vector<8x8xf32>
    %154 = arith.addf %153, %7 : vector<8x8xf32>
    %cst_70 = arith.constant dense<0xFF800000> : vector<8xf32>
    %155 = vector.multi_reduction <maximumf>, %154, %cst_70 [1] : vector<8x8xf32> to vector<8xf32>
    %156 = vector.shape_cast %155 : vector<8xf32> to vector<8x1xf32>
    %157 = vector.broadcast %156 : vector<8x1xf32> to vector<8x8xf32>
    %158 = arith.subf %154, %157 : vector<8x8xf32>
    %159 = math.exp %158 : vector<8x8xf32>
    %cst_71 = arith.constant dense<0.000000e+00> : vector<8xf32>
    %160 = vector.multi_reduction <add>, %159, %cst_71 [1] : vector<8x8xf32> to vector<8xf32>
    %161 = vector.shape_cast %160 : vector<8xf32> to vector<8x1xf32>
    %162 = tpu.reciprocal %161 {approx = true} : vector<8x1xf32> -> vector<8x1xf32>
    %163 = vector.broadcast %162 : vector<8x1xf32> to vector<8x8xf32>
    %164 = arith.mulf %159, %163 : vector<8x8xf32>
    %165 = vector.extract_strided_slice %149 {offsets = [0, 0], sizes = [8, 8], strides = [1, 1]} : vector<8x32xf32> to vector<8x8xf32>
    %cst_72 = arith.constant dense<0.000000e+00> : vector<8x8xf32>
    %166 = tpu.matmul %164, %165, %cst_72 {dimension_numbers = #tpu.dot_dimension_numbers<[1], [0], [0], [1], [0, 0, 1, 1], [], []>} : vector<8x8xf32>, vector<8x8xf32>, vector<8x8xf32> -> vector<8x8xf32>
    %167 = vector.extract_strided_slice %12 {offsets = [0, 0], sizes = [8, 32], strides = [1, 1]} : vector<32x32xf32> to vector<8x32xf32>
    %cst_73 = arith.constant dense<0.000000e+00> : vector<8x32xf32>
    %168 = tpu.matmul %166, %167, %cst_73 {dimension_numbers = #tpu.dot_dimension_numbers<[1], [0], [0], [1], [0, 0, 1, 1], [], []>} : vector<8x8xf32>, vector<8x32xf32>, vector<8x32xf32> -> vector<8x32xf32>
    %169 = vector.extract_strided_slice %29 {offsets = [0, 8], sizes = [8, 8], strides = [1, 1]} : vector<8x32xf32> to vector<8x8xf32>
    %170 = vector.extract_strided_slice %148 {offsets = [0, 8], sizes = [8, 8], strides = [1, 1]} : vector<8x32xf32> to vector<8x8xf32>
    %171 = tpu.transpose %170, [1, 0] : vector<8x8xf32> -> vector<8x8xf32>
    %cst_74 = arith.constant dense<0.000000e+00> : vector<8x8xf32>
    %172 = tpu.matmul %169, %171, %cst_74 {dimension_numbers = #tpu.dot_dimension_numbers<[1], [0], [0], [1], [0, 0, 1, 1], [], []>} : vector<8x8xf32>, vector<8x8xf32>, vector<8x8xf32> -> vector<8x8xf32>
    %173 = arith.addf %172, %7 : vector<8x8xf32>
    %cst_75 = arith.constant dense<0xFF800000> : vector<8xf32>
    %174 = vector.multi_reduction <maximumf>, %173, %cst_75 [1] : vector<8x8xf32> to vector<8xf32>
    %175 = vector.shape_cast %174 : vector<8xf32> to vector<8x1xf32>
    %176 = vector.broadcast %175 : vector<8x1xf32> to vector<8x8xf32>
    %177 = arith.subf %173, %176 : vector<8x8xf32>
    %178 = math.exp %177 : vector<8x8xf32>
    %cst_76 = arith.constant dense<0.000000e+00> : vector<8xf32>
    %179 = vector.multi_reduction <add>, %178, %cst_76 [1] : vector<8x8xf32> to vector<8xf32>
    %180 = vector.shape_cast %179 : vector<8xf32> to vector<8x1xf32>
    %181 = tpu.reciprocal %180 {approx = true} : vector<8x1xf32> -> vector<8x1xf32>
    %182 = vector.broadcast %181 : vector<8x1xf32> to vector<8x8xf32>
    %183 = arith.mulf %178, %182 : vector<8x8xf32>
    %184 = vector.extract_strided_slice %149 {offsets = [0, 8], sizes = [8, 8], strides = [1, 1]} : vector<8x32xf32> to vector<8x8xf32>
    %cst_77 = arith.constant dense<0.000000e+00> : vector<8x8xf32>
    %185 = tpu.matmul %183, %184, %cst_77 {dimension_numbers = #tpu.dot_dimension_numbers<[1], [0], [0], [1], [0, 0, 1, 1], [], []>} : vector<8x8xf32>, vector<8x8xf32>, vector<8x8xf32> -> vector<8x8xf32>
    %186 = vector.extract_strided_slice %12 {offsets = [8, 0], sizes = [8, 32], strides = [1, 1]} : vector<32x32xf32> to vector<8x32xf32>
    %cst_78 = arith.constant dense<0.000000e+00> : vector<8x32xf32>
    %187 = tpu.matmul %185, %186, %cst_78 {dimension_numbers = #tpu.dot_dimension_numbers<[1], [0], [0], [1], [0, 0, 1, 1], [], []>} : vector<8x8xf32>, vector<8x32xf32>, vector<8x32xf32> -> vector<8x32xf32>
    %188 = arith.addf %168, %187 : vector<8x32xf32>
    %189 = vector.extract_strided_slice %29 {offsets = [0, 16], sizes = [8, 8], strides = [1, 1]} : vector<8x32xf32> to vector<8x8xf32>
    %190 = vector.extract_strided_slice %148 {offsets = [0, 16], sizes = [8, 8], strides = [1, 1]} : vector<8x32xf32> to vector<8x8xf32>
    %191 = tpu.transpose %190, [1, 0] : vector<8x8xf32> -> vector<8x8xf32>
    %cst_79 = arith.constant dense<0.000000e+00> : vector<8x8xf32>
    %192 = tpu.matmul %189, %191, %cst_79 {dimension_numbers = #tpu.dot_dimension_numbers<[1], [0], [0], [1], [0, 0, 1, 1], [], []>} : vector<8x8xf32>, vector<8x8xf32>, vector<8x8xf32> -> vector<8x8xf32>
    %193 = arith.addf %192, %7 : vector<8x8xf32>
    %cst_80 = arith.constant dense<0xFF800000> : vector<8xf32>
    %194 = vector.multi_reduction <maximumf>, %193, %cst_80 [1] : vector<8x8xf32> to vector<8xf32>
    %195 = vector.shape_cast %194 : vector<8xf32> to vector<8x1xf32>
    %196 = vector.broadcast %195 : vector<8x1xf32> to vector<8x8xf32>
    %197 = arith.subf %193, %196 : vector<8x8xf32>
    %198 = math.exp %197 : vector<8x8xf32>
    %cst_81 = arith.constant dense<0.000000e+00> : vector<8xf32>
    %199 = vector.multi_reduction <add>, %198, %cst_81 [1] : vector<8x8xf32> to vector<8xf32>
    %200 = vector.shape_cast %199 : vector<8xf32> to vector<8x1xf32>
    %201 = tpu.reciprocal %200 {approx = true} : vector<8x1xf32> -> vector<8x1xf32>
    %202 = vector.broadcast %201 : vector<8x1xf32> to vector<8x8xf32>
    %203 = arith.mulf %198, %202 : vector<8x8xf32>
    %204 = vector.extract_strided_slice %149 {offsets = [0, 16], sizes = [8, 8], strides = [1, 1]} : vector<8x32xf32> to vector<8x8xf32>
    %cst_82 = arith.constant dense<0.000000e+00> : vector<8x8xf32>
    %205 = tpu.matmul %203, %204, %cst_82 {dimension_numbers = #tpu.dot_dimension_numbers<[1], [0], [0], [1], [0, 0, 1, 1], [], []>} : vector<8x8xf32>, vector<8x8xf32>, vector<8x8xf32> -> vector<8x8xf32>
    %206 = vector.extract_strided_slice %12 {offsets = [16, 0], sizes = [8, 32], strides = [1, 1]} : vector<32x32xf32> to vector<8x32xf32>
    %cst_83 = arith.constant dense<0.000000e+00> : vector<8x32xf32>
    %207 = tpu.matmul %205, %206, %cst_83 {dimension_numbers = #tpu.dot_dimension_numbers<[1], [0], [0], [1], [0, 0, 1, 1], [], []>} : vector<8x8xf32>, vector<8x32xf32>, vector<8x32xf32> -> vector<8x32xf32>
    %208 = arith.addf %188, %207 : vector<8x32xf32>
    %209 = vector.extract_strided_slice %29 {offsets = [0, 24], sizes = [8, 8], strides = [1, 1]} : vector<8x32xf32> to vector<8x8xf32>
    %210 = vector.extract_strided_slice %148 {offsets = [0, 24], sizes = [8, 8], strides = [1, 1]} : vector<8x32xf32> to vector<8x8xf32>
    %211 = tpu.transpose %210, [1, 0] : vector<8x8xf32> -> vector<8x8xf32>
    %cst_84 = arith.constant dense<0.000000e+00> : vector<8x8xf32>
    %212 = tpu.matmul %209, %211, %cst_84 {dimension_numbers = #tpu.dot_dimension_numbers<[1], [0], [0], [1], [0, 0, 1, 1], [], []>} : vector<8x8xf32>, vector<8x8xf32>, vector<8x8xf32> -> vector<8x8xf32>
    %213 = arith.addf %212, %7 : vector<8x8xf32>
    %cst_85 = arith.constant dense<0xFF800000> : vector<8xf32>
    %214 = vector.multi_reduction <maximumf>, %213, %cst_85 [1] : vector<8x8xf32> to vector<8xf32>
    %215 = vector.shape_cast %214 : vector<8xf32> to vector<8x1xf32>
    %216 = vector.broadcast %215 : vector<8x1xf32> to vector<8x8xf32>
    %217 = arith.subf %213, %216 : vector<8x8xf32>
    %218 = math.exp %217 : vector<8x8xf32>
    %cst_86 = arith.constant dense<0.000000e+00> : vector<8xf32>
    %219 = vector.multi_reduction <add>, %218, %cst_86 [1] : vector<8x8xf32> to vector<8xf32>
    %220 = vector.shape_cast %219 : vector<8xf32> to vector<8x1xf32>
    %221 = tpu.reciprocal %220 {approx = true} : vector<8x1xf32> -> vector<8x1xf32>
    %222 = vector.broadcast %221 : vector<8x1xf32> to vector<8x8xf32>
    %223 = arith.mulf %218, %222 : vector<8x8xf32>
    %224 = vector.extract_strided_slice %149 {offsets = [0, 24], sizes = [8, 8], strides = [1, 1]} : vector<8x32xf32> to vector<8x8xf32>
    %cst_87 = arith.constant dense<0.000000e+00> : vector<8x8xf32>
    %225 = tpu.matmul %223, %224, %cst_87 {dimension_numbers = #tpu.dot_dimension_numbers<[1], [0], [0], [1], [0, 0, 1, 1], [], []>} : vector<8x8xf32>, vector<8x8xf32>, vector<8x8xf32> -> vector<8x8xf32>
    %226 = vector.extract_strided_slice %12 {offsets = [24, 0], sizes = [8, 32], strides = [1, 1]} : vector<32x32xf32> to vector<8x32xf32>
    %cst_88 = arith.constant dense<0.000000e+00> : vector<8x32xf32>
    %227 = tpu.matmul %225, %226, %cst_88 {dimension_numbers = #tpu.dot_dimension_numbers<[1], [0], [0], [1], [0, 0, 1, 1], [], []>} : vector<8x8xf32>, vector<8x32xf32>, vector<8x32xf32> -> vector<8x32xf32>
    %228 = arith.addf %208, %227 : vector<8x32xf32>
    %229 = vector.broadcast %13 : vector<1x32xf32> to vector<8x32xf32>
    %230 = arith.addf %228, %229 : vector<8x32xf32>
    %231 = arith.addf %230, %1 : vector<8x32xf32>
    %cst_89 = arith.constant dense<0.000000e+00> : vector<8xf32>
    %232 = vector.multi_reduction <add>, %231, %cst_89 [1] : vector<8x32xf32> to vector<8xf32>
    %233 = vector.shape_cast %232 : vector<8xf32> to vector<8x1xf32>
    %cst_90 = arith.constant 3.200000e+01 : f32
    %234 = vector.broadcast %cst_90 : f32 to vector<8x1xf32>
    %235 = arith.divf %233, %234 : vector<8x1xf32>
    %236 = vector.broadcast %235 : vector<8x1xf32> to vector<8x32xf32>
    %237 = arith.subf %231, %236 : vector<8x32xf32>
    %238 = arith.mulf %237, %237 : vector<8x32xf32>
    %cst_91 = arith.constant dense<0.000000e+00> : vector<8xf32>
    %239 = vector.multi_reduction <add>, %238, %cst_91 [1] : vector<8x32xf32> to vector<8xf32>
    %240 = vector.shape_cast %239 : vector<8xf32> to vector<8x1xf32>
    %cst_92 = arith.constant 3.200000e+01 : f32
    %241 = vector.broadcast %cst_92 : f32 to vector<8x1xf32>
    %242 = arith.divf %240, %241 : vector<8x1xf32>
    %243 = vector.broadcast %235 : vector<8x1xf32> to vector<8x32xf32>
    %244 = arith.subf %231, %243 : vector<8x32xf32>
    %cst_93 = arith.constant 9.99999996E-13 : f32
    %245 = vector.broadcast %cst_93 : f32 to vector<8x1xf32>
    %246 = arith.addf %242, %245 : vector<8x1xf32>
    %247 = math.rsqrt %246 : vector<8x1xf32>
    %248 = vector.broadcast %247 : vector<8x1xf32> to vector<8x32xf32>
    %249 = arith.mulf %244, %248 : vector<8x32xf32>
    %250 = vector.broadcast %14 : vector<1x32xf32> to vector<8x32xf32>
    %251 = arith.mulf %249, %250 : vector<8x32xf32>
    %252 = vector.broadcast %15 : vector<1x32xf32> to vector<8x32xf32>
    %253 = arith.addf %251, %252 : vector<8x32xf32>
    %254 = vector.extract_strided_slice %20 {offsets = [0, 0], sizes = [32, 32], strides = [1, 1]} : vector<64x32xf32> to vector<32x32xf32>
    %cst_94 = arith.constant dense<0.000000e+00> : vector<8x32xf32>
    %255 = tpu.matmul %253, %254, %cst_94 {dimension_numbers = #tpu.dot_dimension_numbers<[1], [0], [0], [1], [0, 0, 1, 1], [], []>} : vector<8x32xf32>, vector<32x32xf32>, vector<8x32xf32> -> vector<8x32xf32>
    %256 = arith.addf %146, %255 : vector<8x32xf32>
    %257 = vector.extract_strided_slice %145 {offsets = [0, 0], sizes = [8, 32], strides = [1, 1]} : vector<16x32xf32> to vector<8x32xf32>
    %258 = vector.extract_strided_slice %21 {offsets = [0, 0], sizes = [32, 32], strides = [1, 1]} : vector<64x32xf32> to vector<32x32xf32>
    %cst_95 = arith.constant dense<0.000000e+00> : vector<8x32xf32>
    %259 = tpu.matmul %257, %258, %cst_95 {dimension_numbers = #tpu.dot_dimension_numbers<[1], [0], [0], [1], [0, 0, 1, 1], [], []>} : vector<8x32xf32>, vector<32x32xf32>, vector<8x32xf32> -> vector<8x32xf32>
    %260 = arith.addf %147, %259 : vector<8x32xf32>
    %261 = vector.extract_strided_slice %37 {offsets = [8, 0], sizes = [8, 32], strides = [1, 1]} : vector<16x32xf32> to vector<8x32xf32>
    %262 = vector.extract_strided_slice %38 {offsets = [8, 0], sizes = [8, 32], strides = [1, 1]} : vector<16x32xf32> to vector<8x32xf32>
    %263 = vector.extract_strided_slice %29 {offsets = [0, 0], sizes = [8, 8], strides = [1, 1]} : vector<8x32xf32> to vector<8x8xf32>
    %264 = vector.extract_strided_slice %261 {offsets = [0, 0], sizes = [8, 8], strides = [1, 1]} : vector<8x32xf32> to vector<8x8xf32>
    %265 = tpu.transpose %264, [1, 0] : vector<8x8xf32> -> vector<8x8xf32>
    %cst_96 = arith.constant dense<0.000000e+00> : vector<8x8xf32>
    %266 = tpu.matmul %263, %265, %cst_96 {dimension_numbers = #tpu.dot_dimension_numbers<[1], [0], [0], [1], [0, 0, 1, 1], [], []>} : vector<8x8xf32>, vector<8x8xf32>, vector<8x8xf32> -> vector<8x8xf32>
    %267 = arith.addf %266, %7 : vector<8x8xf32>
    %cst_97 = arith.constant dense<0xFF800000> : vector<8xf32>
    %268 = vector.multi_reduction <maximumf>, %267, %cst_97 [1] : vector<8x8xf32> to vector<8xf32>
    %269 = vector.shape_cast %268 : vector<8xf32> to vector<8x1xf32>
    %270 = vector.broadcast %269 : vector<8x1xf32> to vector<8x8xf32>
    %271 = arith.subf %267, %270 : vector<8x8xf32>
    %272 = math.exp %271 : vector<8x8xf32>
    %cst_98 = arith.constant dense<0.000000e+00> : vector<8xf32>
    %273 = vector.multi_reduction <add>, %272, %cst_98 [1] : vector<8x8xf32> to vector<8xf32>
    %274 = vector.shape_cast %273 : vector<8xf32> to vector<8x1xf32>
    %275 = tpu.reciprocal %274 {approx = true} : vector<8x1xf32> -> vector<8x1xf32>
    %276 = vector.broadcast %275 : vector<8x1xf32> to vector<8x8xf32>
    %277 = arith.mulf %272, %276 : vector<8x8xf32>
    %278 = vector.extract_strided_slice %262 {offsets = [0, 0], sizes = [8, 8], strides = [1, 1]} : vector<8x32xf32> to vector<8x8xf32>
    %cst_99 = arith.constant dense<0.000000e+00> : vector<8x8xf32>
    %279 = tpu.matmul %277, %278, %cst_99 {dimension_numbers = #tpu.dot_dimension_numbers<[1], [0], [0], [1], [0, 0, 1, 1], [], []>} : vector<8x8xf32>, vector<8x8xf32>, vector<8x8xf32> -> vector<8x8xf32>
    %280 = vector.extract_strided_slice %12 {offsets = [0, 0], sizes = [8, 32], strides = [1, 1]} : vector<32x32xf32> to vector<8x32xf32>
    %cst_100 = arith.constant dense<0.000000e+00> : vector<8x32xf32>
    %281 = tpu.matmul %279, %280, %cst_100 {dimension_numbers = #tpu.dot_dimension_numbers<[1], [0], [0], [1], [0, 0, 1, 1], [], []>} : vector<8x8xf32>, vector<8x32xf32>, vector<8x32xf32> -> vector<8x32xf32>
    %282 = vector.extract_strided_slice %29 {offsets = [0, 8], sizes = [8, 8], strides = [1, 1]} : vector<8x32xf32> to vector<8x8xf32>
    %283 = vector.extract_strided_slice %261 {offsets = [0, 8], sizes = [8, 8], strides = [1, 1]} : vector<8x32xf32> to vector<8x8xf32>
    %284 = tpu.transpose %283, [1, 0] : vector<8x8xf32> -> vector<8x8xf32>
    %cst_101 = arith.constant dense<0.000000e+00> : vector<8x8xf32>
    %285 = tpu.matmul %282, %284, %cst_101 {dimension_numbers = #tpu.dot_dimension_numbers<[1], [0], [0], [1], [0, 0, 1, 1], [], []>} : vector<8x8xf32>, vector<8x8xf32>, vector<8x8xf32> -> vector<8x8xf32>
    %286 = arith.addf %285, %7 : vector<8x8xf32>
    %cst_102 = arith.constant dense<0xFF800000> : vector<8xf32>
    %287 = vector.multi_reduction <maximumf>, %286, %cst_102 [1] : vector<8x8xf32> to vector<8xf32>
    %288 = vector.shape_cast %287 : vector<8xf32> to vector<8x1xf32>
    %289 = vector.broadcast %288 : vector<8x1xf32> to vector<8x8xf32>
    %290 = arith.subf %286, %289 : vector<8x8xf32>
    %291 = math.exp %290 : vector<8x8xf32>
    %cst_103 = arith.constant dense<0.000000e+00> : vector<8xf32>
    %292 = vector.multi_reduction <add>, %291, %cst_103 [1] : vector<8x8xf32> to vector<8xf32>
    %293 = vector.shape_cast %292 : vector<8xf32> to vector<8x1xf32>
    %294 = tpu.reciprocal %293 {approx = true} : vector<8x1xf32> -> vector<8x1xf32>
    %295 = vector.broadcast %294 : vector<8x1xf32> to vector<8x8xf32>
    %296 = arith.mulf %291, %295 : vector<8x8xf32>
    %297 = vector.extract_strided_slice %262 {offsets = [0, 8], sizes = [8, 8], strides = [1, 1]} : vector<8x32xf32> to vector<8x8xf32>
    %cst_104 = arith.constant dense<0.000000e+00> : vector<8x8xf32>
    %298 = tpu.matmul %296, %297, %cst_104 {dimension_numbers = #tpu.dot_dimension_numbers<[1], [0], [0], [1], [0, 0, 1, 1], [], []>} : vector<8x8xf32>, vector<8x8xf32>, vector<8x8xf32> -> vector<8x8xf32>
    %299 = vector.extract_strided_slice %12 {offsets = [8, 0], sizes = [8, 32], strides = [1, 1]} : vector<32x32xf32> to vector<8x32xf32>
    %cst_105 = arith.constant dense<0.000000e+00> : vector<8x32xf32>
    %300 = tpu.matmul %298, %299, %cst_105 {dimension_numbers = #tpu.dot_dimension_numbers<[1], [0], [0], [1], [0, 0, 1, 1], [], []>} : vector<8x8xf32>, vector<8x32xf32>, vector<8x32xf32> -> vector<8x32xf32>
    %301 = arith.addf %281, %300 : vector<8x32xf32>
    %302 = vector.extract_strided_slice %29 {offsets = [0, 16], sizes = [8, 8], strides = [1, 1]} : vector<8x32xf32> to vector<8x8xf32>
    %303 = vector.extract_strided_slice %261 {offsets = [0, 16], sizes = [8, 8], strides = [1, 1]} : vector<8x32xf32> to vector<8x8xf32>
    %304 = tpu.transpose %303, [1, 0] : vector<8x8xf32> -> vector<8x8xf32>
    %cst_106 = arith.constant dense<0.000000e+00> : vector<8x8xf32>
    %305 = tpu.matmul %302, %304, %cst_106 {dimension_numbers = #tpu.dot_dimension_numbers<[1], [0], [0], [1], [0, 0, 1, 1], [], []>} : vector<8x8xf32>, vector<8x8xf32>, vector<8x8xf32> -> vector<8x8xf32>
    %306 = arith.addf %305, %7 : vector<8x8xf32>
    %cst_107 = arith.constant dense<0xFF800000> : vector<8xf32>
    %307 = vector.multi_reduction <maximumf>, %306, %cst_107 [1] : vector<8x8xf32> to vector<8xf32>
    %308 = vector.shape_cast %307 : vector<8xf32> to vector<8x1xf32>
    %309 = vector.broadcast %308 : vector<8x1xf32> to vector<8x8xf32>
    %310 = arith.subf %306, %309 : vector<8x8xf32>
    %311 = math.exp %310 : vector<8x8xf32>
    %cst_108 = arith.constant dense<0.000000e+00> : vector<8xf32>
    %312 = vector.multi_reduction <add>, %311, %cst_108 [1] : vector<8x8xf32> to vector<8xf32>
    %313 = vector.shape_cast %312 : vector<8xf32> to vector<8x1xf32>
    %314 = tpu.reciprocal %313 {approx = true} : vector<8x1xf32> -> vector<8x1xf32>
    %315 = vector.broadcast %314 : vector<8x1xf32> to vector<8x8xf32>
    %316 = arith.mulf %311, %315 : vector<8x8xf32>
    %317 = vector.extract_strided_slice %262 {offsets = [0, 16], sizes = [8, 8], strides = [1, 1]} : vector<8x32xf32> to vector<8x8xf32>
    %cst_109 = arith.constant dense<0.000000e+00> : vector<8x8xf32>
    %318 = tpu.matmul %316, %317, %cst_109 {dimension_numbers = #tpu.dot_dimension_numbers<[1], [0], [0], [1], [0, 0, 1, 1], [], []>} : vector<8x8xf32>, vector<8x8xf32>, vector<8x8xf32> -> vector<8x8xf32>
    %319 = vector.extract_strided_slice %12 {offsets = [16, 0], sizes = [8, 32], strides = [1, 1]} : vector<32x32xf32> to vector<8x32xf32>
    %cst_110 = arith.constant dense<0.000000e+00> : vector<8x32xf32>
    %320 = tpu.matmul %318, %319, %cst_110 {dimension_numbers = #tpu.dot_dimension_numbers<[1], [0], [0], [1], [0, 0, 1, 1], [], []>} : vector<8x8xf32>, vector<8x32xf32>, vector<8x32xf32> -> vector<8x32xf32>
    %321 = arith.addf %301, %320 : vector<8x32xf32>
    %322 = vector.extract_strided_slice %29 {offsets = [0, 24], sizes = [8, 8], strides = [1, 1]} : vector<8x32xf32> to vector<8x8xf32>
    %323 = vector.extract_strided_slice %261 {offsets = [0, 24], sizes = [8, 8], strides = [1, 1]} : vector<8x32xf32> to vector<8x8xf32>
    %324 = tpu.transpose %323, [1, 0] : vector<8x8xf32> -> vector<8x8xf32>
    %cst_111 = arith.constant dense<0.000000e+00> : vector<8x8xf32>
    %325 = tpu.matmul %322, %324, %cst_111 {dimension_numbers = #tpu.dot_dimension_numbers<[1], [0], [0], [1], [0, 0, 1, 1], [], []>} : vector<8x8xf32>, vector<8x8xf32>, vector<8x8xf32> -> vector<8x8xf32>
    %326 = arith.addf %325, %7 : vector<8x8xf32>
    %cst_112 = arith.constant dense<0xFF800000> : vector<8xf32>
    %327 = vector.multi_reduction <maximumf>, %326, %cst_112 [1] : vector<8x8xf32> to vector<8xf32>
    %328 = vector.shape_cast %327 : vector<8xf32> to vector<8x1xf32>
    %329 = vector.broadcast %328 : vector<8x1xf32> to vector<8x8xf32>
    %330 = arith.subf %326, %329 : vector<8x8xf32>
    %331 = math.exp %330 : vector<8x8xf32>
    %cst_113 = arith.constant dense<0.000000e+00> : vector<8xf32>
    %332 = vector.multi_reduction <add>, %331, %cst_113 [1] : vector<8x8xf32> to vector<8xf32>
    %333 = vector.shape_cast %332 : vector<8xf32> to vector<8x1xf32>
    %334 = tpu.reciprocal %333 {approx = true} : vector<8x1xf32> -> vector<8x1xf32>
    %335 = vector.broadcast %334 : vector<8x1xf32> to vector<8x8xf32>
    %336 = arith.mulf %331, %335 : vector<8x8xf32>
    %337 = vector.extract_strided_slice %262 {offsets = [0, 24], sizes = [8, 8], strides = [1, 1]} : vector<8x32xf32> to vector<8x8xf32>
    %cst_114 = arith.constant dense<0.000000e+00> : vector<8x8xf32>
    %338 = tpu.matmul %336, %337, %cst_114 {dimension_numbers = #tpu.dot_dimension_numbers<[1], [0], [0], [1], [0, 0, 1, 1], [], []>} : vector<8x8xf32>, vector<8x8xf32>, vector<8x8xf32> -> vector<8x8xf32>
    %339 = vector.extract_strided_slice %12 {offsets = [24, 0], sizes = [8, 32], strides = [1, 1]} : vector<32x32xf32> to vector<8x32xf32>
    %cst_115 = arith.constant dense<0.000000e+00> : vector<8x32xf32>
    %340 = tpu.matmul %338, %339, %cst_115 {dimension_numbers = #tpu.dot_dimension_numbers<[1], [0], [0], [1], [0, 0, 1, 1], [], []>} : vector<8x8xf32>, vector<8x32xf32>, vector<8x32xf32> -> vector<8x32xf32>
    %341 = arith.addf %321, %340 : vector<8x32xf32>
    %342 = vector.broadcast %13 : vector<1x32xf32> to vector<8x32xf32>
    %343 = arith.addf %341, %342 : vector<8x32xf32>
    %344 = arith.addf %343, %1 : vector<8x32xf32>
    %cst_116 = arith.constant dense<0.000000e+00> : vector<8xf32>
    %345 = vector.multi_reduction <add>, %344, %cst_116 [1] : vector<8x32xf32> to vector<8xf32>
    %346 = vector.shape_cast %345 : vector<8xf32> to vector<8x1xf32>
    %cst_117 = arith.constant 3.200000e+01 : f32
    %347 = vector.broadcast %cst_117 : f32 to vector<8x1xf32>
    %348 = arith.divf %346, %347 : vector<8x1xf32>
    %349 = vector.broadcast %348 : vector<8x1xf32> to vector<8x32xf32>
    %350 = arith.subf %344, %349 : vector<8x32xf32>
    %351 = arith.mulf %350, %350 : vector<8x32xf32>
    %cst_118 = arith.constant dense<0.000000e+00> : vector<8xf32>
    %352 = vector.multi_reduction <add>, %351, %cst_118 [1] : vector<8x32xf32> to vector<8xf32>
    %353 = vector.shape_cast %352 : vector<8xf32> to vector<8x1xf32>
    %cst_119 = arith.constant 3.200000e+01 : f32
    %354 = vector.broadcast %cst_119 : f32 to vector<8x1xf32>
    %355 = arith.divf %353, %354 : vector<8x1xf32>
    %356 = vector.broadcast %348 : vector<8x1xf32> to vector<8x32xf32>
    %357 = arith.subf %344, %356 : vector<8x32xf32>
    %cst_120 = arith.constant 9.99999996E-13 : f32
    %358 = vector.broadcast %cst_120 : f32 to vector<8x1xf32>
    %359 = arith.addf %355, %358 : vector<8x1xf32>
    %360 = math.rsqrt %359 : vector<8x1xf32>
    %361 = vector.broadcast %360 : vector<8x1xf32> to vector<8x32xf32>
    %362 = arith.mulf %357, %361 : vector<8x32xf32>
    %363 = vector.broadcast %14 : vector<1x32xf32> to vector<8x32xf32>
    %364 = arith.mulf %362, %363 : vector<8x32xf32>
    %365 = vector.broadcast %15 : vector<1x32xf32> to vector<8x32xf32>
    %366 = arith.addf %364, %365 : vector<8x32xf32>
    %367 = vector.extract_strided_slice %20 {offsets = [32, 0], sizes = [32, 32], strides = [1, 1]} : vector<64x32xf32> to vector<32x32xf32>
    %cst_121 = arith.constant dense<0.000000e+00> : vector<8x32xf32>
    %368 = tpu.matmul %366, %367, %cst_121 {dimension_numbers = #tpu.dot_dimension_numbers<[1], [0], [0], [1], [0, 0, 1, 1], [], []>} : vector<8x32xf32>, vector<32x32xf32>, vector<8x32xf32> -> vector<8x32xf32>
    %369 = arith.addf %256, %368 : vector<8x32xf32>
    %370 = vector.extract_strided_slice %145 {offsets = [8, 0], sizes = [8, 32], strides = [1, 1]} : vector<16x32xf32> to vector<8x32xf32>
    %371 = vector.extract_strided_slice %21 {offsets = [32, 0], sizes = [32, 32], strides = [1, 1]} : vector<64x32xf32> to vector<32x32xf32>
    %cst_122 = arith.constant dense<0.000000e+00> : vector<8x32xf32>
    %372 = tpu.matmul %370, %371, %cst_122 {dimension_numbers = #tpu.dot_dimension_numbers<[1], [0], [0], [1], [0, 0, 1, 1], [], []>} : vector<8x32xf32>, vector<32x32xf32>, vector<8x32xf32> -> vector<8x32xf32>
    %373 = arith.addf %260, %372 : vector<8x32xf32>
    %c0_123 = arith.constant 0 : index
    %c0_124 = arith.constant 0 : index
    %374 = vector.load %arg18[%c0_123, %c0_124] : memref<1x32xf32, #tpu.memory_space<vmem>>, vector<1x32xf32>
    %375 = vector.broadcast %374 : vector<1x32xf32> to vector<8x32xf32>
    %376 = arith.addf %369, %375 : vector<8x32xf32>
    %c0_125 = arith.constant 0 : index
    %c0_126 = arith.constant 0 : index
    %c0_127 = arith.constant 0 : index
    %377 = vector.load %arg21[%c0_125, %c0_126, %c0_127] : memref<1x8x32xf32, #tpu.memory_space<vmem>>, vector<1x8x32xf32>
    %378 = vector.shape_cast %377 : vector<1x8x32xf32> to vector<8x32xf32>
    %379 = vector.shape_cast %376 : vector<8x32xf32> to vector<1x8x32xf32>
    tpu.vector_store %arg21[%c0_125, %c0_126, %c0_127], %379 {strides = array<i32>} : memref<1x8x32xf32, #tpu.memory_space<vmem>>, vector<1x8x32xf32>,
    %c0_128 = arith.constant 0 : index
    %c0_129 = arith.constant 0 : index
    %380 = vector.load %arg20[%c0_128, %c0_129] : memref<1x32xf32, #tpu.memory_space<vmem>>, vector<1x32xf32>
    %381 = vector.broadcast %380 : vector<1x32xf32> to vector<8x32xf32>
    %382 = arith.addf %373, %381 : vector<8x32xf32>
    %c0_130 = arith.constant 0 : index
    %c0_131 = arith.constant 0 : index
    %c0_132 = arith.constant 0 : index
    %383 = vector.load %arg22[%c0_130, %c0_131, %c0_132] : memref<1x8x32xf32, #tpu.memory_space<vmem>>, vector<1x8x32xf32>
    %384 = vector.shape_cast %383 : vector<1x8x32xf32> to vector<8x32xf32>
    %385 = vector.shape_cast %382 : vector<8x32xf32> to vector<1x8x32xf32>
    tpu.vector_store %arg22[%c0_130, %c0_131, %c0_132], %385 {strides = array<i32>} : memref<1x8x32xf32, #tpu.memory_space<vmem>>, vector<1x8x32xf32>,
    return
  }
  func.func @transform_0(%arg0: i32) -> (i32, i32, i32) {
    %c0_i32 = arith.constant 0 : i32
    %c0_i32_0 = arith.constant 0 : i32
    %c0_i32_1 = arith.constant 0 : i32
    return %arg0, %c0_i32, %c0_i32_0 : i32, i32, i32
  }
  func.func @transform_1(%arg0: i32) -> (i32, i32, i32) {
    %c0_i32 = arith.constant 0 : i32
    %c0_i32_0 = arith.constant 0 : i32
    %c0_i32_1 = arith.constant 0 : i32
    return %arg0, %c0_i32, %c0_i32_0 : i32, i32, i32
  }
  func.func @transform_2(%arg0: i32) -> (i32, i32, i32) {
    %c0_i32 = arith.constant 0 : i32
    %c0_i32_0 = arith.constant 0 : i32
    %c0_i32_1 = arith.constant 0 : i32
    return %arg0, %c0_i32, %c0_i32_0 : i32, i32, i32
  }
  func.func @transform_3(%arg0: i32) -> (i32, i32, i32) {
    %c0_i32 = arith.constant 0 : i32
    %c0_i32_0 = arith.constant 0 : i32
    %c0_i32_1 = arith.constant 0 : i32
    return %arg0, %c0_i32, %c0_i32_0 : i32, i32, i32
  }
  func.func @transform_4(%arg0: i32) -> (i32, i32) {
    %c0_i32 = arith.constant 0 : i32
    %c0_i32_0 = arith.constant 0 : i32
    %c0_i32_1 = arith.constant 0 : i32
    return %c0_i32, %c0_i32_0 : i32, i32
  }
  func.func @transform_5(%arg0: i32) -> (i32, i32) {
    %c0_i32 = arith.constant 0 : i32
    %c0_i32_0 = arith.constant 0 : i32
    %c0_i32_1 = arith.constant 0 : i32
    return %c0_i32, %c0_i32_0 : i32, i32
  }
  func.func @transform_6(%arg0: i32) -> (i32, i32) {
    %c0_i32 = arith.constant 0 : i32
    %c0_i32_0 = arith.constant 0 : i32
    %c0_i32_1 = arith.constant 0 : i32
    return %c0_i32, %c0_i32_0 : i32, i32
  }
  func.func @transform_7(%arg0: i32) -> (i32, i32) {
    %c0_i32 = arith.constant 0 : i32
    %c0_i32_0 = arith.constant 0 : i32
    %c0_i32_1 = arith.constant 0 : i32
    return %c0_i32, %c0_i32_0 : i32, i32
  }
  func.func @transform_8(%arg0: i32) -> (i32, i32) {
    %c0_i32 = arith.constant 0 : i32
    %c0_i32_0 = arith.constant 0 : i32
    %c0_i32_1 = arith.constant 0 : i32
    return %c0_i32, %c0_i32_0 : i32, i32
  }
  func.func @transform_9(%arg0: i32) -> (i32, i32) {
    %c0_i32 = arith.constant 0 : i32
    %c0_i32_0 = arith.constant 0 : i32
    %c0_i32_1 = arith.constant 0 : i32
    return %c0_i32, %c0_i32_0 : i32, i32
  }
  func.func @transform_10(%arg0: i32) -> (i32, i32) {
    %c0_i32 = arith.constant 0 : i32
    %c0_i32_0 = arith.constant 0 : i32
    %c0_i32_1 = arith.constant 0 : i32
    return %c0_i32, %c0_i32_0 : i32, i32
  }
  func.func @transform_11(%arg0: i32) -> (i32, i32) {
    %c0_i32 = arith.constant 0 : i32
    %c0_i32_0 = arith.constant 0 : i32
    %c0_i32_1 = arith.constant 0 : i32
    return %c0_i32, %c0_i32_0 : i32, i32
  }
  func.func @transform_12(%arg0: i32) -> (i32, i32) {
    %c0_i32 = arith.constant 0 : i32
    %c0_i32_0 = arith.constant 0 : i32
    %c0_i32_1 = arith.constant 0 : i32
    return %c0_i32, %c0_i32_0 : i32, i32
  }
  func.func @transform_13(%arg0: i32) -> (i32, i32) {
    %c0_i32 = arith.constant 0 : i32
    %c0_i32_0 = arith.constant 0 : i32
    %c0_i32_1 = arith.constant 0 : i32
    return %c0_i32, %c0_i32_0 : i32, i32
  }
  func.func @transform_14(%arg0: i32) -> (i32, i32) {
    %c0_i32 = arith.constant 0 : i32
    %c0_i32_0 = arith.constant 0 : i32
    %c0_i32_1 = arith.constant 0 : i32
    return %c0_i32, %c0_i32_0 : i32, i32
  }
  func.func @transform_15(%arg0: i32) -> (i32, i32) {
    %c0_i32 = arith.constant 0 : i32
    %c0_i32_0 = arith.constant 0 : i32
    %c0_i32_1 = arith.constant 0 : i32
    return %c0_i32, %c0_i32_0 : i32, i32
  }
  func.func @transform_16(%arg0: i32) -> (i32, i32) {
    %c0_i32 = arith.constant 0 : i32
    %c0_i32_0 = arith.constant 0 : i32
    %c0_i32_1 = arith.constant 0 : i32
    return %c0_i32, %c0_i32_0 : i32, i32
  }
  func.func @transform_17(%arg0: i32) -> (i32, i32) {
    %c0_i32 = arith.constant 0 : i32
    %c0_i32_0 = arith.constant 0 : i32
    %c0_i32_1 = arith.constant 0 : i32
    return %c0_i32, %c0_i32_0 : i32, i32
  }
  func.func @transform_18(%arg0: i32) -> (i32, i32) {
    %c0_i32 = arith.constant 0 : i32
    %c0_i32_0 = arith.constant 0 : i32
    %c0_i32_1 = arith.constant 0 : i32
    return %c0_i32, %c0_i32_0 : i32, i32
  }
  func.func @transform_19(%arg0: i32) -> (i32, i32) {
    %c0_i32 = arith.constant 0 : i32
    %c0_i32_0 = arith.constant 0 : i32
    %c0_i32_1 = arith.constant 0 : i32
    return %c0_i32, %c0_i32_0 : i32, i32
  }
  func.func @transform_20(%arg0: i32) -> (i32, i32, i32) {
    %c0_i32 = arith.constant 0 : i32
    %c0_i32_0 = arith.constant 0 : i32
    %c0_i32_1 = arith.constant 0 : i32
    return %arg0, %c0_i32, %c0_i32_0 : i32, i32, i32
  }
  func.func @transform_21(%arg0: i32) -> (i32, i32, i32) {
    %c0_i32 = arith.constant 0 : i32
    %c0_i32_0 = arith.constant 0 : i32
    %c0_i32_1 = arith.constant 0 : i32
    return %arg0, %c0_i32, %c0_i32_0 : i32, i32, i32
  }
}

</mosaic_0001>

<llo_original>
// kernel: _lambda_.1
$region0: #{_lambda_.1}
  #allocation0 [shape = 'u32[]', space=smem, size = 0x4, offset = 0x4, fixed_abs, tag = 'smem constant byte address 0x4 - core index']
  #allocation1 [shape = 'u32[144,128]{1,0:T(1,128)}', space=vmem, size = 0x12000, scoped, tag = 'internal scratch']
  %s0 = inlined_call_operand.hbm [shape: f32[2,8,32], index: 0, kind: input, shape index: {}]
  %s1 = inlined_call_operand.vmem [shape: f32[2,16,32], index: 1, kind: input, shape index: {}]
  %s2 = inlined_call_operand.hbm [shape: f32[2,1,8], index: 2, kind: input, shape index: {}]
  %s3 = inlined_call_operand.hbm [shape: f32[2,1,8], index: 3, kind: input, shape index: {}]
  %s4 = inlined_call_operand.hbm [shape: f32[32,96], index: 4, kind: input, shape index: {}]
  %s5 = inlined_call_operand.hbm [shape: f32[1,96], index: 5, kind: input, shape index: {}]
  %s6 = inlined_call_operand.hbm [shape: f32[32,96], index: 6, kind: input, shape index: {}]
  %s7 = inlined_call_operand.hbm [shape: f32[1,96], index: 7, kind: input, shape index: {}]
  %s8 = inlined_call_operand.hbm [shape: f32[32,32], index: 8, kind: input, shape index: {}]
  %s9 = inlined_call_operand.hbm [shape: f32[1,32], index: 9, kind: input, shape index: {}]
  %s10 = inlined_call_operand.vmem [shape: f32[1,32], index: 10, kind: input, shape index: {}, may-alias: {10,14}]
  %s11 = inlined_call_operand.vmem [shape: f32[1,32], index: 11, kind: input, shape index: {}, may-alias: {11,15}]
  %s12 = inlined_call_operand.hbm [shape: f32[32,32], index: 12, kind: input, shape index: {}]
  %s13 = inlined_call_operand.hbm [shape: f32[1,32], index: 13, kind: input, shape index: {}]
  %s14 = inlined_call_operand.vmem [shape: f32[1,32], index: 14, kind: input, shape index: {}, may-alias: {10,14}]
  %s15 = inlined_call_operand.vmem [shape: f32[1,32], index: 15, kind: input, shape index: {}, may-alias: {11,15}]
  %s16 = inlined_call_operand.vmem [shape: f32[64,32], index: 16, kind: input, shape index: {}]
  %s17 = inlined_call_operand.hbm [shape: f32[1,32], index: 17, kind: input, shape index: {}]
  %s18 = inlined_call_operand.vmem [shape: f32[64,32], index: 18, kind: input, shape index: {}]
  %s19 = inlined_call_operand.hbm [shape: f32[1,32], index: 19, kind: input, shape index: {}]
  %s20 = inlined_call_operand.hbm [shape: f32[2,8,32], index: 20, kind: output, shape index: {0}]
  %s21 = inlined_call_operand.vmem [shape: f32[2,8,32], index: 21, kind: output, shape index: {1}]
  %22 = xla_tuple %s20, %s21
  %s23 = sld [smem:[#allocation0]]
  $region173: #{_lambda_.1} parent=0
    _
  %s25 = ssub.s32 1, %s23
  %s26 = scalar_select 0, %s25, %s23
  $region1: #{_lambda_.1} parent=0
    #allocation2 [shape = 'u8[8192]{0}', space=vmem, size = 0x2000, scoped, tag = 'input window, operand 0']
    #allocation3 [shape = 's32[2]{0}', space=sflag, size = 0x8, scoped, tag = 'scoped memory for _lambda_.1']
    #allocation4 [shape = 's32[2]{0}', space=sflag, size = 0x8, scoped, tag = 'scoped memory for _lambda_.1']
    #allocation5 [shape = 'u8[1024]{0}', space=vmem, size = 0x400, scoped, tag = 'input window, operand 2']
    #allocation6 [shape = 's32[2]{0}', space=sflag, size = 0x8, scoped, tag = 'scoped memory for _lambda_.1']
    #allocation7 [shape = 'u8[1024]{0}', space=vmem, size = 0x400, scoped, tag = 'input window, operand 3']
    #allocation8 [shape = 'u8[16384]{0}', space=vmem, size = 0x4000, scoped, tag = 'input window, operand 4, single buffered']
    #allocation9 [shape = 's32[1]{0}', space=sflag, size = 0x4, scoped, tag = 'scoped memory for _lambda_.1']
    #allocation10 [shape = 'u8[512]{0}', space=vmem, size = 0x400, scoped, tag = 'input window, operand 5, single buffered']
    #allocation11 [shape = 'u8[16384]{0}', space=vmem, size = 0x4000, scoped, tag = 'input window, operand 6, single buffered']
    #allocation12 [shape = 's32[1]{0}', space=sflag, size = 0x4, scoped, tag = 'scoped memory for _lambda_.1']
    #allocation13 [shape = 'u8[512]{0}', space=vmem, size = 0x400, scoped, tag = 'input window, operand 7, single buffered']
    #allocation14 [shape = 'u8[16384]{0}', space=vmem, size = 0x4000, scoped, tag = 'input window, operand 8, single buffered']
    #allocation15 [shape = 's32[1]{0}', space=sflag, size = 0x4, scoped, tag = 'scoped memory for _lambda_.1']
    #allocation16 [shape = 'u8[512]{0}', space=vmem, size = 0x400, scoped, tag = 'input window, operand 9, single buffered']
    #allocation17 [shape = 'u8[16384]{0}', space=vmem, size = 0x4000, scoped, tag = 'input window, operand 12, single buffered']
    #allocation18 [shape = 's32[1]{0}', space=sflag, size = 0x4, scoped, tag = 'scoped memory for _lambda_.1']
    #allocation19 [shape = 'u8[512]{0}', space=vmem, size = 0x400, scoped, tag = 'input window, operand 13, single buffered']
    #allocation20 [shape = 'u8[512]{0}', space=vmem, size = 0x400, scoped, tag = 'input window, operand 17, single buffered']
    #allocation21 [shape = 's32[1]{0}', space=sflag, size = 0x4, scoped, tag = 'scoped memory for _lambda_.1']
    #allocation22 [shape = 'u8[512]{0}', space=vmem, size = 0x400, scoped, tag = 'input window, operand 19, single buffered']
    #allocation23 [shape = 'u8[8192]{0}', space=vmem, size = 0x2000, scoped, tag = 'output window, operand 0']
    %27 = vsyncpa [#allocation3], 0
    %s28 = scalar_lea.sflag [#allocation3], 1
    %29 = vsyncpa %s28, 0
    %30 = vsyncpa [#allocation6], 0
    %s31 = scalar_lea.sflag [#allocation6], 1
    %32 = vsyncpa %s31, 0
    %33 = vsyncpa [#allocation9], 0
    %34 = vsyncpa [#allocation12], 0
    %35 = vsyncpa [#allocation15], 0
    %36 = vsyncpa [#allocation18], 0
    %37 = vsyncpa [#allocation21], 0
    %38 = vsyncpa [#allocation4], 0
    %s39 = scalar_lea.sflag [#allocation4], 1
    %40 = vsyncpa %s39, 0
    loop: start=0, step=1, limit=4
    $region2: #{_lambda_.1} parent=1 // loop_pre_header
      _
    $region3: #{_lambda_.1} parent=1 // loop_header
      %s42 = sphi 0, %s46
      %p43 = scmp.ge.s32.totalorder %s42, 4
      %s52 = sphi 0, %s54
      %s55 = sphi 0, %s52
      %s56 = sphi 0, %s55
      %s72 = sphi 0, %s56
      %s78 = sphi 0, %s80
      %s81 = sphi 0, %s78
      %s82 = sphi 0, %s81
      %s98 = sphi 0, %s82
      %s104 = sphi 0, %s106
      %s107 = sphi 0, %s104
      %s108 = sphi 0, %s107
      %s124 = sphi 0, %s108
      %s130 = sphi 0, %s132
      %s133 = sphi 0, %s130
      %s134 = sphi 0, %s133
      %s150 = sphi 0, %s134
      %s154 = sphi 0, %s154
      %s156 = sphi 0, %s154
      %s157 = sphi 0, %s156
      %s171 = sphi 0, %s157
      %s175 = sphi 0, %s175
      %s177 = sphi 0, %s175
      %s178 = sphi 0, %s177
      %s192 = sphi 0, %s178
      %s196 = sphi 0, %s196
      %s198 = sphi 0, %s196
      %s199 = sphi 0, %s198
      %s213 = sphi 0, %s199
      %s217 = sphi 0, %s217
      %s219 = sphi 0, %s217
      %s220 = sphi 0, %s219
      %s234 = sphi 0, %s220
      %s238 = sphi 0, %s238
      %s240 = sphi 0, %s238
      %s241 = sphi 0, %s240
      %s255 = sphi 0, %s241
      %s259 = sphi 0, %s259
      %s261 = sphi 0, %s259
      %s262 = sphi 0, %s261
      %s276 = sphi 0, %s262
      %s280 = sphi 0, %s280
      %s282 = sphi 0, %s280
      %s283 = sphi 0, %s282
      %s297 = sphi 0, %s283
      %s301 = sphi 0, %s301
      %s303 = sphi 0, %s301
      %s304 = sphi 0, %s303
      %s318 = sphi 0, %s304
      %s322 = sphi 0, %s322
      %s324 = sphi 0, %s322
      %s325 = sphi 0, %s324
      %s339 = sphi 0, %s325
      %s343 = sphi 0, %s343
      %s345 = sphi 0, %s343
      %s346 = sphi 0, %s345
      %s360 = sphi 0, %s346
      %s364 = sphi 0, %s364
      %s366 = sphi 0, %s364
      %s367 = sphi 0, %s366
      %s381 = sphi 0, %s367
      %s385 = sphi 0, %s385
      %s387 = sphi 0, %s385
      %s388 = sphi 0, %s387
      %s402 = sphi 0, %s388
      %s406 = sphi 0, %s406
      %s408 = sphi 0, %s406
      %s409 = sphi 0, %s408
      %s423 = sphi 0, %s409
      %s427 = sphi 0, %s427
      %s429 = sphi 0, %s427
      %s430 = sphi 0, %s429
      %s444 = sphi 0, %s430
      %s448 = sphi 0, %s448
      %s450 = sphi 0, %s448
      %s451 = sphi 0, %s450
      %s465 = sphi 0, %s451
      %s469 = sphi 0, %s469
      %s471 = sphi 0, %s469
      %s472 = sphi 0, %s471
      %s486 = sphi 0, %s472
      %s492 = sphi 0, %s494
      %s495 = sphi 0, %s492
      %s496 = sphi 0, %s495
      %s512 = sphi 0, %s496
      %s518 = sphi 0, %s520
      %s521 = sphi 0, %s518
      %s522 = sphi 0, %s521
      %s538 = sphi 0, %s522
    $region4: #{_lambda_.1} parent=1 // loop_header_branch
      %45 = sbr.rel (%p43) target = $region8
    $region5: #{_lambda_.1} parent=1 // loop_body
      %s47 = ssub.s32 %s42, 1
      %s48 = ssub.s32 %s42, 2
      %s49 = sadd.s32 %s42, 1
      %s50 = ssub.s32 %s42, %s49
      %p51 = scmp.eq.s32.totalorder %s50, 0
      %s53 = sadd.s32 %s52, 1
      %s54 = scalar_select %p51, %s52, %s53
      %p57 = pneg %p51
      %p58 = scmp.eq.s32.totalorder %s42, 1
      %p59 = por %p57, %p58
      %p60 = scmp.ne.s32.totalorder %s52, %s55
      %p61 = scmp.eq.s32.totalorder %s42, 0
      %p62 = por %p60, %p61
      %p63 = scmp.ne.s32.totalorder %s52, %s55
      %p64 = scmp.eq.s32.totalorder %s47, 1
      %p65 = por %p63, %p64
      %p66 = scmp.ne.s32.totalorder %s55, %s56
      %p67 = scmp.eq.s32.totalorder %s47, 0
      %p68 = por %p66, %p67
      %p69 = scmp.ne.s32.totalorder %s55, %s56
      %p70 = scmp.eq.s32.totalorder %s48, 1
      %p71 = por %p69, %p70
      %p73 = scmp.ne.s32.totalorder %s56, %s72
      %p74 = scmp.eq.s32.totalorder %s48, 0
      %p75 = por %p73, %p74
      %s76 = ssub.s32 %s42, %s49
      %p77 = scmp.eq.s32.totalorder %s76, 0
      %s79 = sadd.s32 %s78, 1
      %s80 = scalar_select %p77, %s78, %s79
      %p83 = pneg %p77
      %p84 = scmp.eq.s32.totalorder %s42, 1
      %p85 = por %p83, %p84
      %p86 = scmp.ne.s32.totalorder %s78, %s81
      %p87 = scmp.eq.s32.totalorder %s42, 0
      %p88 = por %p86, %p87
      %p89 = scmp.ne.s32.totalorder %s78, %s81
      %p90 = scmp.eq.s32.totalorder %s47, 1
      %p91 = por %p89, %p90
      %p92 = scmp.ne.s32.totalorder %s81, %s82
      %p93 = scmp.eq.s32.totalorder %s47, 0
      %p94 = por %p92, %p93
      %p95 = scmp.ne.s32.totalorder %s81, %s82
      %p96 = scmp.eq.s32.totalorder %s48, 1
      %p97 = por %p95, %p96
      %p99 = scmp.ne.s32.totalorder %s82, %s98
      %p100 = scmp.eq.s32.totalorder %s48, 0
      %p101 = por %p99, %p100
      %s102 = ssub.s32 %s42, %s49
      %p103 = scmp.eq.s32.totalorder %s102, 0
      %s105 = sadd.s32 %s104, 1
      %s106 = scalar_select %p103, %s104, %s105
      %p109 = pneg %p103
      %p110 = scmp.eq.s32.totalorder %s42, 1
      %p111 = por %p109, %p110
      %p112 = scmp.ne.s32.totalorder %s104, %s107
      %p113 = scmp.eq.s32.totalorder %s42, 0
      %p114 = por %p112, %p113
      %p115 = scmp.ne.s32.totalorder %s104, %s107
      %p116 = scmp.eq.s32.totalorder %s47, 1
      %p117 = por %p115, %p116
      %p118 = scmp.ne.s32.totalorder %s107, %s108
      %p119 = scmp.eq.s32.totalorder %s47, 0
      %p120 = por %p118, %p119
      %p121 = scmp.ne.s32.totalorder %s107, %s108
      %p122 = scmp.eq.s32.totalorder %s48, 1
      %p123 = por %p121, %p122
      %p125 = scmp.ne.s32.totalorder %s108, %s124
      %p126 = scmp.eq.s32.totalorder %s48, 0
      %p127 = por %p125, %p126
      %s128 = ssub.s32 %s42, %s49
      %p129 = scmp.eq.s32.totalorder %s128, 0
      %s131 = sadd.s32 %s130, 1
      %s132 = scalar_select %p129, %s130, %s131
      %p135 = pneg %p129
      %p136 = scmp.eq.s32.totalorder %s42, 1
      %p137 = por %p135, %p136
      %p138 = scmp.ne.s32.totalorder %s130, %s133
      %p139 = scmp.eq.s32.totalorder %s42, 0
      %p140 = por %p138, %p139
      %p141 = scmp.ne.s32.totalorder %s130, %s133
      %p142 = scmp.eq.s32.totalorder %s47, 1
      %p143 = por %p141, %p142
      %p144 = scmp.ne.s32.totalorder %s133, %s134
      %p145 = scmp.eq.s32.totalorder %s47, 0
      %p146 = por %p144, %p145
      %p147 = scmp.ne.s32.totalorder %s133, %s134
      %p148 = scmp.eq.s32.totalorder %s48, 1
      %p149 = por %p147, %p148
      %p151 = scmp.ne.s32.totalorder %s134, %s150
      %p152 = scmp.eq.s32.totalorder %s48, 0
      %p153 = por %p151, %p152
      %s155 = sadd.s32 %s154, 1
      %p158 = scmp.eq.s32.totalorder %s42, 1
      %p159 = scmp.ne.s32.totalorder %s154, %s156
      %p160 = scmp.eq.s32.totalorder %s42, 0
      %p161 = por %p159, %p160
      %p162 = scmp.ne.s32.totalorder %s154, %s156
      %p163 = scmp.eq.s32.totalorder %s47, 1
      %p164 = por %p162, %p163
      %p165 = scmp.ne.s32.totalorder %s156, %s157
      %p166 = scmp.eq.s32.totalorder %s47, 0
      %p167 = por %p165, %p166
      %p168 = scmp.ne.s32.totalorder %s156, %s157
      %p169 = scmp.eq.s32.totalorder %s48, 1
      %p170 = por %p168, %p169
      %p172 = scmp.ne.s32.totalorder %s157, %s171
      %p173 = scmp.eq.s32.totalorder %s48, 0
      %p174 = por %p172, %p173
      %s176 = sadd.s32 %s175, 1
      %p179 = scmp.eq.s32.totalorder %s42, 1
      %p180 = scmp.ne.s32.totalorder %s175, %s177
      %p181 = scmp.eq.s32.totalorder %s42, 0
      %p182 = por %p180, %p181
      %p183 = scmp.ne.s32.totalorder %s175, %s177
      %p184 = scmp.eq.s32.totalorder %s47, 1
      %p185 = por %p183, %p184
      %p186 = scmp.ne.s32.totalorder %s177, %s178
      %p187 = scmp.eq.s32.totalorder %s47, 0
      %p188 = por %p186, %p187
      %p189 = scmp.ne.s32.totalorder %s177, %s178
      %p190 = scmp.eq.s32.totalorder %s48, 1
      %p191 = por %p189, %p190
      %p193 = scmp.ne.s32.totalorder %s178, %s192
      %p194 = scmp.eq.s32.totalorder %s48, 0
      %p195 = por %p193, %p194
      %s197 = sadd.s32 %s196, 1
      %p200 = scmp.eq.s32.totalorder %s42, 1
      %p201 = scmp.ne.s32.totalorder %s196, %s198
      %p202 = scmp.eq.s32.totalorder %s42, 0
      %p203 = por %p201, %p202
      %p204 = scmp.ne.s32.totalorder %s196, %s198
      %p205 = scmp.eq.s32.totalorder %s47, 1
      %p206 = por %p204, %p205
      %p207 = scmp.ne.s32.totalorder %s198, %s199
      %p208 = scmp.eq.s32.totalorder %s47, 0
      %p209 = por %p207, %p208
      %p210 = scmp.ne.s32.totalorder %s198, %s199
      %p211 = scmp.eq.s32.totalorder %s48, 1
      %p212 = por %p210, %p211
      %p214 = scmp.ne.s32.totalorder %s199, %s213
      %p215 = scmp.eq.s32.totalorder %s48, 0
      %p216 = por %p214, %p215
      %s218 = sadd.s32 %s217, 1
      %p221 = scmp.eq.s32.totalorder %s42, 1
      %p222 = scmp.ne.s32.totalorder %s217, %s219
      %p223 = scmp.eq.s32.totalorder %s42, 0
      %p224 = por %p222, %p223
      %p225 = scmp.ne.s32.totalorder %s217, %s219
      %p226 = scmp.eq.s32.totalorder %s47, 1
      %p227 = por %p225, %p226
      %p228 = scmp.ne.s32.totalorder %s219, %s220
      %p229 = scmp.eq.s32.totalorder %s47, 0
      %p230 = por %p228, %p229
      %p231 = scmp.ne.s32.totalorder %s219, %s220
      %p232 = scmp.eq.s32.totalorder %s48, 1
      %p233 = por %p231, %p232
      %p235 = scmp.ne.s32.totalorder %s220, %s234
      %p236 = scmp.eq.s32.totalorder %s48, 0
      %p237 = por %p235, %p236
      %s239 = sadd.s32 %s238, 1
      %p242 = scmp.eq.s32.totalorder %s42, 1
      %p243 = scmp.ne.s32.totalorder %s238, %s240
      %p244 = scmp.eq.s32.totalorder %s42, 0
      %p245 = por %p243, %p244
      %p246 = scmp.ne.s32.totalorder %s238, %s240
      %p247 = scmp.eq.s32.totalorder %s47, 1
      %p248 = por %p246, %p247
      %p249 = scmp.ne.s32.totalorder %s240, %s241
      %p250 = scmp.eq.s32.totalorder %s47, 0
      %p251 = por %p249, %p250
      %p252 = scmp.ne.s32.totalorder %s240, %s241
      %p253 = scmp.eq.s32.totalorder %s48, 1
      %p254 = por %p252, %p253
      %p256 = scmp.ne.s32.totalorder %s241, %s255
      %p257 = scmp.eq.s32.totalorder %s48, 0
      %p258 = por %p256, %p257
      %s260 = sadd.s32 %s259, 1
      %p263 = scmp.eq.s32.totalorder %s42, 1
      %p264 = scmp.ne.s32.totalorder %s259, %s261
      %p265 = scmp.eq.s32.totalorder %s42, 0
      %p266 = por %p264, %p265
      %p267 = scmp.ne.s32.totalorder %s259, %s261
      %p268 = scmp.eq.s32.totalorder %s47, 1
      %p269 = por %p267, %p268
      %p270 = scmp.ne.s32.totalorder %s261, %s262
      %p271 = scmp.eq.s32.totalorder %s47, 0
      %p272 = por %p270, %p271
      %p273 = scmp.ne.s32.totalorder %s261, %s262
      %p274 = scmp.eq.s32.totalorder %s48, 1
      %p275 = por %p273, %p274
      %p277 = scmp.ne.s32.totalorder %s262, %s276
      %p278 = scmp.eq.s32.totalorder %s48, 0
      %p279 = por %p277, %p278
      %s281 = sadd.s32 %s280, 1
      %p284 = scmp.eq.s32.totalorder %s42, 1
      %p285 = scmp.ne.s32.totalorder %s280, %s282
      %p286 = scmp.eq.s32.totalorder %s42, 0
      %p287 = por %p285, %p286
      %p288 = scmp.ne.s32.totalorder %s280, %s282
      %p289 = scmp.eq.s32.totalorder %s47, 1
      %p290 = por %p288, %p289
      %p291 = scmp.ne.s32.totalorder %s282, %s283
      %p292 = scmp.eq.s32.totalorder %s47, 0
      %p293 = por %p291, %p292
      %p294 = scmp.ne.s32.totalorder %s282, %s283
      %p295 = scmp.eq.s32.totalorder %s48, 1
      %p296 = por %p294, %p295
      %p298 = scmp.ne.s32.totalorder %s283, %s297
      %p299 = scmp.eq.s32.totalorder %s48, 0
      %p300 = por %p298, %p299
      %s302 = sadd.s32 %s301, 1
      %p305 = scmp.eq.s32.totalorder %s42, 1
      %p306 = scmp.ne.s32.totalorder %s301, %s303
      %p307 = scmp.eq.s32.totalorder %s42, 0
      %p308 = por %p306, %p307
      %p309 = scmp.ne.s32.totalorder %s301, %s303
      %p310 = scmp.eq.s32.totalorder %s47, 1
      %p311 = por %p309, %p310
      %p312 = scmp.ne.s32.totalorder %s303, %s304
      %p313 = scmp.eq.s32.totalorder %s47, 0
      %p314 = por %p312, %p313
      %p315 = scmp.ne.s32.totalorder %s303, %s304
      %p316 = scmp.eq.s32.totalorder %s48, 1
      %p317 = por %p315, %p316
      %p319 = scmp.ne.s32.totalorder %s304, %s318
      %p320 = scmp.eq.s32.totalorder %s48, 0
      %p321 = por %p319, %p320
      %s323 = sadd.s32 %s322, 1
      %p326 = scmp.eq.s32.totalorder %s42, 1
      %p327 = scmp.ne.s32.totalorder %s322, %s324
      %p328 = scmp.eq.s32.totalorder %s42, 0
      %p329 = por %p327, %p328
      %p330 = scmp.ne.s32.totalorder %s322, %s324
      %p331 = scmp.eq.s32.totalorder %s47, 1
      %p332 = por %p330, %p331
      %p333 = scmp.ne.s32.totalorder %s324, %s325
      %p334 = scmp.eq.s32.totalorder %s47, 0
      %p335 = por %p333, %p334
      %p336 = scmp.ne.s32.totalorder %s324, %s325
      %p337 = scmp.eq.s32.totalorder %s48, 1
      %p338 = por %p336, %p337
      %p340 = scmp.ne.s32.totalorder %s325, %s339
      %p341 = scmp.eq.s32.totalorder %s48, 0
      %p342 = por %p340, %p341
      %s344 = sadd.s32 %s343, 1
      %p347 = scmp.eq.s32.totalorder %s42, 1
      %p348 = scmp.ne.s32.totalorder %s343, %s345
      %p349 = scmp.eq.s32.totalorder %s42, 0
      %p350 = por %p348, %p349
      %p351 = scmp.ne.s32.totalorder %s343, %s345
      %p352 = scmp.eq.s32.totalorder %s47, 1
      %p353 = por %p351, %p352
      %p354 = scmp.ne.s32.totalorder %s345, %s346
      %p355 = scmp.eq.s32.totalorder %s47, 0
      %p356 = por %p354, %p355
      %p357 = scmp.ne.s32.totalorder %s345, %s346
      %p358 = scmp.eq.s32.totalorder %s48, 1
      %p359 = por %p357, %p358
      %p361 = scmp.ne.s32.totalorder %s346, %s360
      %p362 = scmp.eq.s32.totalorder %s48, 0
      %p363 = por %p361, %p362
      %s365 = sadd.s32 %s364, 1
      %p368 = scmp.eq.s32.totalorder %s42, 1
      %p369 = scmp.ne.s32.totalorder %s364, %s366
      %p370 = scmp.eq.s32.totalorder %s42, 0
      %p371 = por %p369, %p370
      %p372 = scmp.ne.s32.totalorder %s364, %s366
      %p373 = scmp.eq.s32.totalorder %s47, 1
      %p374 = por %p372, %p373
      %p375 = scmp.ne.s32.totalorder %s366, %s367
      %p376 = scmp.eq.s32.totalorder %s47, 0
      %p377 = por %p375, %p376
      %p378 = scmp.ne.s32.totalorder %s366, %s367
      %p379 = scmp.eq.s32.totalorder %s48, 1
      %p380 = por %p378, %p379
      %p382 = scmp.ne.s32.totalorder %s367, %s381
      %p383 = scmp.eq.s32.totalorder %s48, 0
      %p384 = por %p382, %p383
      %s386 = sadd.s32 %s385, 1
      %p389 = scmp.eq.s32.totalorder %s42, 1
      %p390 = scmp.ne.s32.totalorder %s385, %s387
      %p391 = scmp.eq.s32.totalorder %s42, 0
      %p392 = por %p390, %p391
      %p393 = scmp.ne.s32.totalorder %s385, %s387
      %p394 = scmp.eq.s32.totalorder %s47, 1
      %p395 = por %p393, %p394
      %p396 = scmp.ne.s32.totalorder %s387, %s388
      %p397 = scmp.eq.s32.totalorder %s47, 0
      %p398 = por %p396, %p397
      %p399 = scmp.ne.s32.totalorder %s387, %s388
      %p400 = scmp.eq.s32.totalorder %s48, 1
      %p401 = por %p399, %p400
      %p403 = scmp.ne.s32.totalorder %s388, %s402
      %p404 = scmp.eq.s32.totalorder %s48, 0
      %p405 = por %p403, %p404
      %s407 = sadd.s32 %s406, 1
      %p410 = scmp.eq.s32.totalorder %s42, 1
      %p411 = scmp.ne.s32.totalorder %s406, %s408
      %p412 = scmp.eq.s32.totalorder %s42, 0
      %p413 = por %p411, %p412
      %p414 = scmp.ne.s32.totalorder %s406, %s408
      %p415 = scmp.eq.s32.totalorder %s47, 1
      %p416 = por %p414, %p415
      %p417 = scmp.ne.s32.totalorder %s408, %s409
      %p418 = scmp.eq.s32.totalorder %s47, 0
      %p419 = por %p417, %p418
      %p420 = scmp.ne.s32.totalorder %s408, %s409
      %p421 = scmp.eq.s32.totalorder %s48, 1
      %p422 = por %p420, %p421
      %p424 = scmp.ne.s32.totalorder %s409, %s423
      %p425 = scmp.eq.s32.totalorder %s48, 0
      %p426 = por %p424, %p425
      %s428 = sadd.s32 %s427, 1
      %p431 = scmp.eq.s32.totalorder %s42, 1
      %p432 = scmp.ne.s32.totalorder %s427, %s429
      %p433 = scmp.eq.s32.totalorder %s42, 0
      %p434 = por %p432, %p433
      %p435 = scmp.ne.s32.totalorder %s427, %s429
      %p436 = scmp.eq.s32.totalorder %s47, 1
      %p437 = por %p435, %p436
      %p438 = scmp.ne.s32.totalorder %s429, %s430
      %p439 = scmp.eq.s32.totalorder %s47, 0
      %p440 = por %p438, %p439
      %p441 = scmp.ne.s32.totalorder %s429, %s430
      %p442 = scmp.eq.s32.totalorder %s48, 1
      %p443 = por %p441, %p442
      %p445 = scmp.ne.s32.totalorder %s430, %s444
      %p446 = scmp.eq.s32.totalorder %s48, 0
      %p447 = por %p445, %p446
      %s449 = sadd.s32 %s448, 1
      %p452 = scmp.eq.s32.totalorder %s42, 1
      %p453 = scmp.ne.s32.totalorder %s448, %s450
      %p454 = scmp.eq.s32.totalorder %s42, 0
      %p455 = por %p453, %p454
      %p456 = scmp.ne.s32.totalorder %s448, %s450
      %p457 = scmp.eq.s32.totalorder %s47, 1
      %p458 = por %p456, %p457
      %p459 = scmp.ne.s32.totalorder %s450, %s451
      %p460 = scmp.eq.s32.totalorder %s47, 0
      %p461 = por %p459, %p460
      %p462 = scmp.ne.s32.totalorder %s450, %s451
      %p463 = scmp.eq.s32.totalorder %s48, 1
      %p464 = por %p462, %p463
      %p466 = scmp.ne.s32.totalorder %s451, %s465
      %p467 = scmp.eq.s32.totalorder %s48, 0
      %p468 = por %p466, %p467
      %s470 = sadd.s32 %s469, 1
      %p473 = scmp.eq.s32.totalorder %s42, 1
      %p474 = scmp.ne.s32.totalorder %s469, %s471
      %p475 = scmp.eq.s32.totalorder %s42, 0
      %p476 = por %p474, %p475
      %p477 = scmp.ne.s32.totalorder %s469, %s471
      %p478 = scmp.eq.s32.totalorder %s47, 1
      %p479 = por %p477, %p478
      %p480 = scmp.ne.s32.totalorder %s471, %s472
      %p481 = scmp.eq.s32.totalorder %s47, 0
      %p482 = por %p480, %p481
      %p483 = scmp.ne.s32.totalorder %s471, %s472
      %p484 = scmp.eq.s32.totalorder %s48, 1
      %p485 = por %p483, %p484
      %p487 = scmp.ne.s32.totalorder %s472, %s486
      %p488 = scmp.eq.s32.totalorder %s48, 0
      %p489 = por %p487, %p488
      %s490 = ssub.s32 %s42, %s49
      %p491 = scmp.eq.s32.totalorder %s490, 0
      %s493 = sadd.s32 %s492, 1
      %s494 = scalar_select %p491, %s492, %s493
      %p497 = pneg %p491
      %p498 = scmp.eq.s32.totalorder %s42, 1
      %p499 = por %p497, %p498
      %p500 = scmp.ne.s32.totalorder %s492, %s495
      %p501 = scmp.eq.s32.totalorder %s42, 0
      %p502 = por %p500, %p501
      %p503 = scmp.ne.s32.totalorder %s492, %s495
      %p504 = scmp.eq.s32.totalorder %s47, 1
      %p505 = por %p503, %p504
      %p506 = scmp.ne.s32.totalorder %s495, %s496
      %p507 = scmp.eq.s32.totalorder %s47, 0
      %p508 = por %p506, %p507
      %p509 = scmp.ne.s32.totalorder %s495, %s496
      %p510 = scmp.eq.s32.totalorder %s48, 1
      %p511 = por %p509, %p510
      %p513 = scmp.ne.s32.totalorder %s496, %s512
      %p514 = scmp.eq.s32.totalorder %s48, 0
      %p515 = por %p513, %p514
      %s516 = ssub.s32 %s42, %s49
      %p517 = scmp.eq.s32.totalorder %s516, 0
      %s519 = sadd.s32 %s518, 1
      %s520 = scalar_select %p517, %s518, %s519
      %p523 = pneg %p517
      %p524 = scmp.eq.s32.totalorder %s42, 1
      %p525 = por %p523, %p524
      %p526 = scmp.ne.s32.totalorder %s518, %s521
      %p527 = scmp.eq.s32.totalorder %s42, 0
      %p528 = por %p526, %p527
      %p529 = scmp.ne.s32.totalorder %s518, %s521
      %p530 = scmp.eq.s32.totalorder %s47, 1
      %p531 = por %p529, %p530
      %p532 = scmp.ne.s32.totalorder %s521, %s522
      %p533 = scmp.eq.s32.totalorder %s47, 0
      %p534 = por %p532, %p533
      %p535 = scmp.ne.s32.totalorder %s521, %s522
      %p536 = scmp.eq.s32.totalorder %s48, 1
      %p537 = por %p535, %p536
      %p539 = scmp.ne.s32.totalorder %s522, %s538
      %p540 = scmp.eq.s32.totalorder %s48, 0
      %p541 = por %p539, %p540
      %p542 = scmp.le.s32.totalorder 1, %s42
      %p543 = scmp.lt.s32.totalorder %s42, 3
      %p544 = pnand %p542, %p543
      %p545 = pneg %p544
      // Predicated region
      $region9: #{_lambda_.1} parent=5 // pred_check
        _
      $region10: #{_lambda_.1} parent=5 // pred_check_branch
        %547 = sbr.rel (%p544) target = $region12
      $region11: #{_lambda_.1} parent=5 // pred_region
        %s548 = ssub.s32 %s42, 1
        // Predicated region
        $region13: #{_lambda_.1} parent=11 // pred_check
          %p549 = pneg %p167
        $region14: #{_lambda_.1} parent=11 // pred_check_branch
          %551 = sbr.rel (%p549) target = $region16
        $region15: #{_lambda_.1} parent=11 // pred_region
          %s553 = ssub.s32 512, 512
          %554 = vsyncadd [#allocation9], %s553
          %s555 = sshll.u32 [#allocation8], 4
          %s556 = int_to_ptr.vmem [resolvable:$true] %s555
          %561 = dma.hbm_to_vmem [thread:$0]  %s4, 512, %s556, [#allocation9], 128, 128, 8
        $region16: #{_lambda_.1} parent=11 // pred_fallthru
          _
        // Predicated region
        $region17: #{_lambda_.1} parent=11 // pred_check
          %p562 = pneg %p188
        $region18: #{_lambda_.1} parent=11 // pred_check_branch
          %564 = sbr.rel (%p562) target = $region20
        $region19: #{_lambda_.1} parent=11 // pred_region
          %s566 = ssub.s32 16, 16
          %567 = vsyncadd [#allocation9], %s566
          %s569 = sshll.u32 [#allocation10], 4
          %s570 = int_to_ptr.vmem [resolvable:$true] %s569
          %572 = dma.hbm_to_vmem [thread:$0]  %s5, 16, %s570, [#allocation9]
        $region20: #{_lambda_.1} parent=11 // pred_fallthru
          _
        // Predicated region
        $region21: #{_lambda_.1} parent=11 // pred_check
          %p573 = pneg %p209
        $region22: #{_lambda_.1} parent=11 // pred_check_branch
          %575 = sbr.rel (%p573) target = $region24
        $region23: #{_lambda_.1} parent=11 // pred_region
          %s577 = ssub.s32 512, 512
          %578 = vsyncadd [#allocation12], %s577
          %s579 = sshll.u32 [#allocation11], 4
          %s580 = int_to_ptr.vmem [resolvable:$true] %s579
          %585 = dma.hbm_to_vmem [thread:$0]  %s6, 512, %s580, [#allocation12], 128, 128, 8
        $region24: #{_lambda_.1} parent=11 // pred_fallthru
          _
        // Predicated region
        $region25: #{_lambda_.1} parent=11 // pred_check
          %p586 = pneg %p230
        $region26: #{_lambda_.1} parent=11 // pred_check_branch
          %588 = sbr.rel (%p586) target = $region28
        $region27: #{_lambda_.1} parent=11 // pred_region
          %s590 = ssub.s32 16, 16
          %591 = vsyncadd [#allocation12], %s590
          %s593 = sshll.u32 [#allocation13], 4
          %s594 = int_to_ptr.vmem [resolvable:$true] %s593
          %596 = dma.hbm_to_vmem [thread:$0]  %s7, 16, %s594, [#allocation12]
        $region28: #{_lambda_.1} parent=11 // pred_fallthru
          _
        // Predicated region
        $region29: #{_lambda_.1} parent=11 // pred_check
          %p597 = pneg %p251
        $region30: #{_lambda_.1} parent=11 // pred_check_branch
          %599 = sbr.rel (%p597) target = $region32
        $region31: #{_lambda_.1} parent=11 // pred_region
          %s601 = ssub.s32 512, 512
          %602 = vsyncadd [#allocation15], %s601
          %s603 = sshll.u32 [#allocation14], 4
          %s604 = int_to_ptr.vmem [resolvable:$true] %s603
          %609 = dma.hbm_to_vmem [thread:$0]  %s8, 512, %s604, [#allocation15], 128, 128, 8
        $region32: #{_lambda_.1} parent=11 // pred_fallthru
          _
        // Predicated region
        $region33: #{_lambda_.1} parent=11 // pred_check
          %p610 = pneg %p272
        $region34: #{_lambda_.1} parent=11 // pred_check_branch
          %612 = sbr.rel (%p610) target = $region36
        $region35: #{_lambda_.1} parent=11 // pred_region
          %s614 = ssub.s32 16, 16
          %615 = vsyncadd [#allocation15], %s614
          %s617 = sshll.u32 [#allocation16], 4
          %s618 = int_to_ptr.vmem [resolvable:$true] %s617
          %620 = dma.hbm_to_vmem [thread:$0]  %s9, 16, %s618, [#allocation15]
        $region36: #{_lambda_.1} parent=11 // pred_fallthru
          _
        // Predicated region
        $region37: #{_lambda_.1} parent=11 // pred_check
          %p621 = pneg %p293
        $region38: #{_lambda_.1} parent=11 // pred_check_branch
          %623 = sbr.rel (%p621) target = $region40
        $region39: #{_lambda_.1} parent=11 // pred_region
          _
        $region40: #{_lambda_.1} parent=11 // pred_fallthru
          _
        // Predicated region
        $region41: #{_lambda_.1} parent=11 // pred_check
          %p624 = pneg %p314
        $region42: #{_lambda_.1} parent=11 // pred_check_branch
          %626 = sbr.rel (%p624) target = $region44
        $region43: #{_lambda_.1} parent=11 // pred_region
          _
        $region44: #{_lambda_.1} parent=11 // pred_fallthru
          _
        // Predicated region
        $region45: #{_lambda_.1} parent=11 // pred_check
          %p627 = pneg %p335
        $region46: #{_lambda_.1} parent=11 // pred_check_branch
          %629 = sbr.rel (%p627) target = $region48
        $region47: #{_lambda_.1} parent=11 // pred_region
          %s631 = ssub.s32 512, 512
          %632 = vsyncadd [#allocation18], %s631
          %s633 = sshll.u32 [#allocation17], 4
          %s634 = int_to_ptr.vmem [resolvable:$true] %s633
          %639 = dma.hbm_to_vmem [thread:$0]  %s12, 512, %s634, [#allocation18], 128, 128, 8
        $region48: #{_lambda_.1} parent=11 // pred_fallthru
          _
        // Predicated region
        $region49: #{_lambda_.1} parent=11 // pred_check
          %p640 = pneg %p356
        $region50: #{_lambda_.1} parent=11 // pred_check_branch
          %642 = sbr.rel (%p640) target = $region52
        $region51: #{_lambda_.1} parent=11 // pred_region
          %s644 = ssub.s32 16, 16
          %645 = vsyncadd [#allocation18], %s644
          %s647 = sshll.u32 [#allocation19], 4
          %s648 = int_to_ptr.vmem [resolvable:$true] %s647
          %650 = dma.hbm_to_vmem [thread:$0]  %s13, 16, %s648, [#allocation18]
        $region52: #{_lambda_.1} parent=11 // pred_fallthru
          _
        // Predicated region
        $region53: #{_lambda_.1} parent=11 // pred_check
          %p651 = pneg %p377
        $region54: #{_lambda_.1} parent=11 // pred_check_branch
          %653 = sbr.rel (%p651) target = $region56
        $region55: #{_lambda_.1} parent=11 // pred_region
          _
        $region56: #{_lambda_.1} parent=11 // pred_fallthru
          _
        // Predicated region
        $region57: #{_lambda_.1} parent=11 // pred_check
          %p654 = pneg %p398
        $region58: #{_lambda_.1} parent=11 // pred_check_branch
          %656 = sbr.rel (%p654) target = $region60
        $region59: #{_lambda_.1} parent=11 // pred_region
          _
        $region60: #{_lambda_.1} parent=11 // pred_fallthru
          _
        // Predicated region
        $region61: #{_lambda_.1} parent=11 // pred_check
          %p657 = pneg %p419
        $region62: #{_lambda_.1} parent=11 // pred_check_branch
          %659 = sbr.rel (%p657) target = $region64
        $region63: #{_lambda_.1} parent=11 // pred_region
          _
        $region64: #{_lambda_.1} parent=11 // pred_fallthru
          _
        // Predicated region
        $region65: #{_lambda_.1} parent=11 // pred_check
          %p660 = pneg %p440
        $region66: #{_lambda_.1} parent=11 // pred_check_branch
          %662 = sbr.rel (%p660) target = $region68
        $region67: #{_lambda_.1} parent=11 // pred_region
          %s664 = ssub.s32 16, 16
          %665 = vsyncadd [#allocation21], %s664
          %s667 = sshll.u32 [#allocation20], 4
          %s668 = int_to_ptr.vmem [resolvable:$true] %s667
          %670 = dma.hbm_to_vmem [thread:$0]  %s17, 16, %s668, [#allocation21]
        $region68: #{_lambda_.1} parent=11 // pred_fallthru
          _
        // Predicated region
        $region69: #{_lambda_.1} parent=11 // pred_check
          %p671 = pneg %p461
        $region70: #{_lambda_.1} parent=11 // pred_check_branch
          %673 = sbr.rel (%p671) target = $region72
        $region71: #{_lambda_.1} parent=11 // pred_region
          _
        $region72: #{_lambda_.1} parent=11 // pred_fallthru
          _
        // Predicated region
        $region73: #{_lambda_.1} parent=11 // pred_check
          %p674 = pneg %p482
        $region74: #{_lambda_.1} parent=11 // pred_check_branch
          %676 = sbr.rel (%p674) target = $region76
        $region75: #{_lambda_.1} parent=11 // pred_region
          %s678 = ssub.s32 16, 16
          %679 = vsyncadd [#allocation21], %s678
          %s681 = sshll.u32 [#allocation22], 4
          %s682 = int_to_ptr.vmem [resolvable:$true] %s681
          %684 = dma.hbm_to_vmem [thread:$0]  %s19, 16, %s682, [#allocation21]
        $region76: #{_lambda_.1} parent=11 // pred_fallthru
          _
      $region12: #{_lambda_.1} parent=5 // pred_fallthru
        _
      %p685 = scmp.lt.s32.totalorder %s42, 2
      // Predicated region
      $region77: #{_lambda_.1} parent=5 // pred_check
        %p686 = pneg %p685
      $region78: #{_lambda_.1} parent=5 // pred_check_branch
        %688 = sbr.rel (%p686) target = $region80
      $region79: #{_lambda_.1} parent=5 // pred_region
        // Predicated region
        $region81: #{_lambda_.1} parent=79 // pred_check
          %p689 = pneg %p62
        $region82: #{_lambda_.1} parent=79 // pred_check_branch
          %691 = sbr.rel (%p689) target = $region84
        $region83: #{_lambda_.1} parent=79 // pred_region
          %s692 = sand.u32 %s52, 1
          %s693 = scalar_lea.sflag [#allocation3], %s692
          %s694 = sand.u32 %s52, 1
          %s695 = smul.addr %s694, 8
          %s696 = scalar_lea.vmem [#allocation2], %s695
          %s698 = ssub.s32 128, 128
          %699 = vsyncadd %s693, %s698
          %s700 = smul.addr %s42, 128
          %s701 = scalar_lea.hbm %s0, %s700
          %s703 = sshll.u32 %s696, 4
          %s704 = int_to_ptr.vmem [resolvable:$true] %s703
          %706 = dma.hbm_to_vmem [thread:$0]  %s701, 128, %s704, %s693
        $region84: #{_lambda_.1} parent=79 // pred_fallthru
          _
        // Predicated region
        $region85: #{_lambda_.1} parent=79 // pred_check
          %p707 = pneg %p88
        $region86: #{_lambda_.1} parent=79 // pred_check_branch
          %709 = sbr.rel (%p707) target = $region88
        $region87: #{_lambda_.1} parent=79 // pred_region
          %p710 = scmp.lt.s32.totalorder %s42, 1
          %s711 = scalar_select %p710, %s42, 1
          %s712 = smul.addr %s711, 2
          %s713 = smul.addr %s712, 8
          %s714 = scalar_lea.vmem %s1, %s713
        $region88: #{_lambda_.1} parent=79 // pred_fallthru
          _
        // Predicated region
        $region89: #{_lambda_.1} parent=79 // pred_check
          %p715 = pneg %p114
        $region90: #{_lambda_.1} parent=79 // pred_check_branch
          %717 = sbr.rel (%p715) target = $region92
        $region91: #{_lambda_.1} parent=79 // pred_region
          %s718 = sand.u32 %s42, 1
          %s719 = scalar_lea.sflag [#allocation6], %s718
          %s720 = sand.u32 %s104, 1
          %s721 = scalar_lea.vmem [#allocation5], %s720
          %s723 = ssub.s32 16, 16
          %724 = vsyncadd %s719, %s723
          %s725 = smul.addr %s42, 16
          %s726 = scalar_lea.hbm %s2, %s725
          %s728 = sshll.u32 %s721, 4
          %s729 = int_to_ptr.vmem [resolvable:$true] %s728
          %731 = dma.hbm_to_vmem [thread:$0]  %s726, 16, %s729, %s719
        $region92: #{_lambda_.1} parent=79 // pred_fallthru
          _
        // Predicated region
        $region93: #{_lambda_.1} parent=79 // pred_check
          %p732 = pneg %p140
        $region94: #{_lambda_.1} parent=79 // pred_check_branch
          %734 = sbr.rel (%p732) target = $region96
        $region95: #{_lambda_.1} parent=79 // pred_region
          %s735 = sand.u32 %s42, 1
          %s736 = scalar_lea.sflag [#allocation6], %s735
          %s737 = sand.u32 %s130, 1
          %s738 = scalar_lea.vmem [#allocation7], %s737
          %s740 = ssub.s32 16, 16
          %741 = vsyncadd %s736, %s740
          %s742 = smul.addr %s42, 16
          %s743 = scalar_lea.hbm %s3, %s742
          %s745 = sshll.u32 %s738, 4
          %s746 = int_to_ptr.vmem [resolvable:$true] %s745
          %748 = dma.hbm_to_vmem [thread:$0]  %s743, 16, %s746, %s736
        $region96: #{_lambda_.1} parent=79 // pred_fallthru
          _
      $region80: #{_lambda_.1} parent=5 // pred_fallthru
        _
      %p749 = scmp.le.s32.totalorder 1, %s42
      %p750 = scmp.lt.s32.totalorder %s42, 3
      %p751 = pnand %p749, %p750
      %p752 = pneg %p751
      // Predicated region
      $region97: #{_lambda_.1} parent=5 // pred_check
        _
      $region98: #{_lambda_.1} parent=5 // pred_check_branch
        %754 = sbr.rel (%p751) target = $region100
      $region99: #{_lambda_.1} parent=5 // pred_region
        %s755 = ssub.s32 %s42, 1
        %s756 = sand.u32 %s55, 1
        %s757 = scalar_lea.sflag [#allocation3], %s756
        %s758 = sand.u32 %s55, 1
        %s759 = smul.addr %s758, 8
        %s760 = scalar_lea.vmem [#allocation2], %s759
        // Predicated region
        $region101: #{_lambda_.1} parent=99 // pred_check
          %p761 = pneg %p68
        $region102: #{_lambda_.1} parent=99 // pred_check_branch
          %763 = sbr.rel (%p761) target = $region104
        $region103: #{_lambda_.1} parent=99 // pred_region
          %764 = dma.done %s757, 128
        $region104: #{_lambda_.1} parent=99 // pred_fallthru
          _
        %s765 = sand.u32 %s47, 1
        %s766 = scalar_lea.sflag [#allocation6], %s765
        %s767 = sand.u32 %s107, 1
        %s768 = scalar_lea.vmem [#allocation5], %s767
        // Predicated region
        $region105: #{_lambda_.1} parent=99 // pred_check
          %p769 = pneg %p120
        $region106: #{_lambda_.1} parent=99 // pred_check_branch
          %771 = sbr.rel (%p769) target = $region108
        $region107: #{_lambda_.1} parent=99 // pred_region
          %772 = dma.done %s766, 16
        $region108: #{_lambda_.1} parent=99 // pred_fallthru
          _
        %s773 = sand.u32 %s47, 1
        %s774 = scalar_lea.sflag [#allocation6], %s773
        %s775 = sand.u32 %s133, 1
        %s776 = scalar_lea.vmem [#allocation7], %s775
        // Predicated region
        $region109: #{_lambda_.1} parent=99 // pred_check
          %p777 = pneg %p146
        $region110: #{_lambda_.1} parent=99 // pred_check_branch
          %779 = sbr.rel (%p777) target = $region112
        $region111: #{_lambda_.1} parent=99 // pred_region
          %780 = dma.done %s774, 16
        $region112: #{_lambda_.1} parent=99 // pred_fallthru
          _
        // Predicated region
        $region113: #{_lambda_.1} parent=99 // pred_check
          %p781 = pneg %p167
        $region114: #{_lambda_.1} parent=99 // pred_check_branch
          %783 = sbr.rel (%p781) target = $region116
        $region115: #{_lambda_.1} parent=99 // pred_region
          %784 = dma.done [#allocation9], 512
        $region116: #{_lambda_.1} parent=99 // pred_fallthru
          _
        // Predicated region
        $region117: #{_lambda_.1} parent=99 // pred_check
          %p785 = pneg %p188
        $region118: #{_lambda_.1} parent=99 // pred_check_branch
          %787 = sbr.rel (%p785) target = $region120
        $region119: #{_lambda_.1} parent=99 // pred_region
          %788 = dma.done [#allocation9], 16
        $region120: #{_lambda_.1} parent=99 // pred_fallthru
          _
        // Predicated region
        $region121: #{_lambda_.1} parent=99 // pred_check
          %p789 = pneg %p209
        $region122: #{_lambda_.1} parent=99 // pred_check_branch
          %791 = sbr.rel (%p789) target = $region124
        $region123: #{_lambda_.1} parent=99 // pred_region
          %792 = dma.done [#allocation12], 512
        $region124: #{_lambda_.1} parent=99 // pred_fallthru
          _
        // Predicated region
        $region125: #{_lambda_.1} parent=99 // pred_check
          %p793 = pneg %p230
        $region126: #{_lambda_.1} parent=99 // pred_check_branch
          %795 = sbr.rel (%p793) target = $region128
        $region127: #{_lambda_.1} parent=99 // pred_region
          %796 = dma.done [#allocation12], 16
        $region128: #{_lambda_.1} parent=99 // pred_fallthru
          _
        // Predicated region
        $region129: #{_lambda_.1} parent=99 // pred_check
          %p797 = pneg %p251
        $region130: #{_lambda_.1} parent=99 // pred_check_branch
          %799 = sbr.rel (%p797) target = $region132
        $region131: #{_lambda_.1} parent=99 // pred_region
          %800 = dma.done [#allocation15], 512
        $region132: #{_lambda_.1} parent=99 // pred_fallthru
          _
        // Predicated region
        $region133: #{_lambda_.1} parent=99 // pred_check
          %p801 = pneg %p272
        $region134: #{_lambda_.1} parent=99 // pred_check_branch
          %803 = sbr.rel (%p801) target = $region136
        $region135: #{_lambda_.1} parent=99 // pred_region
          %804 = dma.done [#allocation15], 16
        $region136: #{_lambda_.1} parent=99 // pred_fallthru
          _
        // Predicated region
        $region137: #{_lambda_.1} parent=99 // pred_check
          %p805 = pneg %p335
        $region138: #{_lambda_.1} parent=99 // pred_check_branch
          %807 = sbr.rel (%p805) target = $region140
        $region139: #{_lambda_.1} parent=99 // pred_region
          %808 = dma.done [#allocation18], 512
        $region140: #{_lambda_.1} parent=99 // pred_fallthru
          _
        // Predicated region
        $region141: #{_lambda_.1} parent=99 // pred_check
          %p809 = pneg %p356
        $region142: #{_lambda_.1} parent=99 // pred_check_branch
          %811 = sbr.rel (%p809) target = $region144
        $region143: #{_lambda_.1} parent=99 // pred_region
          %812 = dma.done [#allocation18], 16
        $region144: #{_lambda_.1} parent=99 // pred_fallthru
          _
        // Predicated region
        $region145: #{_lambda_.1} parent=99 // pred_check
          %p813 = pneg %p440
        $region146: #{_lambda_.1} parent=99 // pred_check_branch
          %815 = sbr.rel (%p813) target = $region148
        $region147: #{_lambda_.1} parent=99 // pred_region
          %816 = dma.done [#allocation21], 16
        $region148: #{_lambda_.1} parent=99 // pred_fallthru
          _
        // Predicated region
        $region149: #{_lambda_.1} parent=99 // pred_check
          %p817 = pneg %p482
        $region150: #{_lambda_.1} parent=99 // pred_check_branch
          %819 = sbr.rel (%p817) target = $region152
        $region151: #{_lambda_.1} parent=99 // pred_region
          %820 = dma.done [#allocation21], 16
        $region152: #{_lambda_.1} parent=99 // pred_fallthru
          _
        %s821 = sand.u32 %s55, 1
        %s822 = scalar_lea.sflag [#allocation3], %s821
        %s823 = sand.u32 %s55, 1
        %s824 = smul.addr %s823, 8
        %s825 = scalar_lea.vmem [#allocation2], %s824
        %p826 = pneg %p68
        %p827 = pneg %p65
        %p828 = scmp.lt.s32.totalorder %s47, 1
        %s829 = scalar_select %p828, %s47, 1
        %s830 = smul.addr %s829, 2
        %s831 = smul.addr %s830, 8
        %s832 = scalar_lea.vmem %s1, %s831
        %p833 = pneg %p94
        %p834 = pneg %p91
        %s835 = sand.u32 %s47, 1
        %s836 = scalar_lea.sflag [#allocation6], %s835
        %s837 = sand.u32 %s107, 1
        %s838 = scalar_lea.vmem [#allocation5], %s837
        %p839 = pneg %p120
        %p840 = pneg %p117
        %s841 = sand.u32 %s47, 1
        %s842 = scalar_lea.sflag [#allocation6], %s841
        %s843 = sand.u32 %s133, 1
        %s844 = scalar_lea.vmem [#allocation7], %s843
        %p845 = pneg %p146
        %p846 = pneg %p143
        %p847 = pneg %p167
        %p848 = pneg %p164
        %p849 = pneg %p188
        %p850 = pneg %p185
        %p851 = pneg %p209
        %p852 = pneg %p206
        %p853 = pneg %p230
        %p854 = pneg %p227
        %p855 = pneg %p251
        %p856 = pneg %p248
        %p857 = pneg %p272
        %p858 = pneg %p269
        %p859 = pneg %p293
        %p860 = pneg %p290
        %p861 = pneg %p314
        %p862 = pneg %p311
        %p863 = pneg %p335
        %p864 = pneg %p332
        %p865 = pneg %p356
        %p866 = pneg %p353
        %p867 = pneg %p377
        %p868 = pneg %p374
        %p869 = pneg %p398
        %p870 = pneg %p395
        %p871 = pneg %p419
        %p872 = pneg %p416
        %p873 = pneg %p440
        %p874 = pneg %p437
        %p875 = pneg %p461
        %p876 = pneg %p458
        %p877 = pneg %p482
        %p878 = pneg %p479
        %p879 = pneg %p508
        %p880 = pneg %p505
        %s881 = sand.u32 %s495, 1
        %s882 = scalar_lea.sflag [#allocation4], %s881
        %s883 = sand.u32 %s495, 1
        %s884 = smul.addr %s883, 8
        %s885 = scalar_lea.vmem [#allocation23], %s884
        %p886 = pneg %p534
        %p887 = pneg %p531
        %p888 = scmp.lt.s32.totalorder %s47, 1
        %s889 = scalar_select %p888, %s47, 1
        %s890 = smul.addr %s889, 8
        %s891 = scalar_lea.vmem %s21, %s890
        %p892 = scmp.lt.s32.totalorder %s47, 1
        %s893 = scalar_select %p892, %s47, 1
        %s894 = smul.addr %s893, 2
        %s895 = smul.addr %s894, 8
        %s896 = scalar_lea.vmem %s1, %s895
        %p897 = scmp.lt.s32.totalorder %s47, 1
        %s898 = scalar_select %p897, %s47, 1
        %s899 = smul.addr %s898, 8
        %s900 = scalar_lea.vmem %s21, %s899
        %v901 = vld [vmem:[%s760] sm:$0xff]
        %v902 = vld [vmem:[%s896] sm:$0xff]
        %v903 = vld [vmem:[%s896 + $0x8] sm:$0xff]
        %v904 = vld [vmem:[%s768] sm:$0x1]
        %v906 = vlaneseq
        %v907 = vshrl.u32 %v906, 7
        %v908 = vsub.s32 0, %v907
        %v909 = vrot.slane %v904, %v908
        %v911 = vld [vmem:[%s776] sm:$0x1]
        %v913 = vlaneseq
        %v914 = vshrl.u32 %v913, 7
        %v915 = vsub.s32 0, %v914
        %v916 = vrot.slane %v911, %v915
        %v918 = vld [vmem:[#allocation14] sm:$0xff]
        %v919 = vld [vmem:[#allocation14 + $0x8] sm:$0xff]
        %v920 = vld [vmem:[#allocation14 + $0x10] sm:$0xff]
        %v921 = vld [vmem:[#allocation14 + $0x18] sm:$0xff]
        %v922 = vld [vmem:[#allocation16] sm:$0x1]
        %v923 = vld [vmem:[%s10] sm:$0x1]
        %v924 = vld [vmem:[%s11] sm:$0x1]
        %v925 = vld [vmem:[#allocation17] sm:$0xff]
        %v926 = vld [vmem:[#allocation17 + $0x8] sm:$0xff]
        %v927 = vld [vmem:[#allocation17 + $0x10] sm:$0xff]
        %v928 = vld [vmem:[#allocation17 + $0x18] sm:$0xff]
        %v929 = vld [vmem:[#allocation19] sm:$0x1]
        %v930 = vld [vmem:[%s14] sm:$0x1]
        %v931 = vld [vmem:[%s15] sm:$0x1]
        %v932 = vld [vmem:[%s16] sm:$0xff]
        %v933 = vld [vmem:[%s16 + $0x8] sm:$0xff]
        %v934 = vld [vmem:[%s16 + $0x10] sm:$0xff]
        %v935 = vld [vmem:[%s16 + $0x18] sm:$0xff]
        %v936 = vld [vmem:[%s16 + $0x20] sm:$0xff]
        %v937 = vld [vmem:[%s16 + $0x28] sm:$0xff]
        %v938 = vld [vmem:[%s16 + $0x30] sm:$0xff]
        %v939 = vld [vmem:[%s16 + $0x38] sm:$0xff]
        %v940 = vld [vmem:[%s18] sm:$0xff]
        %v941 = vld [vmem:[%s18 + $0x8] sm:$0xff]
        %v942 = vld [vmem:[%s18 + $0x10] sm:$0xff]
        %v943 = vld [vmem:[%s18 + $0x18] sm:$0xff]
        %v944 = vld [vmem:[%s18 + $0x20] sm:$0xff]
        %v945 = vld [vmem:[%s18 + $0x28] sm:$0xff]
        %v946 = vld [vmem:[%s18 + $0x30] sm:$0xff]
        %v947 = vld [vmem:[%s18 + $0x38] sm:$0xff]
        %v948 = vld [vmem:[#allocation8] sm:$0xff]
        %v949 = vld [vmem:[#allocation8 + $0x8] sm:$0xff]
        %v950 = vld [vmem:[#allocation8 + $0x10] sm:$0xff]
        %v951 = vld [vmem:[#allocation8 + $0x18] sm:$0xff]
        %v952 = vld [vmem:[#allocation10] sm:$0x1]
        %v954 = vlaneseq
        %v955 = vshrl.u32 %v954, 7
        %v956 = vsub.s32 0, %v955
        %v957 = vrot.slane %v952, %v956
        %vm959 = vcmask 261120
        %v961 = vsel %vm959, %v901, 0
        %963 = vmatprep.subr.mxu0 0.0
        %964 = vmatpush1.msra.mxu0 %v948
        %965 = vmatprep.subr.mxu0 0.0
        %966 = vmatpush1.msra.mxu0 %v949
        %967 = vmatprep.subr.mxu0 0.0
        %968 = vmatpush1.msra.mxu0 %v950
        %969 = vmatprep.subr.mxu0 0.0
        %970 = vmatpush1.msra.mxu0 %v951
        %971 = vmatprep.subr.mxu0 0.0
        %972 = vmatpush1.msra.mxu0 0.0
        %973 = vmatprep.subr.mxu0 0.0
        %974 = vmatpush1.msra.mxu0 0.0
        %975 = vmatprep.subr.mxu0 0.0
        %976 = vmatpush1.msra.mxu0 0.0
        %977 = vmatprep.subr.mxu0 0.0
        %978 = vmatpush1.msra.mxu0 0.0
        %979 = vmatprep.subr.mxu0 0.0
        %980 = vmatpush1.msra.mxu0 0.0
        %981 = vmatprep.subr.mxu0 0.0
        %982 = vmatpush1.msra.mxu0 0.0
        %983 = vmatprep.subr.mxu0 0.0
        %984 = vmatpush1.msra.mxu0 0.0
        %985 = vmatprep.subr.mxu0 0.0
        %986 = vmatpush1.msra.mxu0 0.0
        %987 = vmatprep.subr.mxu0 0.0
        %988 = vmatpush1.msra.mxu0 0.0
        %989 = vmatprep.subr.mxu0 0.0
        %990 = vmatpush1.msra.mxu0 0.0
        %991 = vmatprep.subr.mxu0 0.0
        %992 = vmatpush1.msra.mxu0 0.0
        %993 = vmatprep.subr.mxu0 0.0
        %994 = vmatpush1.msra.mxu0 0.0
        %995 = vmatprep.subr.mxu0 0.0
        %996 = vmatpush1.msra.mxu0 0.0
        %997 = vmatprep.subr.mxu0 0.0
        %998 = vmatpush1.msra.mxu0 0.0
        %999 = vmatprep.subr.mxu0 0.0
        %1000 = vmatpush1.msra.mxu0 0.0
        %1001 = vmatprep.subr.mxu0 0.0
        %1002 = vmatpush1.msra.mxu0 0.0
        %1003 = vmatprep.subr.mxu0 0.0
        %1004 = vmatpush1.msra.mxu0 0.0
        %1005 = vmatprep.subr.mxu0 0.0
        %1006 = vmatpush1.msra.mxu0 0.0
        %1007 = vmatprep.subr.mxu0 0.0
        %1008 = vmatpush1.msra.mxu0 0.0
        %1009 = vmatprep.subr.mxu0 0.0
        %1010 = vmatpush1.msra.mxu0 0.0
        %1011 = vmatprep.subr.mxu0 0.0
        %1012 = vmatpush1.msra.mxu0 0.0
        %1013 = vmatprep.subr.mxu0 0.0
        %1014 = vmatpush1.msra.mxu0 0.0
        %1015 = vmatprep.subr.mxu0 0.0
        %1016 = vmatpush1.msra.mxu0 0.0
        %1017 = vmatprep.subr.mxu0 0.0
        %1018 = vmatpush1.msra.mxu0 0.0
        %1019 = vmatprep.subr.mxu0 0.0
        %1020 = vmatpush1.msra.mxu0 0.0
        %1021 = vmatprep.subr.mxu0 0.0
        %1022 = vmatpush1.msra.mxu0 0.0
        %1023 = vmatprep.subr.mxu0 0.0
        %1024 = vmatpush1.msra.mxu0 0.0
        %1025 = vmatprep.subr.mxu0 0.0
        %1026 = vmatpush1.msra.mxu0 0.0
        %1027 = vmatprep.mubr.f32.mxu0 0.0
        %1028 = vmatmul.mubr.f32.gmra.mrb[0].mxu0 %v961
        %v1029 = vpop.f32.mrb[0].mxu0
        %v1030 = vadd.f32 %v957, %v1029
        %v1031 = vpop.f32.mrb[0].mxu0
        %1032 = vdwg.mxu0
        %v1033 = vmul.f32 %v1030, 0.35355338
        %v1034 = vld [vmem:[#allocation11] sm:$0xff]
        %v1035 = vld [vmem:[#allocation11 + $0x8] sm:$0xff]
        %v1036 = vld [vmem:[#allocation11 + $0x10] sm:$0xff]
        %v1037 = vld [vmem:[#allocation11 + $0x18] sm:$0xff]
        %v1038 = vld [vmem:[#allocation13] sm:$0x1]
        %v1040 = vlaneseq
        %v1041 = vshrl.u32 %v1040, 7
        %v1042 = vsub.s32 0, %v1041
        %v1043 = vrot.slane %v1038, %v1042
        %v1046 = vsel %vm959, %v902, 0
        %v1049 = vsel %vm959, %v903, 0
        %1051 = vmatprep.subr.mxu0 0.0
        %1052 = vmatpush1.msra.mxu0 %v1034
        %1053 = vmatprep.subr.mxu0 0.0
        %1054 = vmatpush1.msra.mxu0 %v1035
        %1055 = vmatprep.subr.mxu0 0.0
        %1056 = vmatpush1.msra.mxu0 %v1036
        %1057 = vmatprep.subr.mxu0 0.0
        %1058 = vmatpush1.msra.mxu0 %v1037
        %1059 = vmatprep.subr.mxu0 0.0
        %1060 = vmatpush1.msra.mxu0 0.0
        %1061 = vmatprep.subr.mxu0 0.0
        %1062 = vmatpush1.msra.mxu0 0.0
        %1063 = vmatprep.subr.mxu0 0.0
        %1064 = vmatpush1.msra.mxu0 0.0
        %1065 = vmatprep.subr.mxu0 0.0
        %1066 = vmatpush1.msra.mxu0 0.0
        %1067 = vmatprep.subr.mxu0 0.0
        %1068 = vmatpush1.msra.mxu0 0.0
        %1069 = vmatprep.subr.mxu0 0.0
        %1070 = vmatpush1.msra.mxu0 0.0
        %1071 = vmatprep.subr.mxu0 0.0
        %1072 = vmatpush1.msra.mxu0 0.0
        %1073 = vmatprep.subr.mxu0 0.0
        %1074 = vmatpush1.msra.mxu0 0.0
        %1075 = vmatprep.subr.mxu0 0.0
        %1076 = vmatpush1.msra.mxu0 0.0
        %1077 = vmatprep.subr.mxu0 0.0
        %1078 = vmatpush1.msra.mxu0 0.0
        %1079 = vmatprep.subr.mxu0 0.0
        %1080 = vmatpush1.msra.mxu0 0.0
        %1081 = vmatprep.subr.mxu0 0.0
        %1082 = vmatpush1.msra.mxu0 0.0
        %1083 = vmatprep.subr.mxu0 0.0
        %1084 = vmatpush1.msra.mxu0 0.0
        %1085 = vmatprep.subr.mxu0 0.0
        %1086 = vmatpush1.msra.mxu0 0.0
        %1087 = vmatprep.subr.mxu0 0.0
        %1088 = vmatpush1.msra.mxu0 0.0
        %1089 = vmatprep.subr.mxu0 0.0
        %1090 = vmatpush1.msra.mxu0 0.0
        %1091 = vmatprep.subr.mxu0 0.0
        %1092 = vmatpush1.msra.mxu0 0.0
        %1093 = vmatprep.subr.mxu0 0.0
        %1094 = vmatpush1.msra.mxu0 0.0
        %1095 = vmatprep.subr.mxu0 0.0
        %1096 = vmatpush1.msra.mxu0 0.0
        %1097 = vmatprep.subr.mxu0 0.0
        %1098 = vmatpush1.msra.mxu0 0.0
        %1099 = vmatprep.subr.mxu0 0.0
        %1100 = vmatpush1.msra.mxu0 0.0
        %1101 = vmatprep.subr.mxu0 0.0
        %1102 = vmatpush1.msra.mxu0 0.0
        %1103 = vmatprep.subr.mxu0 0.0
        %1104 = vmatpush1.msra.mxu0 0.0
        %1105 = vmatprep.subr.mxu0 0.0
        %1106 = vmatpush1.msra.mxu0 0.0
        %1107 = vmatprep.subr.mxu0 0.0
        %1108 = vmatpush1.msra.mxu0 0.0
        %1109 = vmatprep.subr.mxu0 0.0
        %1110 = vmatpush1.msra.mxu0 0.0
        %1111 = vmatprep.subr.mxu0 0.0
        %1112 = vmatpush1.msra.mxu0 0.0
        %1113 = vmatprep.subr.mxu0 0.0
        %1114 = vmatpush1.msra.mxu0 0.0
        %1115 = vmatprep.mubr.f32.mxu0 0.0
        %1116 = vmatmul.mubr.f32.gmra.mrb[0].mxu0 %v1046
        %v1117 = vpop.f32.mrb[0].mxu0
        %v1118 = vadd.f32 %v1043, %v1117
        %v1119 = vpop.f32.mrb[0].mxu0
        %1120 = vmatprep.mubr.f32.mxu0 0.0
        %1121 = vmatmul.mubr.f32.gmra.mrb[0].mxu0 %v1049
        %v1122 = vpop.f32.mrb[0].mxu0
        %v1123 = vadd.f32 %v1043, %v1122
        %v1124 = vpop.f32.mrb[0].mxu0
        %1125 = vdwg.mxu0
        %v1126 = vmul.f32 %v1118, 0.35355338
        %v1127 = vmul.f32 %v1123, 0.35355338
        %1130 = vrot.lane.b32.xlu0 %v1126, 64
        %v1131 = vpop.permute.xlu0 %1130
        %1132 = vrot.lane.b32.xlu0 %v1127, 64
        %v1133 = vpop.permute.xlu0 %1132
        %1135 = vrot.lane.b32.xlu0 %v1030, 96
        %v1136 = vpop.permute.xlu0 %1135
        %vm1137 = vcmask 64512
        %v1138 = vsel %vm1137, %v1131, 0
        %v1140 = vsel %vm1137, %v1133, 0
        %v1142 = vsel %vm1137, %v1136, 0
        %1144 = vmatprep.subr.mxu0 0.0
        %1145 = vmatpush1.xpose.msra.mxu0 %v1142
        %1146 = vmatprep.subr.mxu0 0.0
        %1147 = vmatpush1.xpose.msra.mxu0 0.0
        %1148 = vmatprep.subr.mxu0 0.0
        %1149 = vmatpush1.xpose.msra.mxu0 0.0
        %1150 = vmatprep.subr.mxu0 0.0
        %1151 = vmatpush1.xpose.msra.mxu0 0.0
        %1152 = vmatprep.subr.mxu0 0.0
        %1153 = vmatpush1.xpose.msra.mxu0 0.0
        %1154 = vmatprep.subr.mxu0 0.0
        %1155 = vmatpush1.xpose.msra.mxu0 0.0
        %1156 = vmatprep.subr.mxu0 0.0
        %1157 = vmatpush1.xpose.msra.mxu0 0.0
        %1158 = vmatprep.subr.mxu0 0.0
        %1159 = vmatpush1.xpose.msra.mxu0 0.0
        %1160 = vmatprep.subr.mxu0 0.0
        %1161 = vmatpush1.xpose.msra.mxu0 0.0
        %1162 = vmatprep.subr.mxu0 0.0
        %1163 = vmatpush1.xpose.msra.mxu0 0.0
        %1164 = vmatprep.subr.mxu0 0.0
        %1165 = vmatpush1.xpose.msra.mxu0 0.0
        %1166 = vmatprep.subr.mxu0 0.0
        %1167 = vmatpush1.xpose.msra.mxu0 0.0
        %1168 = vmatprep.subr.mxu0 0.0
        %1169 = vmatpush1.xpose.msra.mxu0 0.0
        %1170 = vmatprep.subr.mxu0 0.0
        %1171 = vmatpush1.xpose.msra.mxu0 0.0
        %1172 = vmatprep.subr.mxu0 0.0
        %1173 = vmatpush1.xpose.msra.mxu0 0.0
        %1174 = vmatprep.subr.mxu0 0.0
        %1175 = vmatpush1.xpose.msra.mxu0 0.0
        %1176 = vmatprep.subr.mxu0 0.0
        %1177 = vmatpush1.xpose.msra.mxu0 0.0
        %1178 = vmatprep.subr.mxu0 0.0
        %1179 = vmatpush1.xpose.msra.mxu0 0.0
        %1180 = vmatprep.subr.mxu0 0.0
        %1181 = vmatpush1.xpose.msra.mxu0 0.0
        %1182 = vmatprep.subr.mxu0 0.0
        %1183 = vmatpush1.xpose.msra.mxu0 0.0
        %1184 = vmatprep.subr.mxu0 0.0
        %1185 = vmatpush1.xpose.msra.mxu0 0.0
        %1186 = vmatprep.subr.mxu0 0.0
        %1187 = vmatpush1.xpose.msra.mxu0 0.0
        %1188 = vmatprep.subr.mxu0 0.0
        %1189 = vmatpush1.xpose.msra.mxu0 0.0
        %1190 = vmatprep.subr.mxu0 0.0
        %1191 = vmatpush1.xpose.msra.mxu0 0.0
        %1192 = vmatprep.subr.mxu0 0.0
        %1193 = vmatpush1.xpose.msra.mxu0 0.0
        %1194 = vmatprep.subr.mxu0 0.0
        %1195 = vmatpush1.xpose.msra.mxu0 0.0
        %1196 = vmatprep.subr.mxu0 0.0
        %1197 = vmatpush1.xpose.msra.mxu0 0.0
        %1198 = vmatprep.subr.mxu0 0.0
        %1199 = vmatpush1.xpose.msra.mxu0 0.0
        %1200 = vmatprep.subr.mxu0 0.0
        %1201 = vmatpush1.xpose.msra.mxu0 0.0
        %1202 = vmatprep.subr.mxu0 0.0
        %1203 = vmatpush1.xpose.msra.mxu0 0.0
        %1204 = vmatprep.subr.mxu0 0.0
        %1205 = vmatpush1.xpose.msra.mxu0 0.0
        %1206 = vmatprep.subr.mxu0 0.0
        %1207 = vmatpush1.xpose.msra.mxu0 0.0
        %1208 = vmatprep.mubr.f32.mxu0 0.0
        %1209 = vmatmul.mubr.f32.gmra.mrb[0].mxu0 %v1138
        %v1210 = vpop.f32.mrb[0].mxu0
        %v1211 = vadd.f32 %v916, %v1210
        %v1212 = vpop.f32.mrb[0].mxu0
        %1213 = vmatprep.mubr.f32.mxu0 0.0
        %1214 = vmatmul.mubr.f32.gmra.mrb[0].mxu0 %v1140
        %v1215 = vpop.f32.mrb[0].mxu0
        %v1216 = vadd.f32 %v916, %v1215
        %v1217 = vpop.f32.mrb[0].mxu0
        %1218 = vdwg.mxu0
        %v1219 = vsel %vm1137, %v1211, -inf
        %1220 = vmax.xlane.f32.xlu0 %v1219
        %v1221 = vpop.xlane.xlu0 %1220
        %v1222 = vsel %vm1137, %v1216, -inf
        %1223 = vmax.xlane.f32.xlu0 %v1222
        %v1224 = vpop.xlane.xlu0 %1223
        %v1225 = vsub.f32 %v1211, %v1221
        %v1226 = vsub.f32 %v1216, %v1224
        %v1227 = vmul.f32 %v1225, 1.442695
        %v1228 = vpow.pop %v1227
        %v1229 = vmul.f32 %v1226, 1.442695
        %v1230 = vpow.pop %v1229
        %v1231 = vsel %vm1137, %v1228, 0.0
        %1232 = vadd.xlane.f32.xlu0 %v1231
        %v1233 = vpop.xlane.xlu0 %1232
        %v1234 = vsel %vm1137, %v1230, 0.0
        %1235 = vadd.xlane.f32.xlu0 %v1234
        %v1236 = vpop.xlane.xlu0 %1235
        %v1237 = vrcp.pop %v1233
        %v1238 = vrcp.pop %v1236
        %v1239 = vmul.f32 %v1228, %v1237
        %v1240 = vmul.f32 %v1230, %v1238
        %1241 = vrot.lane.b32.xlu0 %v1030, 64
        %v1242 = vpop.permute.xlu0 %1241
        %v1245 = vsel %vm1137, %v1239, 0
        %v1248 = vsel %vm1137, %v1240, 0
        %1250 = vmatprep.subr.mxu0 0.0
        %1251 = vmatpush1.msra.mxu0 %v1242
        %1252 = vmatprep.subr.mxu0 0.0
        %1253 = vmatpush1.msra.mxu0 0.0
        %1254 = vmatprep.subr.mxu0 0.0
        %1255 = vmatpush1.msra.mxu0 0.0
        %1256 = vmatprep.subr.mxu0 0.0
        %1257 = vmatpush1.msra.mxu0 0.0
        %1258 = vmatprep.subr.mxu0 0.0
        %1259 = vmatpush1.msra.mxu0 0.0
        %1260 = vmatprep.subr.mxu0 0.0
        %1261 = vmatpush1.msra.mxu0 0.0
        %1262 = vmatprep.subr.mxu0 0.0
        %1263 = vmatpush1.msra.mxu0 0.0
        %1264 = vmatprep.subr.mxu0 0.0
        %1265 = vmatpush1.msra.mxu0 0.0
        %1266 = vmatprep.subr.mxu0 0.0
        %1267 = vmatpush1.msra.mxu0 0.0
        %1268 = vmatprep.subr.mxu0 0.0
        %1269 = vmatpush1.msra.mxu0 0.0
        %1270 = vmatprep.subr.mxu0 0.0
        %1271 = vmatpush1.msra.mxu0 0.0
        %1272 = vmatprep.subr.mxu0 0.0
        %1273 = vmatpush1.msra.mxu0 0.0
        %1274 = vmatprep.subr.mxu0 0.0
        %1275 = vmatpush1.msra.mxu0 0.0
        %1276 = vmatprep.subr.mxu0 0.0
        %1277 = vmatpush1.msra.mxu0 0.0
        %1278 = vmatprep.subr.mxu0 0.0
        %1279 = vmatpush1.msra.mxu0 0.0
        %1280 = vmatprep.subr.mxu0 0.0
        %1281 = vmatpush1.msra.mxu0 0.0
        %1282 = vmatprep.subr.mxu0 0.0
        %1283 = vmatpush1.msra.mxu0 0.0
        %1284 = vmatprep.subr.mxu0 0.0
        %1285 = vmatpush1.msra.mxu0 0.0
        %1286 = vmatprep.subr.mxu0 0.0
        %1287 = vmatpush1.msra.mxu0 0.0
        %1288 = vmatprep.subr.mxu0 0.0
        %1289 = vmatpush1.msra.mxu0 0.0
        %1290 = vmatprep.subr.mxu0 0.0
        %1291 = vmatpush1.msra.mxu0 0.0
        %1292 = vmatprep.subr.mxu0 0.0
        %1293 = vmatpush1.msra.mxu0 0.0
        %1294 = vmatprep.subr.mxu0 0.0
        %1295 = vmatpush1.msra.mxu0 0.0
        %1296 = vmatprep.subr.mxu0 0.0
        %1297 = vmatpush1.msra.mxu0 0.0
        %1298 = vmatprep.subr.mxu0 0.0
        %1299 = vmatpush1.msra.mxu0 0.0
        %1300 = vmatprep.subr.mxu0 0.0
        %1301 = vmatpush1.msra.mxu0 0.0
        %1302 = vmatprep.subr.mxu0 0.0
        %1303 = vmatpush1.msra.mxu0 0.0
        %1304 = vmatprep.subr.mxu0 0.0
        %1305 = vmatpush1.msra.mxu0 0.0
        %1306 = vmatprep.subr.mxu0 0.0
        %1307 = vmatpush1.msra.mxu0 0.0
        %1308 = vmatprep.subr.mxu0 0.0
        %1309 = vmatpush1.msra.mxu0 0.0
        %1310 = vmatprep.subr.mxu0 0.0
        %1311 = vmatpush1.msra.mxu0 0.0
        %1312 = vmatprep.subr.mxu0 0.0
        %1313 = vmatpush1.msra.mxu0 0.0
        %1314 = vmatprep.mubr.f32.mxu0 0.0
        %1315 = vmatmul.mubr.f32.gmra.mrb[0].mxu0 %v1245
        %v1316 = vpop.f32.mrb[0].mxu0
        %v1317 = vadd.f32 0.0, %v1316
        %v1318 = vpop.f32.mrb[0].mxu0
        %1319 = vmatprep.mubr.f32.mxu0 0.0
        %1320 = vmatmul.mubr.f32.gmra.mrb[0].mxu0 %v1248
        %v1321 = vpop.f32.mrb[0].mxu0
        %v1322 = vadd.f32 0.0, %v1321
        %v1323 = vpop.f32.mrb[0].mxu0
        %1324 = vdwg.mxu0
        %1325 = vrot.lane.b32.xlu0 %v1126, 56
        %v1326 = vpop.permute.xlu0 %1325
        %1327 = vrot.lane.b32.xlu0 %v1127, 56
        %v1328 = vpop.permute.xlu0 %1327
        %1329 = vrot.lane.b32.xlu0 %v1030, 88
        %v1330 = vpop.permute.xlu0 %1329
        %v1331 = vsel %vm1137, %v1326, 0
        %v1333 = vsel %vm1137, %v1328, 0
        %v1335 = vsel %vm1137, %v1330, 0
        %1337 = vmatprep.subr.mxu0 0.0
        %1338 = vmatpush1.xpose.msra.mxu0 %v1335
        %1339 = vmatprep.subr.mxu0 0.0
        %1340 = vmatpush1.xpose.msra.mxu0 0.0
        %1341 = vmatprep.subr.mxu0 0.0
        %1342 = vmatpush1.xpose.msra.mxu0 0.0
        %1343 = vmatprep.subr.mxu0 0.0
        %1344 = vmatpush1.xpose.msra.mxu0 0.0
        %1345 = vmatprep.subr.mxu0 0.0
        %1346 = vmatpush1.xpose.msra.mxu0 0.0
        %1347 = vmatprep.subr.mxu0 0.0
        %1348 = vmatpush1.xpose.msra.mxu0 0.0
        %1349 = vmatprep.subr.mxu0 0.0
        %1350 = vmatpush1.xpose.msra.mxu0 0.0
        %1351 = vmatprep.subr.mxu0 0.0
        %1352 = vmatpush1.xpose.msra.mxu0 0.0
        %1353 = vmatprep.subr.mxu0 0.0
        %1354 = vmatpush1.xpose.msra.mxu0 0.0
        %1355 = vmatprep.subr.mxu0 0.0
        %1356 = vmatpush1.xpose.msra.mxu0 0.0
        %1357 = vmatprep.subr.mxu0 0.0
        %1358 = vmatpush1.xpose.msra.mxu0 0.0
        %1359 = vmatprep.subr.mxu0 0.0
        %1360 = vmatpush1.xpose.msra.mxu0 0.0
        %1361 = vmatprep.subr.mxu0 0.0
        %1362 = vmatpush1.xpose.msra.mxu0 0.0
        %1363 = vmatprep.subr.mxu0 0.0
        %1364 = vmatpush1.xpose.msra.mxu0 0.0
        %1365 = vmatprep.subr.mxu0 0.0
        %1366 = vmatpush1.xpose.msra.mxu0 0.0
        %1367 = vmatprep.subr.mxu0 0.0
        %1368 = vmatpush1.xpose.msra.mxu0 0.0
        %1369 = vmatprep.subr.mxu0 0.0
        %1370 = vmatpush1.xpose.msra.mxu0 0.0
        %1371 = vmatprep.subr.mxu0 0.0
        %1372 = vmatpush1.xpose.msra.mxu0 0.0
        %1373 = vmatprep.subr.mxu0 0.0
        %1374 = vmatpush1.xpose.msra.mxu0 0.0
        %1375 = vmatprep.subr.mxu0 0.0
        %1376 = vmatpush1.xpose.msra.mxu0 0.0
        %1377 = vmatprep.subr.mxu0 0.0
        %1378 = vmatpush1.xpose.msra.mxu0 0.0
        %1379 = vmatprep.subr.mxu0 0.0
        %1380 = vmatpush1.xpose.msra.mxu0 0.0
        %1381 = vmatprep.subr.mxu0 0.0
        %1382 = vmatpush1.xpose.msra.mxu0 0.0
        %1383 = vmatprep.subr.mxu0 0.0
        %1384 = vmatpush1.xpose.msra.mxu0 0.0
        %1385 = vmatprep.subr.mxu0 0.0
        %1386 = vmatpush1.xpose.msra.mxu0 0.0
        %1387 = vmatprep.subr.mxu0 0.0
        %1388 = vmatpush1.xpose.msra.mxu0 0.0
        %1389 = vmatprep.subr.mxu0 0.0
        %1390 = vmatpush1.xpose.msra.mxu0 0.0
        %1391 = vmatprep.subr.mxu0 0.0
        %1392 = vmatpush1.xpose.msra.mxu0 0.0
        %1393 = vmatprep.subr.mxu0 0.0
        %1394 = vmatpush1.xpose.msra.mxu0 0.0
        %1395 = vmatprep.subr.mxu0 0.0
        %1396 = vmatpush1.xpose.msra.mxu0 0.0
        %1397 = vmatprep.subr.mxu0 0.0
        %1398 = vmatpush1.xpose.msra.mxu0 0.0
        %1399 = vmatprep.subr.mxu0 0.0
        %1400 = vmatpush1.xpose.msra.mxu0 0.0
        %1401 = vmatprep.mubr.f32.mxu0 0.0
        %1402 = vmatmul.mubr.f32.gmra.mrb[0].mxu0 %v1331
        %v1403 = vpop.f32.mrb[0].mxu0
        %v1404 = vadd.f32 %v916, %v1403
        %v1405 = vpop.f32.mrb[0].mxu0
        %1406 = vmatprep.mubr.f32.mxu0 0.0
        %1407 = vmatmul.mubr.f32.gmra.mrb[0].mxu0 %v1333
        %v1408 = vpop.f32.mrb[0].mxu0
        %v1409 = vadd.f32 %v916, %v1408
        %v1410 = vpop.f32.mrb[0].mxu0
        %1411 = vdwg.mxu0
        %v1412 = vsel %vm1137, %v1404, -inf
        %1413 = vmax.xlane.f32.xlu0 %v1412
        %v1414 = vpop.xlane.xlu0 %1413
        %v1415 = vsel %vm1137, %v1409, -inf
        %1416 = vmax.xlane.f32.xlu0 %v1415
        %v1417 = vpop.xlane.xlu0 %1416
        %v1418 = vsub.f32 %v1404, %v1414
        %v1419 = vsub.f32 %v1409, %v1417
        %v1420 = vmul.f32 %v1418, 1.442695
        %v1421 = vpow.pop %v1420
        %v1422 = vmul.f32 %v1419, 1.442695
        %v1423 = vpow.pop %v1422
        %v1424 = vsel %vm1137, %v1421, 0.0
        %1425 = vadd.xlane.f32.xlu0 %v1424
        %v1426 = vpop.xlane.xlu0 %1425
        %v1427 = vsel %vm1137, %v1423, 0.0
        %1428 = vadd.xlane.f32.xlu0 %v1427
        %v1429 = vpop.xlane.xlu0 %1428
        %v1430 = vrcp.pop %v1426
        %v1431 = vrcp.pop %v1429
        %v1432 = vmul.f32 %v1421, %v1430
        %v1433 = vmul.f32 %v1423, %v1431
        %1434 = vrot.lane.b32.xlu0 %v1030, 56
        %v1435 = vpop.permute.xlu0 %1434
        %v1438 = vsel %vm1137, %v1432, 0
        %v1441 = vsel %vm1137, %v1433, 0
        %1443 = vmatprep.subr.mxu0 0.0
        %1444 = vmatpush1.msra.mxu0 %v1435
        %1445 = vmatprep.subr.mxu0 0.0
        %1446 = vmatpush1.msra.mxu0 0.0
        %1447 = vmatprep.subr.mxu0 0.0
        %1448 = vmatpush1.msra.mxu0 0.0
        %1449 = vmatprep.subr.mxu0 0.0
        %1450 = vmatpush1.msra.mxu0 0.0
        %1451 = vmatprep.subr.mxu0 0.0
        %1452 = vmatpush1.msra.mxu0 0.0
        %1453 = vmatprep.subr.mxu0 0.0
        %1454 = vmatpush1.msra.mxu0 0.0
        %1455 = vmatprep.subr.mxu0 0.0
        %1456 = vmatpush1.msra.mxu0 0.0
        %1457 = vmatprep.subr.mxu0 0.0
        %1458 = vmatpush1.msra.mxu0 0.0
        %1459 = vmatprep.subr.mxu0 0.0
        %1460 = vmatpush1.msra.mxu0 0.0
        %1461 = vmatprep.subr.mxu0 0.0
        %1462 = vmatpush1.msra.mxu0 0.0
        %1463 = vmatprep.subr.mxu0 0.0
        %1464 = vmatpush1.msra.mxu0 0.0
        %1465 = vmatprep.subr.mxu0 0.0
        %1466 = vmatpush1.msra.mxu0 0.0
        %1467 = vmatprep.subr.mxu0 0.0
        %1468 = vmatpush1.msra.mxu0 0.0
        %1469 = vmatprep.subr.mxu0 0.0
        %1470 = vmatpush1.msra.mxu0 0.0
        %1471 = vmatprep.subr.mxu0 0.0
        %1472 = vmatpush1.msra.mxu0 0.0
        %1473 = vmatprep.subr.mxu0 0.0
        %1474 = vmatpush1.msra.mxu0 0.0
        %1475 = vmatprep.subr.mxu0 0.0
        %1476 = vmatpush1.msra.mxu0 0.0
        %1477 = vmatprep.subr.mxu0 0.0
        %1478 = vmatpush1.msra.mxu0 0.0
        %1479 = vmatprep.subr.mxu0 0.0
        %1480 = vmatpush1.msra.mxu0 0.0
        %1481 = vmatprep.subr.mxu0 0.0
        %1482 = vmatpush1.msra.mxu0 0.0
        %1483 = vmatprep.subr.mxu0 0.0
        %1484 = vmatpush1.msra.mxu0 0.0
        %1485 = vmatprep.subr.mxu0 0.0
        %1486 = vmatpush1.msra.mxu0 0.0
        %1487 = vmatprep.subr.mxu0 0.0
        %1488 = vmatpush1.msra.mxu0 0.0
        %1489 = vmatprep.subr.mxu0 0.0
        %1490 = vmatpush1.msra.mxu0 0.0
        %1491 = vmatprep.subr.mxu0 0.0
        %1492 = vmatpush1.msra.mxu0 0.0
        %1493 = vmatprep.subr.mxu0 0.0
        %1494 = vmatpush1.msra.mxu0 0.0
        %1495 = vmatprep.subr.mxu0 0.0
        %1496 = vmatpush1.msra.mxu0 0.0
        %1497 = vmatprep.subr.mxu0 0.0
        %1498 = vmatpush1.msra.mxu0 0.0
        %1499 = vmatprep.subr.mxu0 0.0
        %1500 = vmatpush1.msra.mxu0 0.0
        %1501 = vmatprep.subr.mxu0 0.0
        %1502 = vmatpush1.msra.mxu0 0.0
        %1503 = vmatprep.subr.mxu0 0.0
        %1504 = vmatpush1.msra.mxu0 0.0
        %1505 = vmatprep.subr.mxu0 0.0
        %1506 = vmatpush1.msra.mxu0 0.0
        %1507 = vmatprep.mubr.f32.mxu0 0.0
        %1508 = vmatmul.mubr.f32.gmra.mrb[0].mxu0 %v1438
        %v1509 = vpop.f32.mrb[0].mxu0
        %v1510 = vadd.f32 0.0, %v1509
        %v1511 = vpop.f32.mrb[0].mxu0
        %1512 = vmatprep.mubr.f32.mxu0 0.0
        %1513 = vmatmul.mubr.f32.gmra.mrb[0].mxu0 %v1441
        %v1514 = vpop.f32.mrb[0].mxu0
        %v1515 = vadd.f32 0.0, %v1514
        %v1516 = vpop.f32.mrb[0].mxu0
        %1517 = vdwg.mxu0
        %v1519 = vsel %vm1137, %v1510, 0
        %v1522 = vsel %vm1137, %v1515, 0
        %1524 = vmatprep.subr.mxu0 0.0
        %1525 = vmatpush1.msra.mxu0 %v926
        %1526 = vmatprep.subr.mxu0 0.0
        %1527 = vmatpush1.msra.mxu0 0.0
        %1528 = vmatprep.subr.mxu0 0.0
        %1529 = vmatpush1.msra.mxu0 0.0
        %1530 = vmatprep.subr.mxu0 0.0
        %1531 = vmatpush1.msra.mxu0 0.0
        %1532 = vmatprep.subr.mxu0 0.0
        %1533 = vmatpush1.msra.mxu0 0.0
        %1534 = vmatprep.subr.mxu0 0.0
        %1535 = vmatpush1.msra.mxu0 0.0
        %1536 = vmatprep.subr.mxu0 0.0
        %1537 = vmatpush1.msra.mxu0 0.0
        %1538 = vmatprep.subr.mxu0 0.0
        %1539 = vmatpush1.msra.mxu0 0.0
        %1540 = vmatprep.subr.mxu0 0.0
        %1541 = vmatpush1.msra.mxu0 0.0
        %1542 = vmatprep.subr.mxu0 0.0
        %1543 = vmatpush1.msra.mxu0 0.0
        %1544 = vmatprep.subr.mxu0 0.0
        %1545 = vmatpush1.msra.mxu0 0.0
        %1546 = vmatprep.subr.mxu0 0.0
        %1547 = vmatpush1.msra.mxu0 0.0
        %1548 = vmatprep.subr.mxu0 0.0
        %1549 = vmatpush1.msra.mxu0 0.0
        %1550 = vmatprep.subr.mxu0 0.0
        %1551 = vmatpush1.msra.mxu0 0.0
        %1552 = vmatprep.subr.mxu0 0.0
        %1553 = vmatpush1.msra.mxu0 0.0
        %1554 = vmatprep.subr.mxu0 0.0
        %1555 = vmatpush1.msra.mxu0 0.0
        %1556 = vmatprep.subr.mxu0 0.0
        %1557 = vmatpush1.msra.mxu0 0.0
        %1558 = vmatprep.subr.mxu0 0.0
        %1559 = vmatpush1.msra.mxu0 0.0
        %1560 = vmatprep.subr.mxu0 0.0
        %1561 = vmatpush1.msra.mxu0 0.0
        %1562 = vmatprep.subr.mxu0 0.0
        %1563 = vmatpush1.msra.mxu0 0.0
        %1564 = vmatprep.subr.mxu0 0.0
        %1565 = vmatpush1.msra.mxu0 0.0
        %1566 = vmatprep.subr.mxu0 0.0
        %1567 = vmatpush1.msra.mxu0 0.0
        %1568 = vmatprep.subr.mxu0 0.0
        %1569 = vmatpush1.msra.mxu0 0.0
        %1570 = vmatprep.subr.mxu0 0.0
        %1571 = vmatpush1.msra.mxu0 0.0
        %1572 = vmatprep.subr.mxu0 0.0
        %1573 = vmatpush1.msra.mxu0 0.0
        %1574 = vmatprep.subr.mxu0 0.0
        %1575 = vmatpush1.msra.mxu0 0.0
        %1576 = vmatprep.subr.mxu0 0.0
        %1577 = vmatpush1.msra.mxu0 0.0
        %1578 = vmatprep.subr.mxu0 0.0
        %1579 = vmatpush1.msra.mxu0 0.0
        %1580 = vmatprep.subr.mxu0 0.0
        %1581 = vmatpush1.msra.mxu0 0.0
        %1582 = vmatprep.subr.mxu0 0.0
        %1583 = vmatpush1.msra.mxu0 0.0
        %1584 = vmatprep.subr.mxu0 0.0
        %1585 = vmatpush1.msra.mxu0 0.0
        %1586 = vmatprep.subr.mxu0 0.0
        %1587 = vmatpush1.msra.mxu0 0.0
        %1588 = vmatprep.mubr.f32.mxu0 0.0
        %1589 = vmatmul.mubr.f32.gmra.mrb[0].mxu0 %v1519
        %v1590 = vpop.f32.mrb[0].mxu0
        %v1591 = vadd.f32 0.0, %v1590
        %v1592 = vpop.f32.mrb[0].mxu0
        %1593 = vmatprep.mubr.f32.mxu0 0.0
        %1594 = vmatmul.mubr.f32.gmra.mrb[0].mxu0 %v1522
        %v1595 = vpop.f32.mrb[0].mxu0
        %v1596 = vadd.f32 0.0, %v1595
        %v1597 = vpop.f32.mrb[0].mxu0
        %1598 = vdwg.mxu0
        %v1600 = vsel %vm1137, %v1317, 0
        %v1603 = vsel %vm1137, %v1322, 0
        %1605 = vmatprep.subr.mxu0 0.0
        %1606 = vmatpush1.msra.mxu0 %v925
        %1607 = vmatprep.subr.mxu0 0.0
        %1608 = vmatpush1.msra.mxu0 0.0
        %1609 = vmatprep.subr.mxu0 0.0
        %1610 = vmatpush1.msra.mxu0 0.0
        %1611 = vmatprep.subr.mxu0 0.0
        %1612 = vmatpush1.msra.mxu0 0.0
        %1613 = vmatprep.subr.mxu0 0.0
        %1614 = vmatpush1.msra.mxu0 0.0
        %1615 = vmatprep.subr.mxu0 0.0
        %1616 = vmatpush1.msra.mxu0 0.0
        %1617 = vmatprep.subr.mxu0 0.0
        %1618 = vmatpush1.msra.mxu0 0.0
        %1619 = vmatprep.subr.mxu0 0.0
        %1620 = vmatpush1.msra.mxu0 0.0
        %1621 = vmatprep.subr.mxu0 0.0
        %1622 = vmatpush1.msra.mxu0 0.0
        %1623 = vmatprep.subr.mxu0 0.0
        %1624 = vmatpush1.msra.mxu0 0.0
        %1625 = vmatprep.subr.mxu0 0.0
        %1626 = vmatpush1.msra.mxu0 0.0
        %1627 = vmatprep.subr.mxu0 0.0
        %1628 = vmatpush1.msra.mxu0 0.0
        %1629 = vmatprep.subr.mxu0 0.0
        %1630 = vmatpush1.msra.mxu0 0.0
        %1631 = vmatprep.subr.mxu0 0.0
        %1632 = vmatpush1.msra.mxu0 0.0
        %1633 = vmatprep.subr.mxu0 0.0
        %1634 = vmatpush1.msra.mxu0 0.0
        %1635 = vmatprep.subr.mxu0 0.0
        %1636 = vmatpush1.msra.mxu0 0.0
        %1637 = vmatprep.subr.mxu0 0.0
        %1638 = vmatpush1.msra.mxu0 0.0
        %1639 = vmatprep.subr.mxu0 0.0
        %1640 = vmatpush1.msra.mxu0 0.0
        %1641 = vmatprep.subr.mxu0 0.0
        %1642 = vmatpush1.msra.mxu0 0.0
        %1643 = vmatprep.subr.mxu0 0.0
        %1644 = vmatpush1.msra.mxu0 0.0
        %1645 = vmatprep.subr.mxu0 0.0
        %1646 = vmatpush1.msra.mxu0 0.0
        %1647 = vmatprep.subr.mxu0 0.0
        %1648 = vmatpush1.msra.mxu0 0.0
        %1649 = vmatprep.subr.mxu0 0.0
        %1650 = vmatpush1.msra.mxu0 0.0
        %1651 = vmatprep.subr.mxu0 0.0
        %1652 = vmatpush1.msra.mxu0 0.0
        %1653 = vmatprep.subr.mxu0 0.0
        %1654 = vmatpush1.msra.mxu0 0.0
        %1655 = vmatprep.subr.mxu0 0.0
        %1656 = vmatpush1.msra.mxu0 0.0
        %1657 = vmatprep.subr.mxu0 0.0
        %1658 = vmatpush1.msra.mxu0 0.0
        %1659 = vmatprep.subr.mxu0 0.0
        %1660 = vmatpush1.msra.mxu0 0.0
        %1661 = vmatprep.subr.mxu0 0.0
        %1662 = vmatpush1.msra.mxu0 0.0
        %1663 = vmatprep.subr.mxu0 0.0
        %1664 = vmatpush1.msra.mxu0 0.0
        %1665 = vmatprep.subr.mxu0 0.0
        %1666 = vmatpush1.msra.mxu0 0.0
        %1667 = vmatprep.subr.mxu0 0.0
        %1668 = vmatpush1.msra.mxu0 0.0
        %1669 = vmatprep.mubr.f32.mxu0 0.0
        %1670 = vmatmul.mubr.f32.gmra.mrb[0].mxu0 %v1600
        %v1671 = vpop.f32.mrb[0].mxu0
        %v1672 = vadd.f32 %v1591, %v1671
        %v1673 = vpop.f32.mrb[0].mxu0
        %1674 = vmatprep.mubr.f32.mxu0 0.0
        %1675 = vmatmul.mubr.f32.gmra.mrb[0].mxu0 %v1603
        %v1676 = vpop.f32.mrb[0].mxu0
        %v1677 = vadd.f32 %v1596, %v1676
        %v1678 = vpop.f32.mrb[0].mxu0
        %1679 = vdwg.mxu0
        %1680 = vrot.lane.b32.xlu0 %v1126, 48
        %v1681 = vpop.permute.xlu0 %1680
        %1682 = vrot.lane.b32.xlu0 %v1127, 48
        %v1683 = vpop.permute.xlu0 %1682
        %1684 = vrot.lane.b32.xlu0 %v1030, 80
        %v1685 = vpop.permute.xlu0 %1684
        %v1686 = vsel %vm1137, %v1681, 0
        %v1688 = vsel %vm1137, %v1683, 0
        %v1690 = vsel %vm1137, %v1685, 0
        %1692 = vmatprep.subr.mxu0 0.0
        %1693 = vmatpush1.xpose.msra.mxu0 %v1690
        %1694 = vmatprep.subr.mxu0 0.0
        %1695 = vmatpush1.xpose.msra.mxu0 0.0
        %1696 = vmatprep.subr.mxu0 0.0
        %1697 = vmatpush1.xpose.msra.mxu0 0.0
        %1698 = vmatprep.subr.mxu0 0.0
        %1699 = vmatpush1.xpose.msra.mxu0 0.0
        %1700 = vmatprep.subr.mxu0 0.0
        %1701 = vmatpush1.xpose.msra.mxu0 0.0
        %1702 = vmatprep.subr.mxu0 0.0
        %1703 = vmatpush1.xpose.msra.mxu0 0.0
        %1704 = vmatprep.subr.mxu0 0.0
        %1705 = vmatpush1.xpose.msra.mxu0 0.0
        %1706 = vmatprep.subr.mxu0 0.0
        %1707 = vmatpush1.xpose.msra.mxu0 0.0
        %1708 = vmatprep.subr.mxu0 0.0
        %1709 = vmatpush1.xpose.msra.mxu0 0.0
        %1710 = vmatprep.subr.mxu0 0.0
        %1711 = vmatpush1.xpose.msra.mxu0 0.0
        %1712 = vmatprep.subr.mxu0 0.0
        %1713 = vmatpush1.xpose.msra.mxu0 0.0
        %1714 = vmatprep.subr.mxu0 0.0
        %1715 = vmatpush1.xpose.msra.mxu0 0.0
        %1716 = vmatprep.subr.mxu0 0.0
        %1717 = vmatpush1.xpose.msra.mxu0 0.0
        %1718 = vmatprep.subr.mxu0 0.0
        %1719 = vmatpush1.xpose.msra.mxu0 0.0
        %1720 = vmatprep.subr.mxu0 0.0
        %1721 = vmatpush1.xpose.msra.mxu0 0.0
        %1722 = vmatprep.subr.mxu0 0.0
        %1723 = vmatpush1.xpose.msra.mxu0 0.0
        %1724 = vmatprep.subr.mxu0 0.0
        %1725 = vmatpush1.xpose.msra.mxu0 0.0
        %1726 = vmatprep.subr.mxu0 0.0
        %1727 = vmatpush1.xpose.msra.mxu0 0.0
        %1728 = vmatprep.subr.mxu0 0.0
        %1729 = vmatpush1.xpose.msra.mxu0 0.0
        %1730 = vmatprep.subr.mxu0 0.0
        %1731 = vmatpush1.xpose.msra.mxu0 0.0
        %1732 = vmatprep.subr.mxu0 0.0
        %1733 = vmatpush1.xpose.msra.mxu0 0.0
        %1734 = vmatprep.subr.mxu0 0.0
        %1735 = vmatpush1.xpose.msra.mxu0 0.0
        %1736 = vmatprep.subr.mxu0 0.0
        %1737 = vmatpush1.xpose.msra.mxu0 0.0
        %1738 = vmatprep.subr.mxu0 0.0
        %1739 = vmatpush1.xpose.msra.mxu0 0.0
        %1740 = vmatprep.subr.mxu0 0.0
        %1741 = vmatpush1.xpose.msra.mxu0 0.0
        %1742 = vmatprep.subr.mxu0 0.0
        %1743 = vmatpush1.xpose.msra.mxu0 0.0
        %1744 = vmatprep.subr.mxu0 0.0
        %1745 = vmatpush1.xpose.msra.mxu0 0.0
        %1746 = vmatprep.subr.mxu0 0.0
        %1747 = vmatpush1.xpose.msra.mxu0 0.0
        %1748 = vmatprep.subr.mxu0 0.0
        %1749 = vmatpush1.xpose.msra.mxu0 0.0
        %1750 = vmatprep.subr.mxu0 0.0
        %1751 = vmatpush1.xpose.msra.mxu0 0.0
        %1752 = vmatprep.subr.mxu0 0.0
        %1753 = vmatpush1.xpose.msra.mxu0 0.0
        %1754 = vmatprep.subr.mxu0 0.0
        %1755 = vmatpush1.xpose.msra.mxu0 0.0
        %1756 = vmatprep.mubr.f32.mxu0 0.0
        %1757 = vmatmul.mubr.f32.gmra.mrb[0].mxu0 %v1686
        %v1758 = vpop.f32.mrb[0].mxu0
        %v1759 = vadd.f32 %v916, %v1758
        %v1760 = vpop.f32.mrb[0].mxu0
        %1761 = vmatprep.mubr.f32.mxu0 0.0
        %1762 = vmatmul.mubr.f32.gmra.mrb[0].mxu0 %v1688
        %v1763 = vpop.f32.mrb[0].mxu0
        %v1764 = vadd.f32 %v916, %v1763
        %v1765 = vpop.f32.mrb[0].mxu0
        %1766 = vdwg.mxu0
        %v1767 = vsel %vm1137, %v1759, -inf
        %1768 = vmax.xlane.f32.xlu0 %v1767
        %v1769 = vpop.xlane.xlu0 %1768
        %v1770 = vsel %vm1137, %v1764, -inf
        %1771 = vmax.xlane.f32.xlu0 %v1770
        %v1772 = vpop.xlane.xlu0 %1771
        %v1773 = vsub.f32 %v1759, %v1769
        %v1774 = vsub.f32 %v1764, %v1772
        %v1775 = vmul.f32 %v1773, 1.442695
        %v1776 = vpow.pop %v1775
        %v1777 = vmul.f32 %v1774, 1.442695
        %v1778 = vpow.pop %v1777
        %v1779 = vsel %vm1137, %v1776, 0.0
        %1780 = vadd.xlane.f32.xlu0 %v1779
        %v1781 = vpop.xlane.xlu0 %1780
        %v1782 = vsel %vm1137, %v1778, 0.0
        %1783 = vadd.xlane.f32.xlu0 %v1782
        %v1784 = vpop.xlane.xlu0 %1783
        %v1785 = vrcp.pop %v1781
        %v1786 = vrcp.pop %v1784
        %v1787 = vmul.f32 %v1776, %v1785
        %v1788 = vmul.f32 %v1778, %v1786
        %1789 = vrot.lane.b32.xlu0 %v1030, 48
        %v1790 = vpop.permute.xlu0 %1789
        %v1793 = vsel %vm1137, %v1787, 0
        %v1796 = vsel %vm1137, %v1788, 0
        %1798 = vmatprep.subr.mxu0 0.0
        %1799 = vmatpush1.msra.mxu0 %v1790
        %1800 = vmatprep.subr.mxu0 0.0
        %1801 = vmatpush1.msra.mxu0 0.0
        %1802 = vmatprep.subr.mxu0 0.0
        %1803 = vmatpush1.msra.mxu0 0.0
        %1804 = vmatprep.subr.mxu0 0.0
        %1805 = vmatpush1.msra.mxu0 0.0
        %1806 = vmatprep.subr.mxu0 0.0
        %1807 = vmatpush1.msra.mxu0 0.0
        %1808 = vmatprep.subr.mxu0 0.0
        %1809 = vmatpush1.msra.mxu0 0.0
        %1810 = vmatprep.subr.mxu0 0.0
        %1811 = vmatpush1.msra.mxu0 0.0
        %1812 = vmatprep.subr.mxu0 0.0
        %1813 = vmatpush1.msra.mxu0 0.0
        %1814 = vmatprep.subr.mxu0 0.0
        %1815 = vmatpush1.msra.mxu0 0.0
        %1816 = vmatprep.subr.mxu0 0.0
        %1817 = vmatpush1.msra.mxu0 0.0
        %1818 = vmatprep.subr.mxu0 0.0
        %1819 = vmatpush1.msra.mxu0 0.0
        %1820 = vmatprep.subr.mxu0 0.0
        %1821 = vmatpush1.msra.mxu0 0.0
        %1822 = vmatprep.subr.mxu0 0.0
        %1823 = vmatpush1.msra.mxu0 0.0
        %1824 = vmatprep.subr.mxu0 0.0
        %1825 = vmatpush1.msra.mxu0 0.0
        %1826 = vmatprep.subr.mxu0 0.0
        %1827 = vmatpush1.msra.mxu0 0.0
        %1828 = vmatprep.subr.mxu0 0.0
        %1829 = vmatpush1.msra.mxu0 0.0
        %1830 = vmatprep.subr.mxu0 0.0
        %1831 = vmatpush1.msra.mxu0 0.0
        %1832 = vmatprep.subr.mxu0 0.0
        %1833 = vmatpush1.msra.mxu0 0.0
        %1834 = vmatprep.subr.mxu0 0.0
        %1835 = vmatpush1.msra.mxu0 0.0
        %1836 = vmatprep.subr.mxu0 0.0
        %1837 = vmatpush1.msra.mxu0 0.0
        %1838 = vmatprep.subr.mxu0 0.0
        %1839 = vmatpush1.msra.mxu0 0.0
        %1840 = vmatprep.subr.mxu0 0.0
        %1841 = vmatpush1.msra.mxu0 0.0
        %1842 = vmatprep.subr.mxu0 0.0
        %1843 = vmatpush1.msra.mxu0 0.0
        %1844 = vmatprep.subr.mxu0 0.0
        %1845 = vmatpush1.msra.mxu0 0.0
        %1846 = vmatprep.subr.mxu0 0.0
        %1847 = vmatpush1.msra.mxu0 0.0
        %1848 = vmatprep.subr.mxu0 0.0
        %1849 = vmatpush1.msra.mxu0 0.0
        %1850 = vmatprep.subr.mxu0 0.0
        %1851 = vmatpush1.msra.mxu0 0.0
        %1852 = vmatprep.subr.mxu0 0.0
        %1853 = vmatpush1.msra.mxu0 0.0
        %1854 = vmatprep.subr.mxu0 0.0
        %1855 = vmatpush1.msra.mxu0 0.0
        %1856 = vmatprep.subr.mxu0 0.0
        %1857 = vmatpush1.msra.mxu0 0.0
        %1858 = vmatprep.subr.mxu0 0.0
        %1859 = vmatpush1.msra.mxu0 0.0
        %1860 = vmatprep.subr.mxu0 0.0
        %1861 = vmatpush1.msra.mxu0 0.0
        %1862 = vmatprep.mubr.f32.mxu0 0.0
        %1863 = vmatmul.mubr.f32.gmra.mrb[0].mxu0 %v1793
        %v1864 = vpop.f32.mrb[0].mxu0
        %v1865 = vadd.f32 0.0, %v1864
        %v1866 = vpop.f32.mrb[0].mxu0
        %1867 = vmatprep.mubr.f32.mxu0 0.0
        %1868 = vmatmul.mubr.f32.gmra.mrb[0].mxu0 %v1796
        %v1869 = vpop.f32.mrb[0].mxu0
        %v1870 = vadd.f32 0.0, %v1869
        %v1871 = vpop.f32.mrb[0].mxu0
        %1872 = vdwg.mxu0
        %v1874 = vsel %vm1137, %v1865, 0
        %v1877 = vsel %vm1137, %v1870, 0
        %1879 = vmatprep.subr.mxu0 0.0
        %1880 = vmatpush1.msra.mxu0 %v927
        %1881 = vmatprep.subr.mxu0 0.0
        %1882 = vmatpush1.msra.mxu0 0.0
        %1883 = vmatprep.subr.mxu0 0.0
        %1884 = vmatpush1.msra.mxu0 0.0
        %1885 = vmatprep.subr.mxu0 0.0
        %1886 = vmatpush1.msra.mxu0 0.0
        %1887 = vmatprep.subr.mxu0 0.0
        %1888 = vmatpush1.msra.mxu0 0.0
        %1889 = vmatprep.subr.mxu0 0.0
        %1890 = vmatpush1.msra.mxu0 0.0
        %1891 = vmatprep.subr.mxu0 0.0
        %1892 = vmatpush1.msra.mxu0 0.0
        %1893 = vmatprep.subr.mxu0 0.0
        %1894 = vmatpush1.msra.mxu0 0.0
        %1895 = vmatprep.subr.mxu0 0.0
        %1896 = vmatpush1.msra.mxu0 0.0
        %1897 = vmatprep.subr.mxu0 0.0
        %1898 = vmatpush1.msra.mxu0 0.0
        %1899 = vmatprep.subr.mxu0 0.0
        %1900 = vmatpush1.msra.mxu0 0.0
        %1901 = vmatprep.subr.mxu0 0.0
        %1902 = vmatpush1.msra.mxu0 0.0
        %1903 = vmatprep.subr.mxu0 0.0
        %1904 = vmatpush1.msra.mxu0 0.0
        %1905 = vmatprep.subr.mxu0 0.0
        %1906 = vmatpush1.msra.mxu0 0.0
        %1907 = vmatprep.subr.mxu0 0.0
        %1908 = vmatpush1.msra.mxu0 0.0
        %1909 = vmatprep.subr.mxu0 0.0
        %1910 = vmatpush1.msra.mxu0 0.0
        %1911 = vmatprep.subr.mxu0 0.0
        %1912 = vmatpush1.msra.mxu0 0.0
        %1913 = vmatprep.subr.mxu0 0.0
        %1914 = vmatpush1.msra.mxu0 0.0
        %1915 = vmatprep.subr.mxu0 0.0
        %1916 = vmatpush1.msra.mxu0 0.0
        %1917 = vmatprep.subr.mxu0 0.0
        %1918 = vmatpush1.msra.mxu0 0.0
        %1919 = vmatprep.subr.mxu0 0.0
        %1920 = vmatpush1.msra.mxu0 0.0
        %1921 = vmatprep.subr.mxu0 0.0
        %1922 = vmatpush1.msra.mxu0 0.0
        %1923 = vmatprep.subr.mxu0 0.0
        %1924 = vmatpush1.msra.mxu0 0.0
        %1925 = vmatprep.subr.mxu0 0.0
        %1926 = vmatpush1.msra.mxu0 0.0
        %1927 = vmatprep.subr.mxu0 0.0
        %1928 = vmatpush1.msra.mxu0 0.0
        %1929 = vmatprep.subr.mxu0 0.0
        %1930 = vmatpush1.msra.mxu0 0.0
        %1931 = vmatprep.subr.mxu0 0.0
        %1932 = vmatpush1.msra.mxu0 0.0
        %1933 = vmatprep.subr.mxu0 0.0
        %1934 = vmatpush1.msra.mxu0 0.0
        %1935 = vmatprep.subr.mxu0 0.0
        %1936 = vmatpush1.msra.mxu0 0.0
        %1937 = vmatprep.subr.mxu0 0.0
        %1938 = vmatpush1.msra.mxu0 0.0
        %1939 = vmatprep.subr.mxu0 0.0
        %1940 = vmatpush1.msra.mxu0 0.0
        %1941 = vmatprep.subr.mxu0 0.0
        %1942 = vmatpush1.msra.mxu0 0.0
        %1943 = vmatprep.mubr.f32.mxu0 0.0
        %1944 = vmatmul.mubr.f32.gmra.mrb[0].mxu0 %v1874
        %v1945 = vpop.f32.mrb[0].mxu0
        %v1946 = vadd.f32 0.0, %v1945
        %v1947 = vpop.f32.mrb[0].mxu0
        %1948 = vmatprep.mubr.f32.mxu0 0.0
        %1949 = vmatmul.mubr.f32.gmra.mrb[0].mxu0 %v1877
        %v1950 = vpop.f32.mrb[0].mxu0
        %v1951 = vadd.f32 0.0, %v1950
        %v1952 = vpop.f32.mrb[0].mxu0
        %1953 = vdwg.mxu0
        %v1954 = vadd.f32 %v1672, %v1946
        %v1955 = vadd.f32 %v1677, %v1951
        %1956 = vrot.lane.b32.xlu0 %v1126, 40
        %v1957 = vpop.permute.xlu0 %1956
        %1958 = vrot.lane.b32.xlu0 %v1127, 40
        %v1959 = vpop.permute.xlu0 %1958
        %1960 = vrot.lane.b32.xlu0 %v1030, 72
        %v1961 = vpop.permute.xlu0 %1960
        %v1962 = vsel %vm1137, %v1957, 0
        %v1964 = vsel %vm1137, %v1959, 0
        %v1966 = vsel %vm1137, %v1961, 0
        %1968 = vmatprep.subr.mxu0 0.0
        %1969 = vmatpush1.xpose.msra.mxu0 %v1966
        %1970 = vmatprep.subr.mxu0 0.0
        %1971 = vmatpush1.xpose.msra.mxu0 0.0
        %1972 = vmatprep.subr.mxu0 0.0
        %1973 = vmatpush1.xpose.msra.mxu0 0.0
        %1974 = vmatprep.subr.mxu0 0.0
        %1975 = vmatpush1.xpose.msra.mxu0 0.0
        %1976 = vmatprep.subr.mxu0 0.0
        %1977 = vmatpush1.xpose.msra.mxu0 0.0
        %1978 = vmatprep.subr.mxu0 0.0
        %1979 = vmatpush1.xpose.msra.mxu0 0.0
        %1980 = vmatprep.subr.mxu0 0.0
        %1981 = vmatpush1.xpose.msra.mxu0 0.0
        %1982 = vmatprep.subr.mxu0 0.0
        %1983 = vmatpush1.xpose.msra.mxu0 0.0
        %1984 = vmatprep.subr.mxu0 0.0
        %1985 = vmatpush1.xpose.msra.mxu0 0.0
        %1986 = vmatprep.subr.mxu0 0.0
        %1987 = vmatpush1.xpose.msra.mxu0 0.0
        %1988 = vmatprep.subr.mxu0 0.0
        %1989 = vmatpush1.xpose.msra.mxu0 0.0
        %1990 = vmatprep.subr.mxu0 0.0
        %1991 = vmatpush1.xpose.msra.mxu0 0.0
        %1992 = vmatprep.subr.mxu0 0.0
        %1993 = vmatpush1.xpose.msra.mxu0 0.0
        %1994 = vmatprep.subr.mxu0 0.0
        %1995 = vmatpush1.xpose.msra.mxu0 0.0
        %1996 = vmatprep.subr.mxu0 0.0
        %1997 = vmatpush1.xpose.msra.mxu0 0.0
        %1998 = vmatprep.subr.mxu0 0.0
        %1999 = vmatpush1.xpose.msra.mxu0 0.0
        %2000 = vmatprep.subr.mxu0 0.0
        %2001 = vmatpush1.xpose.msra.mxu0 0.0
        %2002 = vmatprep.subr.mxu0 0.0
        %2003 = vmatpush1.xpose.msra.mxu0 0.0
        %2004 = vmatprep.subr.mxu0 0.0
        %2005 = vmatpush1.xpose.msra.mxu0 0.0
        %2006 = vmatprep.subr.mxu0 0.0
        %2007 = vmatpush1.xpose.msra.mxu0 0.0
        %2008 = vmatprep.subr.mxu0 0.0
        %2009 = vmatpush1.xpose.msra.mxu0 0.0
        %2010 = vmatprep.subr.mxu0 0.0
        %2011 = vmatpush1.xpose.msra.mxu0 0.0
        %2012 = vmatprep.subr.mxu0 0.0
        %2013 = vmatpush1.xpose.msra.mxu0 0.0
        %2014 = vmatprep.subr.mxu0 0.0
        %2015 = vmatpush1.xpose.msra.mxu0 0.0
        %2016 = vmatprep.subr.mxu0 0.0
        %2017 = vmatpush1.xpose.msra.mxu0 0.0
        %2018 = vmatprep.subr.mxu0 0.0
        %2019 = vmatpush1.xpose.msra.mxu0 0.0
        %2020 = vmatprep.subr.mxu0 0.0
        %2021 = vmatpush1.xpose.msra.mxu0 0.0
        %2022 = vmatprep.subr.mxu0 0.0
        %2023 = vmatpush1.xpose.msra.mxu0 0.0
        %2024 = vmatprep.subr.mxu0 0.0
        %2025 = vmatpush1.xpose.msra.mxu0 0.0
        %2026 = vmatprep.subr.mxu0 0.0
        %2027 = vmatpush1.xpose.msra.mxu0 0.0
        %2028 = vmatprep.subr.mxu0 0.0
        %2029 = vmatpush1.xpose.msra.mxu0 0.0
        %2030 = vmatprep.subr.mxu0 0.0
        %2031 = vmatpush1.xpose.msra.mxu0 0.0
        %2032 = vmatprep.mubr.f32.mxu0 0.0
        %2033 = vmatmul.mubr.f32.gmra.mrb[0].mxu0 %v1962
        %v2034 = vpop.f32.mrb[0].mxu0
        %v2035 = vadd.f32 %v916, %v2034
        %v2036 = vpop.f32.mrb[0].mxu0
        %2037 = vmatprep.mubr.f32.mxu0 0.0
        %2038 = vmatmul.mubr.f32.gmra.mrb[0].mxu0 %v1964
        %v2039 = vpop.f32.mrb[0].mxu0
        %v2040 = vadd.f32 %v916, %v2039
        %v2041 = vpop.f32.mrb[0].mxu0
        %2042 = vdwg.mxu0
        %v2043 = vsel %vm1137, %v2035, -inf
        %2044 = vmax.xlane.f32.xlu0 %v2043
        %v2045 = vpop.xlane.xlu0 %2044
        %v2046 = vsel %vm1137, %v2040, -inf
        %2047 = vmax.xlane.f32.xlu0 %v2046
        %v2048 = vpop.xlane.xlu0 %2047
        %v2049 = vsub.f32 %v2035, %v2045
        %v2050 = vsub.f32 %v2040, %v2048
        %v2051 = vmul.f32 %v2049, 1.442695
        %v2052 = vpow.pop %v2051
        %v2053 = vmul.f32 %v2050, 1.442695
        %v2054 = vpow.pop %v2053
        %v2055 = vsel %vm1137, %v2052, 0.0
        %2056 = vadd.xlane.f32.xlu0 %v2055
        %v2057 = vpop.xlane.xlu0 %2056
        %v2058 = vsel %vm1137, %v2054, 0.0
        %2059 = vadd.xlane.f32.xlu0 %v2058
        %v2060 = vpop.xlane.xlu0 %2059
        %v2061 = vrcp.pop %v2057
        %v2062 = vrcp.pop %v2060
        %v2063 = vmul.f32 %v2052, %v2061
        %v2064 = vmul.f32 %v2054, %v2062
        %2065 = vrot.lane.b32.xlu0 %v1030, 40
        %v2066 = vpop.permute.xlu0 %2065
        %v2069 = vsel %vm1137, %v2063, 0
        %v2072 = vsel %vm1137, %v2064, 0
        %2074 = vmatprep.subr.mxu0 0.0
        %2075 = vmatpush1.msra.mxu0 %v2066
        %2076 = vmatprep.subr.mxu0 0.0
        %2077 = vmatpush1.msra.mxu0 0.0
        %2078 = vmatprep.subr.mxu0 0.0
        %2079 = vmatpush1.msra.mxu0 0.0
        %2080 = vmatprep.subr.mxu0 0.0
        %2081 = vmatpush1.msra.mxu0 0.0
        %2082 = vmatprep.subr.mxu0 0.0
        %2083 = vmatpush1.msra.mxu0 0.0
        %2084 = vmatprep.subr.mxu0 0.0
        %2085 = vmatpush1.msra.mxu0 0.0
        %2086 = vmatprep.subr.mxu0 0.0
        %2087 = vmatpush1.msra.mxu0 0.0
        %2088 = vmatprep.subr.mxu0 0.0
        %2089 = vmatpush1.msra.mxu0 0.0
        %2090 = vmatprep.subr.mxu0 0.0
        %2091 = vmatpush1.msra.mxu0 0.0
        %2092 = vmatprep.subr.mxu0 0.0
        %2093 = vmatpush1.msra.mxu0 0.0
        %2094 = vmatprep.subr.mxu0 0.0
        %2095 = vmatpush1.msra.mxu0 0.0
        %2096 = vmatprep.subr.mxu0 0.0
        %2097 = vmatpush1.msra.mxu0 0.0
        %2098 = vmatprep.subr.mxu0 0.0
        %2099 = vmatpush1.msra.mxu0 0.0
        %2100 = vmatprep.subr.mxu0 0.0
        %2101 = vmatpush1.msra.mxu0 0.0
        %2102 = vmatprep.subr.mxu0 0.0
        %2103 = vmatpush1.msra.mxu0 0.0
        %2104 = vmatprep.subr.mxu0 0.0
        %2105 = vmatpush1.msra.mxu0 0.0
        %2106 = vmatprep.subr.mxu0 0.0
        %2107 = vmatpush1.msra.mxu0 0.0
        %2108 = vmatprep.subr.mxu0 0.0
        %2109 = vmatpush1.msra.mxu0 0.0
        %2110 = vmatprep.subr.mxu0 0.0
        %2111 = vmatpush1.msra.mxu0 0.0
        %2112 = vmatprep.subr.mxu0 0.0
        %2113 = vmatpush1.msra.mxu0 0.0
        %2114 = vmatprep.subr.mxu0 0.0
        %2115 = vmatpush1.msra.mxu0 0.0
        %2116 = vmatprep.subr.mxu0 0.0
        %2117 = vmatpush1.msra.mxu0 0.0
        %2118 = vmatprep.subr.mxu0 0.0
        %2119 = vmatpush1.msra.mxu0 0.0
        %2120 = vmatprep.subr.mxu0 0.0
        %2121 = vmatpush1.msra.mxu0 0.0
        %2122 = vmatprep.subr.mxu0 0.0
        %2123 = vmatpush1.msra.mxu0 0.0
        %2124 = vmatprep.subr.mxu0 0.0
        %2125 = vmatpush1.msra.mxu0 0.0
        %2126 = vmatprep.subr.mxu0 0.0
        %2127 = vmatpush1.msra.mxu0 0.0
        %2128 = vmatprep.subr.mxu0 0.0
        %2129 = vmatpush1.msra.mxu0 0.0
        %2130 = vmatprep.subr.mxu0 0.0
        %2131 = vmatpush1.msra.mxu0 0.0
        %2132 = vmatprep.subr.mxu0 0.0
        %2133 = vmatpush1.msra.mxu0 0.0
        %2134 = vmatprep.subr.mxu0 0.0
        %2135 = vmatpush1.msra.mxu0 0.0
        %2136 = vmatprep.subr.mxu0 0.0
        %2137 = vmatpush1.msra.mxu0 0.0
        %2138 = vmatprep.mubr.f32.mxu0 0.0
        %2139 = vmatmul.mubr.f32.gmra.mrb[0].mxu0 %v2069
        %v2140 = vpop.f32.mrb[0].mxu0
        %v2141 = vadd.f32 0.0, %v2140
        %v2142 = vpop.f32.mrb[0].mxu0
        %2143 = vmatprep.mubr.f32.mxu0 0.0
        %2144 = vmatmul.mubr.f32.gmra.mrb[0].mxu0 %v2072
        %v2145 = vpop.f32.mrb[0].mxu0
        %v2146 = vadd.f32 0.0, %v2145
        %v2147 = vpop.f32.mrb[0].mxu0
        %2148 = vdwg.mxu0
        %v2150 = vsel %vm1137, %v2141, 0
        %v2153 = vsel %vm1137, %v2146, 0
        %2155 = vmatprep.subr.mxu0 0.0
        %2156 = vmatpush1.msra.mxu0 %v928
        %2157 = vmatprep.subr.mxu0 0.0
        %2158 = vmatpush1.msra.mxu0 0.0
        %2159 = vmatprep.subr.mxu0 0.0
        %2160 = vmatpush1.msra.mxu0 0.0
        %2161 = vmatprep.subr.mxu0 0.0
        %2162 = vmatpush1.msra.mxu0 0.0
        %2163 = vmatprep.subr.mxu0 0.0
        %2164 = vmatpush1.msra.mxu0 0.0
        %2165 = vmatprep.subr.mxu0 0.0
        %2166 = vmatpush1.msra.mxu0 0.0
        %2167 = vmatprep.subr.mxu0 0.0
        %2168 = vmatpush1.msra.mxu0 0.0
        %2169 = vmatprep.subr.mxu0 0.0
        %2170 = vmatpush1.msra.mxu0 0.0
        %2171 = vmatprep.subr.mxu0 0.0
        %2172 = vmatpush1.msra.mxu0 0.0
        %2173 = vmatprep.subr.mxu0 0.0
        %2174 = vmatpush1.msra.mxu0 0.0
        %2175 = vmatprep.subr.mxu0 0.0
        %2176 = vmatpush1.msra.mxu0 0.0
        %2177 = vmatprep.subr.mxu0 0.0
        %2178 = vmatpush1.msra.mxu0 0.0
        %2179 = vmatprep.subr.mxu0 0.0
        %2180 = vmatpush1.msra.mxu0 0.0
        %2181 = vmatprep.subr.mxu0 0.0
        %2182 = vmatpush1.msra.mxu0 0.0
        %2183 = vmatprep.subr.mxu0 0.0
        %2184 = vmatpush1.msra.mxu0 0.0
        %2185 = vmatprep.subr.mxu0 0.0
        %2186 = vmatpush1.msra.mxu0 0.0
        %2187 = vmatprep.subr.mxu0 0.0
        %2188 = vmatpush1.msra.mxu0 0.0
        %2189 = vmatprep.subr.mxu0 0.0
        %2190 = vmatpush1.msra.mxu0 0.0
        %2191 = vmatprep.subr.mxu0 0.0
        %2192 = vmatpush1.msra.mxu0 0.0
        %2193 = vmatprep.subr.mxu0 0.0
        %2194 = vmatpush1.msra.mxu0 0.0
        %2195 = vmatprep.subr.mxu0 0.0
        %2196 = vmatpush1.msra.mxu0 0.0
        %2197 = vmatprep.subr.mxu0 0.0
        %2198 = vmatpush1.msra.mxu0 0.0
        %2199 = vmatprep.subr.mxu0 0.0
        %2200 = vmatpush1.msra.mxu0 0.0
        %2201 = vmatprep.subr.mxu0 0.0
        %2202 = vmatpush1.msra.mxu0 0.0
        %2203 = vmatprep.subr.mxu0 0.0
        %2204 = vmatpush1.msra.mxu0 0.0
        %2205 = vmatprep.subr.mxu0 0.0
        %2206 = vmatpush1.msra.mxu0 0.0
        %2207 = vmatprep.subr.mxu0 0.0
        %2208 = vmatpush1.msra.mxu0 0.0
        %2209 = vmatprep.subr.mxu0 0.0
        %2210 = vmatpush1.msra.mxu0 0.0
        %2211 = vmatprep.subr.mxu0 0.0
        %2212 = vmatpush1.msra.mxu0 0.0
        %2213 = vmatprep.subr.mxu0 0.0
        %2214 = vmatpush1.msra.mxu0 0.0
        %2215 = vmatprep.subr.mxu0 0.0
        %2216 = vmatpush1.msra.mxu0 0.0
        %2217 = vmatprep.subr.mxu0 0.0
        %2218 = vmatpush1.msra.mxu0 0.0
        %2219 = vmatprep.mubr.f32.mxu0 0.0
        %2220 = vmatmul.mubr.f32.gmra.mrb[0].mxu0 %v2150
        %v2221 = vpop.f32.mrb[0].mxu0
        %v2222 = vadd.f32 0.0, %v2221
        %v2223 = vpop.f32.mrb[0].mxu0
        %2224 = vmatprep.mubr.f32.mxu0 0.0
        %2225 = vmatmul.mubr.f32.gmra.mrb[0].mxu0 %v2153
        %v2226 = vpop.f32.mrb[0].mxu0
        %v2227 = vadd.f32 0.0, %v2226
        %v2228 = vpop.f32.mrb[0].mxu0
        %2229 = vdwg.mxu0
        %v2230 = vadd.f32 %v1954, %v2222
        %v2231 = vadd.f32 %v1955, %v2227
        %v2233 = vlaneseq
        %v2234 = vshrl.u32 %v2233, 7
        %v2235 = vsub.s32 0, %v2234
        %v2236 = vrot.slane %v929, %v2235
        %v2238 = vadd.f32 %v2230, %v2236
        %v2239 = vadd.f32 %v2231, %v2236
        %v2240 = vadd.f32 %v2238, %v902
        %v2241 = vadd.f32 %v2239, %v903
        %v2242 = vsel %vm959, %v2240, 0.0
        %2243 = vadd.xlane.f32.xlu0 %v2242
        %v2244 = vpop.xlane.xlu0 %2243
        %v2245 = vsel %vm959, %v2241, 0.0
        %2246 = vadd.xlane.f32.xlu0 %v2245
        %v2247 = vpop.xlane.xlu0 %2246
        %v2248 = vrcp.pop 32.0
        %v2249 = vmul.f32 %v2244, %v2248
        %v2250 = vmul.f32 %v2247, %v2248
        %v2251 = vsub.f32 %v2240, %v2249
        %v2252 = vsub.f32 %v2241, %v2250
        %v2253 = vmul.f32 %v2251, %v2251
        %v2254 = vmul.f32 %v2252, %v2252
        %v2255 = vsel %vm959, %v2253, 0.0
        %2256 = vadd.xlane.f32.xlu0 %v2255
        %v2257 = vpop.xlane.xlu0 %2256
        %v2258 = vsel %vm959, %v2254, 0.0
        %2259 = vadd.xlane.f32.xlu0 %v2258
        %v2260 = vpop.xlane.xlu0 %2259
        %v2261 = vmul.f32 %v2257, %v2248
        %v2262 = vmul.f32 %v2260, %v2248
        %v2263 = vadd.f32 %v2261, 1e-12
        %v2264 = vadd.f32 %v2262, 1e-12
        %v2265 = vrsqrt.pop %v2263
        %v2266 = vrsqrt.pop %v2264
        %v2267 = vmul.f32 %v2251, %v2265
        %v2268 = vmul.f32 %v2252, %v2266
        %v2270 = vlaneseq
        %v2271 = vshrl.u32 %v2270, 7
        %v2272 = vsub.s32 0, %v2271
        %v2273 = vrot.slane %v930, %v2272
        %v2275 = vmul.f32 %v2267, %v2273
        %v2276 = vmul.f32 %v2268, %v2273
        %v2278 = vlaneseq
        %v2279 = vshrl.u32 %v2278, 7
        %v2280 = vsub.s32 0, %v2279
        %v2281 = vrot.slane %v931, %v2280
        %v2283 = vadd.f32 %v2275, %v2281
        %v2284 = vadd.f32 %v2276, %v2281
        %v2286 = vsel %vm1137, %v1033, 0
        %v2289 = vsel %vm1137, %v1118, 0
        %2291 = vmatprep.subr.mxu0 0.0
        %2292 = vmatpush1.xpose.msra.mxu0 %v2289
        %2293 = vmatprep.subr.mxu0 0.0
        %2294 = vmatpush1.xpose.msra.mxu0 0.0
        %2295 = vmatprep.subr.mxu0 0.0
        %2296 = vmatpush1.xpose.msra.mxu0 0.0
        %2297 = vmatprep.subr.mxu0 0.0
        %2298 = vmatpush1.xpose.msra.mxu0 0.0
        %2299 = vmatprep.subr.mxu0 0.0
        %2300 = vmatpush1.xpose.msra.mxu0 0.0
        %2301 = vmatprep.subr.mxu0 0.0
        %2302 = vmatpush1.xpose.msra.mxu0 0.0
        %2303 = vmatprep.subr.mxu0 0.0
        %2304 = vmatpush1.xpose.msra.mxu0 0.0
        %2305 = vmatprep.subr.mxu0 0.0
        %2306 = vmatpush1.xpose.msra.mxu0 0.0
        %2307 = vmatprep.subr.mxu0 0.0
        %2308 = vmatpush1.xpose.msra.mxu0 0.0
        %2309 = vmatprep.subr.mxu0 0.0
        %2310 = vmatpush1.xpose.msra.mxu0 0.0
        %2311 = vmatprep.subr.mxu0 0.0
        %2312 = vmatpush1.xpose.msra.mxu0 0.0
        %2313 = vmatprep.subr.mxu0 0.0
        %2314 = vmatpush1.xpose.msra.mxu0 0.0
        %2315 = vmatprep.subr.mxu0 0.0
        %2316 = vmatpush1.xpose.msra.mxu0 0.0
        %2317 = vmatprep.subr.mxu0 0.0
        %2318 = vmatpush1.xpose.msra.mxu0 0.0
        %2319 = vmatprep.subr.mxu0 0.0
        %2320 = vmatpush1.xpose.msra.mxu0 0.0
        %2321 = vmatprep.subr.mxu0 0.0
        %2322 = vmatpush1.xpose.msra.mxu0 0.0
        %2323 = vmatprep.subr.mxu0 0.0
        %2324 = vmatpush1.xpose.msra.mxu0 0.0
        %2325 = vmatprep.subr.mxu0 0.0
        %2326 = vmatpush1.xpose.msra.mxu0 0.0
        %2327 = vmatprep.subr.mxu0 0.0
        %2328 = vmatpush1.xpose.msra.mxu0 0.0
        %2329 = vmatprep.subr.mxu0 0.0
        %2330 = vmatpush1.xpose.msra.mxu0 0.0
        %2331 = vmatprep.subr.mxu0 0.0
        %2332 = vmatpush1.xpose.msra.mxu0 0.0
        %2333 = vmatprep.subr.mxu0 0.0
        %2334 = vmatpush1.xpose.msra.mxu0 0.0
        %2335 = vmatprep.subr.mxu0 0.0
        %2336 = vmatpush1.xpose.msra.mxu0 0.0
        %2337 = vmatprep.subr.mxu0 0.0
        %2338 = vmatpush1.xpose.msra.mxu0 0.0
        %2339 = vmatprep.subr.mxu0 0.0
        %2340 = vmatpush1.xpose.msra.mxu0 0.0
        %2341 = vmatprep.subr.mxu0 0.0
        %2342 = vmatpush1.xpose.msra.mxu0 0.0
        %2343 = vmatprep.subr.mxu0 0.0
        %2344 = vmatpush1.xpose.msra.mxu0 0.0
        %2345 = vmatprep.subr.mxu0 0.0
        %2346 = vmatpush1.xpose.msra.mxu0 0.0
        %2347 = vmatprep.subr.mxu0 0.0
        %2348 = vmatpush1.xpose.msra.mxu0 0.0
        %2349 = vmatprep.subr.mxu0 0.0
        %2350 = vmatpush1.xpose.msra.mxu0 0.0
        %2351 = vmatprep.subr.mxu0 0.0
        %2352 = vmatpush1.xpose.msra.mxu0 0.0
        %2353 = vmatprep.subr.mxu0 0.0
        %2354 = vmatpush1.xpose.msra.mxu0 0.0
        %2355 = vmatprep.mubr.f32.mxu0 0.0
        %2356 = vmatmul.mubr.f32.gmra.mrb[0].mxu0 %v2286
        %v2357 = vpop.f32.mrb[0].mxu0
        %v2358 = vadd.f32 %v909, %v2357
        %v2359 = vpop.f32.mrb[0].mxu0
        %2360 = vdwg.mxu0
        %v2361 = vsel %vm1137, %v2358, -inf
        %2362 = vmax.xlane.f32.xlu0 %v2361
        %v2363 = vpop.xlane.xlu0 %2362
        %v2364 = vsub.f32 %v2358, %v2363
        %v2365 = vmul.f32 %v2364, 1.442695
        %v2366 = vpow.pop %v2365
        %v2367 = vsel %vm1137, %v2366, 0.0
        %2368 = vadd.xlane.f32.xlu0 %v2367
        %v2369 = vpop.xlane.xlu0 %2368
        %v2370 = vrcp.pop %v2369
        %v2371 = vmul.f32 %v2366, %v2370
        %2372 = vrot.lane.b32.xlu0 %v1118, 96
        %v2373 = vpop.permute.xlu0 %2372
        %v2376 = vsel %vm1137, %v2371, 0
        %2378 = vmatprep.subr.mxu0 0.0
        %2379 = vmatpush1.msra.mxu0 %v2373
        %2380 = vmatprep.subr.mxu0 0.0
        %2381 = vmatpush1.msra.mxu0 0.0
        %2382 = vmatprep.subr.mxu0 0.0
        %2383 = vmatpush1.msra.mxu0 0.0
        %2384 = vmatprep.subr.mxu0 0.0
        %2385 = vmatpush1.msra.mxu0 0.0
        %2386 = vmatprep.subr.mxu0 0.0
        %2387 = vmatpush1.msra.mxu0 0.0
        %2388 = vmatprep.subr.mxu0 0.0
        %2389 = vmatpush1.msra.mxu0 0.0
        %2390 = vmatprep.subr.mxu0 0.0
        %2391 = vmatpush1.msra.mxu0 0.0
        %2392 = vmatprep.subr.mxu0 0.0
        %2393 = vmatpush1.msra.mxu0 0.0
        %2394 = vmatprep.subr.mxu0 0.0
        %2395 = vmatpush1.msra.mxu0 0.0
        %2396 = vmatprep.subr.mxu0 0.0
        %2397 = vmatpush1.msra.mxu0 0.0
        %2398 = vmatprep.subr.mxu0 0.0
        %2399 = vmatpush1.msra.mxu0 0.0
        %2400 = vmatprep.subr.mxu0 0.0
        %2401 = vmatpush1.msra.mxu0 0.0
        %2402 = vmatprep.subr.mxu0 0.0
        %2403 = vmatpush1.msra.mxu0 0.0
        %2404 = vmatprep.subr.mxu0 0.0
        %2405 = vmatpush1.msra.mxu0 0.0
        %2406 = vmatprep.subr.mxu0 0.0
        %2407 = vmatpush1.msra.mxu0 0.0
        %2408 = vmatprep.subr.mxu0 0.0
        %2409 = vmatpush1.msra.mxu0 0.0
        %2410 = vmatprep.subr.mxu0 0.0
        %2411 = vmatpush1.msra.mxu0 0.0
        %2412 = vmatprep.subr.mxu0 0.0
        %2413 = vmatpush1.msra.mxu0 0.0
        %2414 = vmatprep.subr.mxu0 0.0
        %2415 = vmatpush1.msra.mxu0 0.0
        %2416 = vmatprep.subr.mxu0 0.0
        %2417 = vmatpush1.msra.mxu0 0.0
        %2418 = vmatprep.subr.mxu0 0.0
        %2419 = vmatpush1.msra.mxu0 0.0
        %2420 = vmatprep.subr.mxu0 0.0
        %2421 = vmatpush1.msra.mxu0 0.0
        %2422 = vmatprep.subr.mxu0 0.0
        %2423 = vmatpush1.msra.mxu0 0.0
        %2424 = vmatprep.subr.mxu0 0.0
        %2425 = vmatpush1.msra.mxu0 0.0
        %2426 = vmatprep.subr.mxu0 0.0
        %2427 = vmatpush1.msra.mxu0 0.0
        %2428 = vmatprep.subr.mxu0 0.0
        %2429 = vmatpush1.msra.mxu0 0.0
        %2430 = vmatprep.subr.mxu0 0.0
        %2431 = vmatpush1.msra.mxu0 0.0
        %2432 = vmatprep.subr.mxu0 0.0
        %2433 = vmatpush1.msra.mxu0 0.0
        %2434 = vmatprep.subr.mxu0 0.0
        %2435 = vmatpush1.msra.mxu0 0.0
        %2436 = vmatprep.subr.mxu0 0.0
        %2437 = vmatpush1.msra.mxu0 0.0
        %2438 = vmatprep.subr.mxu0 0.0
        %2439 = vmatpush1.msra.mxu0 0.0
        %2440 = vmatprep.subr.mxu0 0.0
        %2441 = vmatpush1.msra.mxu0 0.0
        %2442 = vmatprep.mubr.f32.mxu0 0.0
        %2443 = vmatmul.mubr.f32.gmra.mrb[0].mxu0 %v2376
        %v2444 = vpop.f32.mrb[0].mxu0
        %v2445 = vadd.f32 0.0, %v2444
        %v2446 = vpop.f32.mrb[0].mxu0
        %2447 = vdwg.mxu0
        %2448 = vrot.lane.b32.xlu0 %v1033, 120
        %v2449 = vpop.permute.xlu0 %2448
        %2450 = vrot.lane.b32.xlu0 %v1118, 120
        %v2451 = vpop.permute.xlu0 %2450
        %v2452 = vsel %vm1137, %v2449, 0
        %v2454 = vsel %vm1137, %v2451, 0
        %2456 = vmatprep.subr.mxu0 0.0
        %2457 = vmatpush1.xpose.msra.mxu0 %v2454
        %2458 = vmatprep.subr.mxu0 0.0
        %2459 = vmatpush1.xpose.msra.mxu0 0.0
        %2460 = vmatprep.subr.mxu0 0.0
        %2461 = vmatpush1.xpose.msra.mxu0 0.0
        %2462 = vmatprep.subr.mxu0 0.0
        %2463 = vmatpush1.xpose.msra.mxu0 0.0
        %2464 = vmatprep.subr.mxu0 0.0
        %2465 = vmatpush1.xpose.msra.mxu0 0.0
        %2466 = vmatprep.subr.mxu0 0.0
        %2467 = vmatpush1.xpose.msra.mxu0 0.0
        %2468 = vmatprep.subr.mxu0 0.0
        %2469 = vmatpush1.xpose.msra.mxu0 0.0
        %2470 = vmatprep.subr.mxu0 0.0
        %2471 = vmatpush1.xpose.msra.mxu0 0.0
        %2472 = vmatprep.subr.mxu0 0.0
        %2473 = vmatpush1.xpose.msra.mxu0 0.0
        %2474 = vmatprep.subr.mxu0 0.0
        %2475 = vmatpush1.xpose.msra.mxu0 0.0
        %2476 = vmatprep.subr.mxu0 0.0
        %2477 = vmatpush1.xpose.msra.mxu0 0.0
        %2478 = vmatprep.subr.mxu0 0.0
        %2479 = vmatpush1.xpose.msra.mxu0 0.0
        %2480 = vmatprep.subr.mxu0 0.0
        %2481 = vmatpush1.xpose.msra.mxu0 0.0
        %2482 = vmatprep.subr.mxu0 0.0
        %2483 = vmatpush1.xpose.msra.mxu0 0.0
        %2484 = vmatprep.subr.mxu0 0.0
        %2485 = vmatpush1.xpose.msra.mxu0 0.0
        %2486 = vmatprep.subr.mxu0 0.0
        %2487 = vmatpush1.xpose.msra.mxu0 0.0
        %2488 = vmatprep.subr.mxu0 0.0
        %2489 = vmatpush1.xpose.msra.mxu0 0.0
        %2490 = vmatprep.subr.mxu0 0.0
        %2491 = vmatpush1.xpose.msra.mxu0 0.0
        %2492 = vmatprep.subr.mxu0 0.0
        %2493 = vmatpush1.xpose.msra.mxu0 0.0
        %2494 = vmatprep.subr.mxu0 0.0
        %2495 = vmatpush1.xpose.msra.mxu0 0.0
        %2496 = vmatprep.subr.mxu0 0.0
        %2497 = vmatpush1.xpose.msra.mxu0 0.0
        %2498 = vmatprep.subr.mxu0 0.0
        %2499 = vmatpush1.xpose.msra.mxu0 0.0
        %2500 = vmatprep.subr.mxu0 0.0
        %2501 = vmatpush1.xpose.msra.mxu0 0.0
        %2502 = vmatprep.subr.mxu0 0.0
        %2503 = vmatpush1.xpose.msra.mxu0 0.0
        %2504 = vmatprep.subr.mxu0 0.0
        %2505 = vmatpush1.xpose.msra.mxu0 0.0
        %2506 = vmatprep.subr.mxu0 0.0
        %2507 = vmatpush1.xpose.msra.mxu0 0.0
        %2508 = vmatprep.subr.mxu0 0.0
        %2509 = vmatpush1.xpose.msra.mxu0 0.0
        %2510 = vmatprep.subr.mxu0 0.0
        %2511 = vmatpush1.xpose.msra.mxu0 0.0
        %2512 = vmatprep.subr.mxu0 0.0
        %2513 = vmatpush1.xpose.msra.mxu0 0.0
        %2514 = vmatprep.subr.mxu0 0.0
        %2515 = vmatpush1.xpose.msra.mxu0 0.0
        %2516 = vmatprep.subr.mxu0 0.0
        %2517 = vmatpush1.xpose.msra.mxu0 0.0
        %2518 = vmatprep.subr.mxu0 0.0
        %2519 = vmatpush1.xpose.msra.mxu0 0.0
        %2520 = vmatprep.mubr.f32.mxu0 0.0
        %2521 = vmatmul.mubr.f32.gmra.mrb[0].mxu0 %v2452
        %v2522 = vpop.f32.mrb[0].mxu0
        %v2523 = vadd.f32 %v909, %v2522
        %v2524 = vpop.f32.mrb[0].mxu0
        %2525 = vdwg.mxu0
        %v2526 = vsel %vm1137, %v2523, -inf
        %2527 = vmax.xlane.f32.xlu0 %v2526
        %v2528 = vpop.xlane.xlu0 %2527
        %v2529 = vsub.f32 %v2523, %v2528
        %v2530 = vmul.f32 %v2529, 1.442695
        %v2531 = vpow.pop %v2530
        %v2532 = vsel %vm1137, %v2531, 0.0
        %2533 = vadd.xlane.f32.xlu0 %v2532
        %v2534 = vpop.xlane.xlu0 %2533
        %v2535 = vrcp.pop %v2534
        %v2536 = vmul.f32 %v2531, %v2535
        %2537 = vrot.lane.b32.xlu0 %v1118, 88
        %v2538 = vpop.permute.xlu0 %2537
        %v2541 = vsel %vm1137, %v2536, 0
        %2543 = vmatprep.subr.mxu0 0.0
        %2544 = vmatpush1.msra.mxu0 %v2538
        %2545 = vmatprep.subr.mxu0 0.0
        %2546 = vmatpush1.msra.mxu0 0.0
        %2547 = vmatprep.subr.mxu0 0.0
        %2548 = vmatpush1.msra.mxu0 0.0
        %2549 = vmatprep.subr.mxu0 0.0
        %2550 = vmatpush1.msra.mxu0 0.0
        %2551 = vmatprep.subr.mxu0 0.0
        %2552 = vmatpush1.msra.mxu0 0.0
        %2553 = vmatprep.subr.mxu0 0.0
        %2554 = vmatpush1.msra.mxu0 0.0
        %2555 = vmatprep.subr.mxu0 0.0
        %2556 = vmatpush1.msra.mxu0 0.0
        %2557 = vmatprep.subr.mxu0 0.0
        %2558 = vmatpush1.msra.mxu0 0.0
        %2559 = vmatprep.subr.mxu0 0.0
        %2560 = vmatpush1.msra.mxu0 0.0
        %2561 = vmatprep.subr.mxu0 0.0
        %2562 = vmatpush1.msra.mxu0 0.0
        %2563 = vmatprep.subr.mxu0 0.0
        %2564 = vmatpush1.msra.mxu0 0.0
        %2565 = vmatprep.subr.mxu0 0.0
        %2566 = vmatpush1.msra.mxu0 0.0
        %2567 = vmatprep.subr.mxu0 0.0
        %2568 = vmatpush1.msra.mxu0 0.0
        %2569 = vmatprep.subr.mxu0 0.0
        %2570 = vmatpush1.msra.mxu0 0.0
        %2571 = vmatprep.subr.mxu0 0.0
        %2572 = vmatpush1.msra.mxu0 0.0
        %2573 = vmatprep.subr.mxu0 0.0
        %2574 = vmatpush1.msra.mxu0 0.0
        %2575 = vmatprep.subr.mxu0 0.0
        %2576 = vmatpush1.msra.mxu0 0.0
        %2577 = vmatprep.subr.mxu0 0.0
        %2578 = vmatpush1.msra.mxu0 0.0
        %2579 = vmatprep.subr.mxu0 0.0
        %2580 = vmatpush1.msra.mxu0 0.0
        %2581 = vmatprep.subr.mxu0 0.0
        %2582 = vmatpush1.msra.mxu0 0.0
        %2583 = vmatprep.subr.mxu0 0.0
        %2584 = vmatpush1.msra.mxu0 0.0
        %2585 = vmatprep.subr.mxu0 0.0
        %2586 = vmatpush1.msra.mxu0 0.0
        %2587 = vmatprep.subr.mxu0 0.0
        %2588 = vmatpush1.msra.mxu0 0.0
        %2589 = vmatprep.subr.mxu0 0.0
        %2590 = vmatpush1.msra.mxu0 0.0
        %2591 = vmatprep.subr.mxu0 0.0
        %2592 = vmatpush1.msra.mxu0 0.0
        %2593 = vmatprep.subr.mxu0 0.0
        %2594 = vmatpush1.msra.mxu0 0.0
        %2595 = vmatprep.subr.mxu0 0.0
        %2596 = vmatpush1.msra.mxu0 0.0
        %2597 = vmatprep.subr.mxu0 0.0
        %2598 = vmatpush1.msra.mxu0 0.0
        %2599 = vmatprep.subr.mxu0 0.0
        %2600 = vmatpush1.msra.mxu0 0.0
        %2601 = vmatprep.subr.mxu0 0.0
        %2602 = vmatpush1.msra.mxu0 0.0
        %2603 = vmatprep.subr.mxu0 0.0
        %2604 = vmatpush1.msra.mxu0 0.0
        %2605 = vmatprep.subr.mxu0 0.0
        %2606 = vmatpush1.msra.mxu0 0.0
        %2607 = vmatprep.mubr.f32.mxu0 0.0
        %2608 = vmatmul.mubr.f32.gmra.mrb[0].mxu0 %v2541
        %v2609 = vpop.f32.mrb[0].mxu0
        %v2610 = vadd.f32 0.0, %v2609
        %v2611 = vpop.f32.mrb[0].mxu0
        %2612 = vdwg.mxu0
        %v2614 = vsel %vm1137, %v2610, 0
        %2616 = vmatprep.subr.mxu0 0.0
        %2617 = vmatpush1.msra.mxu0 %v919
        %2618 = vmatprep.subr.mxu0 0.0
        %2619 = vmatpush1.msra.mxu0 0.0
        %2620 = vmatprep.subr.mxu0 0.0
        %2621 = vmatpush1.msra.mxu0 0.0
        %2622 = vmatprep.subr.mxu0 0.0
        %2623 = vmatpush1.msra.mxu0 0.0
        %2624 = vmatprep.subr.mxu0 0.0
        %2625 = vmatpush1.msra.mxu0 0.0
        %2626 = vmatprep.subr.mxu0 0.0
        %2627 = vmatpush1.msra.mxu0 0.0
        %2628 = vmatprep.subr.mxu0 0.0
        %2629 = vmatpush1.msra.mxu0 0.0
        %2630 = vmatprep.subr.mxu0 0.0
        %2631 = vmatpush1.msra.mxu0 0.0
        %2632 = vmatprep.subr.mxu0 0.0
        %2633 = vmatpush1.msra.mxu0 0.0
        %2634 = vmatprep.subr.mxu0 0.0
        %2635 = vmatpush1.msra.mxu0 0.0
        %2636 = vmatprep.subr.mxu0 0.0
        %2637 = vmatpush1.msra.mxu0 0.0
        %2638 = vmatprep.subr.mxu0 0.0
        %2639 = vmatpush1.msra.mxu0 0.0
        %2640 = vmatprep.subr.mxu0 0.0
        %2641 = vmatpush1.msra.mxu0 0.0
        %2642 = vmatprep.subr.mxu0 0.0
        %2643 = vmatpush1.msra.mxu0 0.0
        %2644 = vmatprep.subr.mxu0 0.0
        %2645 = vmatpush1.msra.mxu0 0.0
        %2646 = vmatprep.subr.mxu0 0.0
        %2647 = vmatpush1.msra.mxu0 0.0
        %2648 = vmatprep.subr.mxu0 0.0
        %2649 = vmatpush1.msra.mxu0 0.0
        %2650 = vmatprep.subr.mxu0 0.0
        %2651 = vmatpush1.msra.mxu0 0.0
        %2652 = vmatprep.subr.mxu0 0.0
        %2653 = vmatpush1.msra.mxu0 0.0
        %2654 = vmatprep.subr.mxu0 0.0
        %2655 = vmatpush1.msra.mxu0 0.0
        %2656 = vmatprep.subr.mxu0 0.0
        %2657 = vmatpush1.msra.mxu0 0.0
        %2658 = vmatprep.subr.mxu0 0.0
        %2659 = vmatpush1.msra.mxu0 0.0
        %2660 = vmatprep.subr.mxu0 0.0
        %2661 = vmatpush1.msra.mxu0 0.0
        %2662 = vmatprep.subr.mxu0 0.0
        %2663 = vmatpush1.msra.mxu0 0.0
        %2664 = vmatprep.subr.mxu0 0.0
        %2665 = vmatpush1.msra.mxu0 0.0
        %2666 = vmatprep.subr.mxu0 0.0
        %2667 = vmatpush1.msra.mxu0 0.0
        %2668 = vmatprep.subr.mxu0 0.0
        %2669 = vmatpush1.msra.mxu0 0.0
        %2670 = vmatprep.subr.mxu0 0.0
        %2671 = vmatpush1.msra.mxu0 0.0
        %2672 = vmatprep.subr.mxu0 0.0
        %2673 = vmatpush1.msra.mxu0 0.0
        %2674 = vmatprep.subr.mxu0 0.0
        %2675 = vmatpush1.msra.mxu0 0.0
        %2676 = vmatprep.subr.mxu0 0.0
        %2677 = vmatpush1.msra.mxu0 0.0
        %2678 = vmatprep.subr.mxu0 0.0
        %2679 = vmatpush1.msra.mxu0 0.0
        %2680 = vmatprep.mubr.f32.mxu0 0.0
        %2681 = vmatmul.mubr.f32.gmra.mrb[0].mxu0 %v2614
        %v2682 = vpop.f32.mrb[0].mxu0
        %v2683 = vadd.f32 0.0, %v2682
        %v2684 = vpop.f32.mrb[0].mxu0
        %2685 = vdwg.mxu0
        %v2687 = vsel %vm1137, %v2445, 0
        %2689 = vmatprep.subr.mxu0 0.0
        %2690 = vmatpush1.msra.mxu0 %v918
        %2691 = vmatprep.subr.mxu0 0.0
        %2692 = vmatpush1.msra.mxu0 0.0
        %2693 = vmatprep.subr.mxu0 0.0
        %2694 = vmatpush1.msra.mxu0 0.0
        %2695 = vmatprep.subr.mxu0 0.0
        %2696 = vmatpush1.msra.mxu0 0.0
        %2697 = vmatprep.subr.mxu0 0.0
        %2698 = vmatpush1.msra.mxu0 0.0
        %2699 = vmatprep.subr.mxu0 0.0
        %2700 = vmatpush1.msra.mxu0 0.0
        %2701 = vmatprep.subr.mxu0 0.0
        %2702 = vmatpush1.msra.mxu0 0.0
        %2703 = vmatprep.subr.mxu0 0.0
        %2704 = vmatpush1.msra.mxu0 0.0
        %2705 = vmatprep.subr.mxu0 0.0
        %2706 = vmatpush1.msra.mxu0 0.0
        %2707 = vmatprep.subr.mxu0 0.0
        %2708 = vmatpush1.msra.mxu0 0.0
        %2709 = vmatprep.subr.mxu0 0.0
        %2710 = vmatpush1.msra.mxu0 0.0
        %2711 = vmatprep.subr.mxu0 0.0
        %2712 = vmatpush1.msra.mxu0 0.0
        %2713 = vmatprep.subr.mxu0 0.0
        %2714 = vmatpush1.msra.mxu0 0.0
        %2715 = vmatprep.subr.mxu0 0.0
        %2716 = vmatpush1.msra.mxu0 0.0
        %2717 = vmatprep.subr.mxu0 0.0
        %2718 = vmatpush1.msra.mxu0 0.0
        %2719 = vmatprep.subr.mxu0 0.0
        %2720 = vmatpush1.msra.mxu0 0.0
        %2721 = vmatprep.subr.mxu0 0.0
        %2722 = vmatpush1.msra.mxu0 0.0
        %2723 = vmatprep.subr.mxu0 0.0
        %2724 = vmatpush1.msra.mxu0 0.0
        %2725 = vmatprep.subr.mxu0 0.0
        %2726 = vmatpush1.msra.mxu0 0.0
        %2727 = vmatprep.subr.mxu0 0.0
        %2728 = vmatpush1.msra.mxu0 0.0
        %2729 = vmatprep.subr.mxu0 0.0
        %2730 = vmatpush1.msra.mxu0 0.0
        %2731 = vmatprep.subr.mxu0 0.0
        %2732 = vmatpush1.msra.mxu0 0.0
        %2733 = vmatprep.subr.mxu0 0.0
        %2734 = vmatpush1.msra.mxu0 0.0
        %2735 = vmatprep.subr.mxu0 0.0
        %2736 = vmatpush1.msra.mxu0 0.0
        %2737 = vmatprep.subr.mxu0 0.0
        %2738 = vmatpush1.msra.mxu0 0.0
        %2739 = vmatprep.subr.mxu0 0.0
        %2740 = vmatpush1.msra.mxu0 0.0
        %2741 = vmatprep.subr.mxu0 0.0
        %2742 = vmatpush1.msra.mxu0 0.0
        %2743 = vmatprep.subr.mxu0 0.0
        %2744 = vmatpush1.msra.mxu0 0.0
        %2745 = vmatprep.subr.mxu0 0.0
        %2746 = vmatpush1.msra.mxu0 0.0
        %2747 = vmatprep.subr.mxu0 0.0
        %2748 = vmatpush1.msra.mxu0 0.0
        %2749 = vmatprep.subr.mxu0 0.0
        %2750 = vmatpush1.msra.mxu0 0.0
        %2751 = vmatprep.subr.mxu0 0.0
        %2752 = vmatpush1.msra.mxu0 0.0
        %2753 = vmatprep.mubr.f32.mxu0 0.0
        %2754 = vmatmul.mubr.f32.gmra.mrb[0].mxu0 %v2687
        %v2755 = vpop.f32.mrb[0].mxu0
        %v2756 = vadd.f32 %v2683, %v2755
        %v2757 = vpop.f32.mrb[0].mxu0
        %2758 = vdwg.mxu0
        %2759 = vrot.lane.b32.xlu0 %v1033, 112
        %v2760 = vpop.permute.xlu0 %2759
        %2761 = vrot.lane.b32.xlu0 %v1118, 112
        %v2762 = vpop.permute.xlu0 %2761
        %v2763 = vsel %vm1137, %v2760, 0
        %v2765 = vsel %vm1137, %v2762, 0
        %2767 = vmatprep.subr.mxu0 0.0
        %2768 = vmatpush1.xpose.msra.mxu0 %v2765
        %2769 = vmatprep.subr.mxu0 0.0
        %2770 = vmatpush1.xpose.msra.mxu0 0.0
        %2771 = vmatprep.subr.mxu0 0.0
        %2772 = vmatpush1.xpose.msra.mxu0 0.0
        %2773 = vmatprep.subr.mxu0 0.0
        %2774 = vmatpush1.xpose.msra.mxu0 0.0
        %2775 = vmatprep.subr.mxu0 0.0
        %2776 = vmatpush1.xpose.msra.mxu0 0.0
        %2777 = vmatprep.subr.mxu0 0.0
        %2778 = vmatpush1.xpose.msra.mxu0 0.0
        %2779 = vmatprep.subr.mxu0 0.0
        %2780 = vmatpush1.xpose.msra.mxu0 0.0
        %2781 = vmatprep.subr.mxu0 0.0
        %2782 = vmatpush1.xpose.msra.mxu0 0.0
        %2783 = vmatprep.subr.mxu0 0.0
        %2784 = vmatpush1.xpose.msra.mxu0 0.0
        %2785 = vmatprep.subr.mxu0 0.0
        %2786 = vmatpush1.xpose.msra.mxu0 0.0
        %2787 = vmatprep.subr.mxu0 0.0
        %2788 = vmatpush1.xpose.msra.mxu0 0.0
        %2789 = vmatprep.subr.mxu0 0.0
        %2790 = vmatpush1.xpose.msra.mxu0 0.0
        %2791 = vmatprep.subr.mxu0 0.0
        %2792 = vmatpush1.xpose.msra.mxu0 0.0
        %2793 = vmatprep.subr.mxu0 0.0
        %2794 = vmatpush1.xpose.msra.mxu0 0.0
        %2795 = vmatprep.subr.mxu0 0.0
        %2796 = vmatpush1.xpose.msra.mxu0 0.0
        %2797 = vmatprep.subr.mxu0 0.0
        %2798 = vmatpush1.xpose.msra.mxu0 0.0
        %2799 = vmatprep.subr.mxu0 0.0
        %2800 = vmatpush1.xpose.msra.mxu0 0.0
        %2801 = vmatprep.subr.mxu0 0.0
        %2802 = vmatpush1.xpose.msra.mxu0 0.0
        %2803 = vmatprep.subr.mxu0 0.0
        %2804 = vmatpush1.xpose.msra.mxu0 0.0
        %2805 = vmatprep.subr.mxu0 0.0
        %2806 = vmatpush1.xpose.msra.mxu0 0.0
        %2807 = vmatprep.subr.mxu0 0.0
        %2808 = vmatpush1.xpose.msra.mxu0 0.0
        %2809 = vmatprep.subr.mxu0 0.0
        %2810 = vmatpush1.xpose.msra.mxu0 0.0
        %2811 = vmatprep.subr.mxu0 0.0
        %2812 = vmatpush1.xpose.msra.mxu0 0.0
        %2813 = vmatprep.subr.mxu0 0.0
        %2814 = vmatpush1.xpose.msra.mxu0 0.0
        %2815 = vmatprep.subr.mxu0 0.0
        %2816 = vmatpush1.xpose.msra.mxu0 0.0
        %2817 = vmatprep.subr.mxu0 0.0
        %2818 = vmatpush1.xpose.msra.mxu0 0.0
        %2819 = vmatprep.subr.mxu0 0.0
        %2820 = vmatpush1.xpose.msra.mxu0 0.0
        %2821 = vmatprep.subr.mxu0 0.0
        %2822 = vmatpush1.xpose.msra.mxu0 0.0
        %2823 = vmatprep.subr.mxu0 0.0
        %2824 = vmatpush1.xpose.msra.mxu0 0.0
        %2825 = vmatprep.subr.mxu0 0.0
        %2826 = vmatpush1.xpose.msra.mxu0 0.0
        %2827 = vmatprep.subr.mxu0 0.0
        %2828 = vmatpush1.xpose.msra.mxu0 0.0
        %2829 = vmatprep.subr.mxu0 0.0
        %2830 = vmatpush1.xpose.msra.mxu0 0.0
        %2831 = vmatprep.mubr.f32.mxu0 0.0
        %2832 = vmatmul.mubr.f32.gmra.mrb[0].mxu0 %v2763
        %v2833 = vpop.f32.mrb[0].mxu0
        %v2834 = vadd.f32 %v909, %v2833
        %v2835 = vpop.f32.mrb[0].mxu0
        %2836 = vdwg.mxu0
        %v2837 = vsel %vm1137, %v2834, -inf
        %2838 = vmax.xlane.f32.xlu0 %v2837
        %v2839 = vpop.xlane.xlu0 %2838
        %v2840 = vsub.f32 %v2834, %v2839
        %v2841 = vmul.f32 %v2840, 1.442695
        %v2842 = vpow.pop %v2841
        %v2843 = vsel %vm1137, %v2842, 0.0
        %2844 = vadd.xlane.f32.xlu0 %v2843
        %v2845 = vpop.xlane.xlu0 %2844
        %v2846 = vrcp.pop %v2845
        %v2847 = vmul.f32 %v2842, %v2846
        %2848 = vrot.lane.b32.xlu0 %v1118, 80
        %v2849 = vpop.permute.xlu0 %2848
        %v2852 = vsel %vm1137, %v2847, 0
        %2854 = vmatprep.subr.mxu0 0.0
        %2855 = vmatpush1.msra.mxu0 %v2849
        %2856 = vmatprep.subr.mxu0 0.0
        %2857 = vmatpush1.msra.mxu0 0.0
        %2858 = vmatprep.subr.mxu0 0.0
        %2859 = vmatpush1.msra.mxu0 0.0
        %2860 = vmatprep.subr.mxu0 0.0
        %2861 = vmatpush1.msra.mxu0 0.0
        %2862 = vmatprep.subr.mxu0 0.0
        %2863 = vmatpush1.msra.mxu0 0.0
        %2864 = vmatprep.subr.mxu0 0.0
        %2865 = vmatpush1.msra.mxu0 0.0
        %2866 = vmatprep.subr.mxu0 0.0
        %2867 = vmatpush1.msra.mxu0 0.0
        %2868 = vmatprep.subr.mxu0 0.0
        %2869 = vmatpush1.msra.mxu0 0.0
        %2870 = vmatprep.subr.mxu0 0.0
        %2871 = vmatpush1.msra.mxu0 0.0
        %2872 = vmatprep.subr.mxu0 0.0
        %2873 = vmatpush1.msra.mxu0 0.0
        %2874 = vmatprep.subr.mxu0 0.0
        %2875 = vmatpush1.msra.mxu0 0.0
        %2876 = vmatprep.subr.mxu0 0.0
        %2877 = vmatpush1.msra.mxu0 0.0
        %2878 = vmatprep.subr.mxu0 0.0
        %2879 = vmatpush1.msra.mxu0 0.0
        %2880 = vmatprep.subr.mxu0 0.0
        %2881 = vmatpush1.msra.mxu0 0.0
        %2882 = vmatprep.subr.mxu0 0.0
        %2883 = vmatpush1.msra.mxu0 0.0
        %2884 = vmatprep.subr.mxu0 0.0
        %2885 = vmatpush1.msra.mxu0 0.0
        %2886 = vmatprep.subr.mxu0 0.0
        %2887 = vmatpush1.msra.mxu0 0.0
        %2888 = vmatprep.subr.mxu0 0.0
        %2889 = vmatpush1.msra.mxu0 0.0
        %2890 = vmatprep.subr.mxu0 0.0
        %2891 = vmatpush1.msra.mxu0 0.0
        %2892 = vmatprep.subr.mxu0 0.0
        %2893 = vmatpush1.msra.mxu0 0.0
        %2894 = vmatprep.subr.mxu0 0.0
        %2895 = vmatpush1.msra.mxu0 0.0
        %2896 = vmatprep.subr.mxu0 0.0
        %2897 = vmatpush1.msra.mxu0 0.0
        %2898 = vmatprep.subr.mxu0 0.0
        %2899 = vmatpush1.msra.mxu0 0.0
        %2900 = vmatprep.subr.mxu0 0.0
        %2901 = vmatpush1.msra.mxu0 0.0
        %2902 = vmatprep.subr.mxu0 0.0
        %2903 = vmatpush1.msra.mxu0 0.0
        %2904 = vmatprep.subr.mxu0 0.0
        %2905 = vmatpush1.msra.mxu0 0.0
        %2906 = vmatprep.subr.mxu0 0.0
        %2907 = vmatpush1.msra.mxu0 0.0
        %2908 = vmatprep.subr.mxu0 0.0
        %2909 = vmatpush1.msra.mxu0 0.0
        %2910 = vmatprep.subr.mxu0 0.0
        %2911 = vmatpush1.msra.mxu0 0.0
        %2912 = vmatprep.subr.mxu0 0.0
        %2913 = vmatpush1.msra.mxu0 0.0
        %2914 = vmatprep.subr.mxu0 0.0
        %2915 = vmatpush1.msra.mxu0 0.0
        %2916 = vmatprep.subr.mxu0 0.0
        %2917 = vmatpush1.msra.mxu0 0.0
        %2918 = vmatprep.mubr.f32.mxu0 0.0
        %2919 = vmatmul.mubr.f32.gmra.mrb[0].mxu0 %v2852
        %v2920 = vpop.f32.mrb[0].mxu0
        %v2921 = vadd.f32 0.0, %v2920
        %v2922 = vpop.f32.mrb[0].mxu0
        %2923 = vdwg.mxu0
        %v2925 = vsel %vm1137, %v2921, 0
        %2927 = vmatprep.subr.mxu0 0.0
        %2928 = vmatpush1.msra.mxu0 %v920
        %2929 = vmatprep.subr.mxu0 0.0
        %2930 = vmatpush1.msra.mxu0 0.0
        %2931 = vmatprep.subr.mxu0 0.0
        %2932 = vmatpush1.msra.mxu0 0.0
        %2933 = vmatprep.subr.mxu0 0.0
        %2934 = vmatpush1.msra.mxu0 0.0
        %2935 = vmatprep.subr.mxu0 0.0
        %2936 = vmatpush1.msra.mxu0 0.0
        %2937 = vmatprep.subr.mxu0 0.0
        %2938 = vmatpush1.msra.mxu0 0.0
        %2939 = vmatprep.subr.mxu0 0.0
        %2940 = vmatpush1.msra.mxu0 0.0
        %2941 = vmatprep.subr.mxu0 0.0
        %2942 = vmatpush1.msra.mxu0 0.0
        %2943 = vmatprep.subr.mxu0 0.0
        %2944 = vmatpush1.msra.mxu0 0.0
        %2945 = vmatprep.subr.mxu0 0.0
        %2946 = vmatpush1.msra.mxu0 0.0
        %2947 = vmatprep.subr.mxu0 0.0
        %2948 = vmatpush1.msra.mxu0 0.0
        %2949 = vmatprep.subr.mxu0 0.0
        %2950 = vmatpush1.msra.mxu0 0.0
        %2951 = vmatprep.subr.mxu0 0.0
        %2952 = vmatpush1.msra.mxu0 0.0
        %2953 = vmatprep.subr.mxu0 0.0
        %2954 = vmatpush1.msra.mxu0 0.0
        %2955 = vmatprep.subr.mxu0 0.0
        %2956 = vmatpush1.msra.mxu0 0.0
        %2957 = vmatprep.subr.mxu0 0.0
        %2958 = vmatpush1.msra.mxu0 0.0
        %2959 = vmatprep.subr.mxu0 0.0
        %2960 = vmatpush1.msra.mxu0 0.0
        %2961 = vmatprep.subr.mxu0 0.0
        %2962 = vmatpush1.msra.mxu0 0.0
        %2963 = vmatprep.subr.mxu0 0.0
        %2964 = vmatpush1.msra.mxu0 0.0
        %2965 = vmatprep.subr.mxu0 0.0
        %2966 = vmatpush1.msra.mxu0 0.0
        %2967 = vmatprep.subr.mxu0 0.0
        %2968 = vmatpush1.msra.mxu0 0.0
        %2969 = vmatprep.subr.mxu0 0.0
        %2970 = vmatpush1.msra.mxu0 0.0
        %2971 = vmatprep.subr.mxu0 0.0
        %2972 = vmatpush1.msra.mxu0 0.0
        %2973 = vmatprep.subr.mxu0 0.0
        %2974 = vmatpush1.msra.mxu0 0.0
        %2975 = vmatprep.subr.mxu0 0.0
        %2976 = vmatpush1.msra.mxu0 0.0
        %2977 = vmatprep.subr.mxu0 0.0
        %2978 = vmatpush1.msra.mxu0 0.0
        %2979 = vmatprep.subr.mxu0 0.0
        %2980 = vmatpush1.msra.mxu0 0.0
        %2981 = vmatprep.subr.mxu0 0.0
        %2982 = vmatpush1.msra.mxu0 0.0
        %2983 = vmatprep.subr.mxu0 0.0
        %2984 = vmatpush1.msra.mxu0 0.0
        %2985 = vmatprep.subr.mxu0 0.0
        %2986 = vmatpush1.msra.mxu0 0.0
        %2987 = vmatprep.subr.mxu0 0.0
        %2988 = vmatpush1.msra.mxu0 0.0
        %2989 = vmatprep.subr.mxu0 0.0
        %2990 = vmatpush1.msra.mxu0 0.0
        %2991 = vmatprep.mubr.f32.mxu0 0.0
        %2992 = vmatmul.mubr.f32.gmra.mrb[0].mxu0 %v2925
        %v2993 = vpop.f32.mrb[0].mxu0
        %v2994 = vadd.f32 0.0, %v2993
        %v2995 = vpop.f32.mrb[0].mxu0
        %2996 = vdwg.mxu0
        %v2997 = vadd.f32 %v2756, %v2994
        %2998 = vrot.lane.b32.xlu0 %v1033, 104
        %v2999 = vpop.permute.xlu0 %2998
        %3000 = vrot.lane.b32.xlu0 %v1118, 104
        %v3001 = vpop.permute.xlu0 %3000
        %v3002 = vsel %vm1137, %v2999, 0
        %v3004 = vsel %vm1137, %v3001, 0
        %3006 = vmatprep.subr.mxu0 0.0
        %3007 = vmatpush1.xpose.msra.mxu0 %v3004
        %3008 = vmatprep.subr.mxu0 0.0
        %3009 = vmatpush1.xpose.msra.mxu0 0.0
        %3010 = vmatprep.subr.mxu0 0.0
        %3011 = vmatpush1.xpose.msra.mxu0 0.0
        %3012 = vmatprep.subr.mxu0 0.0
        %3013 = vmatpush1.xpose.msra.mxu0 0.0
        %3014 = vmatprep.subr.mxu0 0.0
        %3015 = vmatpush1.xpose.msra.mxu0 0.0
        %3016 = vmatprep.subr.mxu0 0.0
        %3017 = vmatpush1.xpose.msra.mxu0 0.0
        %3018 = vmatprep.subr.mxu0 0.0
        %3019 = vmatpush1.xpose.msra.mxu0 0.0
        %3020 = vmatprep.subr.mxu0 0.0
        %3021 = vmatpush1.xpose.msra.mxu0 0.0
        %3022 = vmatprep.subr.mxu0 0.0
        %3023 = vmatpush1.xpose.msra.mxu0 0.0
        %3024 = vmatprep.subr.mxu0 0.0
        %3025 = vmatpush1.xpose.msra.mxu0 0.0
        %3026 = vmatprep.subr.mxu0 0.0
        %3027 = vmatpush1.xpose.msra.mxu0 0.0
        %3028 = vmatprep.subr.mxu0 0.0
        %3029 = vmatpush1.xpose.msra.mxu0 0.0
        %3030 = vmatprep.subr.mxu0 0.0
        %3031 = vmatpush1.xpose.msra.mxu0 0.0
        %3032 = vmatprep.subr.mxu0 0.0
        %3033 = vmatpush1.xpose.msra.mxu0 0.0
        %3034 = vmatprep.subr.mxu0 0.0
        %3035 = vmatpush1.xpose.msra.mxu0 0.0
        %3036 = vmatprep.subr.mxu0 0.0
        %3037 = vmatpush1.xpose.msra.mxu0 0.0
        %3038 = vmatprep.subr.mxu0 0.0
        %3039 = vmatpush1.xpose.msra.mxu0 0.0
        %3040 = vmatprep.subr.mxu0 0.0
        %3041 = vmatpush1.xpose.msra.mxu0 0.0
        %3042 = vmatprep.subr.mxu0 0.0
        %3043 = vmatpush1.xpose.msra.mxu0 0.0
        %3044 = vmatprep.subr.mxu0 0.0
        %3045 = vmatpush1.xpose.msra.mxu0 0.0
        %3046 = vmatprep.subr.mxu0 0.0
        %3047 = vmatpush1.xpose.msra.mxu0 0.0
        %3048 = vmatprep.subr.mxu0 0.0
        %3049 = vmatpush1.xpose.msra.mxu0 0.0
        %3050 = vmatprep.subr.mxu0 0.0
        %3051 = vmatpush1.xpose.msra.mxu0 0.0
        %3052 = vmatprep.subr.mxu0 0.0
        %3053 = vmatpush1.xpose.msra.mxu0 0.0
        %3054 = vmatprep.subr.mxu0 0.0
        %3055 = vmatpush1.xpose.msra.mxu0 0.0
        %3056 = vmatprep.subr.mxu0 0.0
        %3057 = vmatpush1.xpose.msra.mxu0 0.0
        %3058 = vmatprep.subr.mxu0 0.0
        %3059 = vmatpush1.xpose.msra.mxu0 0.0
        %3060 = vmatprep.subr.mxu0 0.0
        %3061 = vmatpush1.xpose.msra.mxu0 0.0
        %3062 = vmatprep.subr.mxu0 0.0
        %3063 = vmatpush1.xpose.msra.mxu0 0.0
        %3064 = vmatprep.subr.mxu0 0.0
        %3065 = vmatpush1.xpose.msra.mxu0 0.0
        %3066 = vmatprep.subr.mxu0 0.0
        %3067 = vmatpush1.xpose.msra.mxu0 0.0
        %3068 = vmatprep.subr.mxu0 0.0
        %3069 = vmatpush1.xpose.msra.mxu0 0.0
        %3070 = vmatprep.mubr.f32.mxu0 0.0
        %3071 = vmatmul.mubr.f32.gmra.mrb[0].mxu0 %v3002
        %v3072 = vpop.f32.mrb[0].mxu0
        %v3073 = vadd.f32 %v909, %v3072
        %v3074 = vpop.f32.mrb[0].mxu0
        %3075 = vdwg.mxu0
        %v3076 = vsel %vm1137, %v3073, -inf
        %3077 = vmax.xlane.f32.xlu0 %v3076
        %v3078 = vpop.xlane.xlu0 %3077
        %v3079 = vsub.f32 %v3073, %v3078
        %v3080 = vmul.f32 %v3079, 1.442695
        %v3081 = vpow.pop %v3080
        %v3082 = vsel %vm1137, %v3081, 0.0
        %3083 = vadd.xlane.f32.xlu0 %v3082
        %v3084 = vpop.xlane.xlu0 %3083
        %v3085 = vrcp.pop %v3084
        %v3086 = vmul.f32 %v3081, %v3085
        %3087 = vrot.lane.b32.xlu0 %v1118, 72
        %v3088 = vpop.permute.xlu0 %3087
        %v3091 = vsel %vm1137, %v3086, 0
        %3093 = vmatprep.subr.mxu0 0.0
        %3094 = vmatpush1.msra.mxu0 %v3088
        %3095 = vmatprep.subr.mxu0 0.0
        %3096 = vmatpush1.msra.mxu0 0.0
        %3097 = vmatprep.subr.mxu0 0.0
        %3098 = vmatpush1.msra.mxu0 0.0
        %3099 = vmatprep.subr.mxu0 0.0
        %3100 = vmatpush1.msra.mxu0 0.0
        %3101 = vmatprep.subr.mxu0 0.0
        %3102 = vmatpush1.msra.mxu0 0.0
        %3103 = vmatprep.subr.mxu0 0.0
        %3104 = vmatpush1.msra.mxu0 0.0
        %3105 = vmatprep.subr.mxu0 0.0
        %3106 = vmatpush1.msra.mxu0 0.0
        %3107 = vmatprep.subr.mxu0 0.0
        %3108 = vmatpush1.msra.mxu0 0.0
        %3109 = vmatprep.subr.mxu0 0.0
        %3110 = vmatpush1.msra.mxu0 0.0
        %3111 = vmatprep.subr.mxu0 0.0
        %3112 = vmatpush1.msra.mxu0 0.0
        %3113 = vmatprep.subr.mxu0 0.0
        %3114 = vmatpush1.msra.mxu0 0.0
        %3115 = vmatprep.subr.mxu0 0.0
        %3116 = vmatpush1.msra.mxu0 0.0
        %3117 = vmatprep.subr.mxu0 0.0
        %3118 = vmatpush1.msra.mxu0 0.0
        %3119 = vmatprep.subr.mxu0 0.0
        %3120 = vmatpush1.msra.mxu0 0.0
        %3121 = vmatprep.subr.mxu0 0.0
        %3122 = vmatpush1.msra.mxu0 0.0
        %3123 = vmatprep.subr.mxu0 0.0
        %3124 = vmatpush1.msra.mxu0 0.0
        %3125 = vmatprep.subr.mxu0 0.0
        %3126 = vmatpush1.msra.mxu0 0.0
        %3127 = vmatprep.subr.mxu0 0.0
        %3128 = vmatpush1.msra.mxu0 0.0
        %3129 = vmatprep.subr.mxu0 0.0
        %3130 = vmatpush1.msra.mxu0 0.0
        %3131 = vmatprep.subr.mxu0 0.0
        %3132 = vmatpush1.msra.mxu0 0.0
        %3133 = vmatprep.subr.mxu0 0.0
        %3134 = vmatpush1.msra.mxu0 0.0
        %3135 = vmatprep.subr.mxu0 0.0
        %3136 = vmatpush1.msra.mxu0 0.0
        %3137 = vmatprep.subr.mxu0 0.0
        %3138 = vmatpush1.msra.mxu0 0.0
        %3139 = vmatprep.subr.mxu0 0.0
        %3140 = vmatpush1.msra.mxu0 0.0
        %3141 = vmatprep.subr.mxu0 0.0
        %3142 = vmatpush1.msra.mxu0 0.0
        %3143 = vmatprep.subr.mxu0 0.0
        %3144 = vmatpush1.msra.mxu0 0.0
        %3145 = vmatprep.subr.mxu0 0.0
        %3146 = vmatpush1.msra.mxu0 0.0
        %3147 = vmatprep.subr.mxu0 0.0
        %3148 = vmatpush1.msra.mxu0 0.0
        %3149 = vmatprep.subr.mxu0 0.0
        %3150 = vmatpush1.msra.mxu0 0.0
        %3151 = vmatprep.subr.mxu0 0.0
        %3152 = vmatpush1.msra.mxu0 0.0
        %3153 = vmatprep.subr.mxu0 0.0
        %3154 = vmatpush1.msra.mxu0 0.0
        %3155 = vmatprep.subr.mxu0 0.0
        %3156 = vmatpush1.msra.mxu0 0.0
        %3157 = vmatprep.mubr.f32.mxu0 0.0
        %3158 = vmatmul.mubr.f32.gmra.mrb[0].mxu0 %v3091
        %v3159 = vpop.f32.mrb[0].mxu0
        %v3160 = vadd.f32 0.0, %v3159
        %v3161 = vpop.f32.mrb[0].mxu0
        %3162 = vdwg.mxu0
        %v3164 = vsel %vm1137, %v3160, 0
        %3166 = vmatprep.subr.mxu0 0.0
        %3167 = vmatpush1.msra.mxu0 %v921
        %3168 = vmatprep.subr.mxu0 0.0
        %3169 = vmatpush1.msra.mxu0 0.0
        %3170 = vmatprep.subr.mxu0 0.0
        %3171 = vmatpush1.msra.mxu0 0.0
        %3172 = vmatprep.subr.mxu0 0.0
        %3173 = vmatpush1.msra.mxu0 0.0
        %3174 = vmatprep.subr.mxu0 0.0
        %3175 = vmatpush1.msra.mxu0 0.0
        %3176 = vmatprep.subr.mxu0 0.0
        %3177 = vmatpush1.msra.mxu0 0.0
        %3178 = vmatprep.subr.mxu0 0.0
        %3179 = vmatpush1.msra.mxu0 0.0
        %3180 = vmatprep.subr.mxu0 0.0
        %3181 = vmatpush1.msra.mxu0 0.0
        %3182 = vmatprep.subr.mxu0 0.0
        %3183 = vmatpush1.msra.mxu0 0.0
        %3184 = vmatprep.subr.mxu0 0.0
        %3185 = vmatpush1.msra.mxu0 0.0
        %3186 = vmatprep.subr.mxu0 0.0
        %3187 = vmatpush1.msra.mxu0 0.0
        %3188 = vmatprep.subr.mxu0 0.0
        %3189 = vmatpush1.msra.mxu0 0.0
        %3190 = vmatprep.subr.mxu0 0.0
        %3191 = vmatpush1.msra.mxu0 0.0
        %3192 = vmatprep.subr.mxu0 0.0
        %3193 = vmatpush1.msra.mxu0 0.0
        %3194 = vmatprep.subr.mxu0 0.0
        %3195 = vmatpush1.msra.mxu0 0.0
        %3196 = vmatprep.subr.mxu0 0.0
        %3197 = vmatpush1.msra.mxu0 0.0
        %3198 = vmatprep.subr.mxu0 0.0
        %3199 = vmatpush1.msra.mxu0 0.0
        %3200 = vmatprep.subr.mxu0 0.0
        %3201 = vmatpush1.msra.mxu0 0.0
        %3202 = vmatprep.subr.mxu0 0.0
        %3203 = vmatpush1.msra.mxu0 0.0
        %3204 = vmatprep.subr.mxu0 0.0
        %3205 = vmatpush1.msra.mxu0 0.0
        %3206 = vmatprep.subr.mxu0 0.0
        %3207 = vmatpush1.msra.mxu0 0.0
        %3208 = vmatprep.subr.mxu0 0.0
        %3209 = vmatpush1.msra.mxu0 0.0
        %3210 = vmatprep.subr.mxu0 0.0
        %3211 = vmatpush1.msra.mxu0 0.0
        %3212 = vmatprep.subr.mxu0 0.0
        %3213 = vmatpush1.msra.mxu0 0.0
        %3214 = vmatprep.subr.mxu0 0.0
        %3215 = vmatpush1.msra.mxu0 0.0
        %3216 = vmatprep.subr.mxu0 0.0
        %3217 = vmatpush1.msra.mxu0 0.0
        %3218 = vmatprep.subr.mxu0 0.0
        %3219 = vmatpush1.msra.mxu0 0.0
        %3220 = vmatprep.subr.mxu0 0.0
        %3221 = vmatpush1.msra.mxu0 0.0
        %3222 = vmatprep.subr.mxu0 0.0
        %3223 = vmatpush1.msra.mxu0 0.0
        %3224 = vmatprep.subr.mxu0 0.0
        %3225 = vmatpush1.msra.mxu0 0.0
        %3226 = vmatprep.subr.mxu0 0.0
        %3227 = vmatpush1.msra.mxu0 0.0
        %3228 = vmatprep.subr.mxu0 0.0
        %3229 = vmatpush1.msra.mxu0 0.0
        %3230 = vmatprep.mubr.f32.mxu0 0.0
        %3231 = vmatmul.mubr.f32.gmra.mrb[0].mxu0 %v3164
        %v3232 = vpop.f32.mrb[0].mxu0
        %v3233 = vadd.f32 0.0, %v3232
        %v3234 = vpop.f32.mrb[0].mxu0
        %3235 = vdwg.mxu0
        %v3236 = vadd.f32 %v2997, %v3233
        %v3238 = vlaneseq
        %v3239 = vshrl.u32 %v3238, 7
        %v3240 = vsub.s32 0, %v3239
        %v3241 = vrot.slane %v922, %v3240
        %v3243 = vadd.f32 %v3236, %v3241
        %v3244 = vadd.f32 %v3243, %v901
        %v3245 = vsel %vm959, %v3244, 0.0
        %3246 = vadd.xlane.f32.xlu0 %v3245
        %v3247 = vpop.xlane.xlu0 %3246
        %v3248 = vmul.f32 %v3247, %v2248
        %v3249 = vsub.f32 %v3244, %v3248
        %v3250 = vmul.f32 %v3249, %v3249
        %v3251 = vsel %vm959, %v3250, 0.0
        %3252 = vadd.xlane.f32.xlu0 %v3251
        %v3253 = vpop.xlane.xlu0 %3252
        %v3254 = vmul.f32 %v3253, %v2248
        %v3255 = vadd.f32 %v3254, 1e-12
        %v3256 = vrsqrt.pop %v3255
        %v3257 = vmul.f32 %v3249, %v3256
        %v3259 = vlaneseq
        %v3260 = vshrl.u32 %v3259, 7
        %v3261 = vsub.s32 0, %v3260
        %v3262 = vrot.slane %v923, %v3261
        %v3264 = vmul.f32 %v3257, %v3262
        %v3266 = vlaneseq
        %v3267 = vshrl.u32 %v3266, 7
        %v3268 = vsub.s32 0, %v3267
        %v3269 = vrot.slane %v924, %v3268
        %v3271 = vadd.f32 %v3264, %v3269
        %v3273 = vsel %vm1137, %v1123, 0
        %3275 = vmatprep.subr.mxu0 0.0
        %3276 = vmatpush1.xpose.msra.mxu0 %v3273
        %3277 = vmatprep.subr.mxu0 0.0
        %3278 = vmatpush1.xpose.msra.mxu0 0.0
        %3279 = vmatprep.subr.mxu0 0.0
        %3280 = vmatpush1.xpose.msra.mxu0 0.0
        %3281 = vmatprep.subr.mxu0 0.0
        %3282 = vmatpush1.xpose.msra.mxu0 0.0
        %3283 = vmatprep.subr.mxu0 0.0
        %3284 = vmatpush1.xpose.msra.mxu0 0.0
        %3285 = vmatprep.subr.mxu0 0.0
        %3286 = vmatpush1.xpose.msra.mxu0 0.0
        %3287 = vmatprep.subr.mxu0 0.0
        %3288 = vmatpush1.xpose.msra.mxu0 0.0
        %3289 = vmatprep.subr.mxu0 0.0
        %3290 = vmatpush1.xpose.msra.mxu0 0.0
        %3291 = vmatprep.subr.mxu0 0.0
        %3292 = vmatpush1.xpose.msra.mxu0 0.0
        %3293 = vmatprep.subr.mxu0 0.0
        %3294 = vmatpush1.xpose.msra.mxu0 0.0
        %3295 = vmatprep.subr.mxu0 0.0
        %3296 = vmatpush1.xpose.msra.mxu0 0.0
        %3297 = vmatprep.subr.mxu0 0.0
        %3298 = vmatpush1.xpose.msra.mxu0 0.0
        %3299 = vmatprep.subr.mxu0 0.0
        %3300 = vmatpush1.xpose.msra.mxu0 0.0
        %3301 = vmatprep.subr.mxu0 0.0
        %3302 = vmatpush1.xpose.msra.mxu0 0.0
        %3303 = vmatprep.subr.mxu0 0.0
        %3304 = vmatpush1.xpose.msra.mxu0 0.0
        %3305 = vmatprep.subr.mxu0 0.0
        %3306 = vmatpush1.xpose.msra.mxu0 0.0
        %3307 = vmatprep.subr.mxu0 0.0
        %3308 = vmatpush1.xpose.msra.mxu0 0.0
        %3309 = vmatprep.subr.mxu0 0.0
        %3310 = vmatpush1.xpose.msra.mxu0 0.0
        %3311 = vmatprep.subr.mxu0 0.0
        %3312 = vmatpush1.xpose.msra.mxu0 0.0
        %3313 = vmatprep.subr.mxu0 0.0
        %3314 = vmatpush1.xpose.msra.mxu0 0.0
        %3315 = vmatprep.subr.mxu0 0.0
        %3316 = vmatpush1.xpose.msra.mxu0 0.0
        %3317 = vmatprep.subr.mxu0 0.0
        %3318 = vmatpush1.xpose.msra.mxu0 0.0
        %3319 = vmatprep.subr.mxu0 0.0
        %3320 = vmatpush1.xpose.msra.mxu0 0.0
        %3321 = vmatprep.subr.mxu0 0.0
        %3322 = vmatpush1.xpose.msra.mxu0 0.0
        %3323 = vmatprep.subr.mxu0 0.0
        %3324 = vmatpush1.xpose.msra.mxu0 0.0
        %3325 = vmatprep.subr.mxu0 0.0
        %3326 = vmatpush1.xpose.msra.mxu0 0.0
        %3327 = vmatprep.subr.mxu0 0.0
        %3328 = vmatpush1.xpose.msra.mxu0 0.0
        %3329 = vmatprep.subr.mxu0 0.0
        %3330 = vmatpush1.xpose.msra.mxu0 0.0
        %3331 = vmatprep.subr.mxu0 0.0
        %3332 = vmatpush1.xpose.msra.mxu0 0.0
        %3333 = vmatprep.subr.mxu0 0.0
        %3334 = vmatpush1.xpose.msra.mxu0 0.0
        %3335 = vmatprep.subr.mxu0 0.0
        %3336 = vmatpush1.xpose.msra.mxu0 0.0
        %3337 = vmatprep.subr.mxu0 0.0
        %3338 = vmatpush1.xpose.msra.mxu0 0.0
        %3339 = vmatprep.mubr.f32.mxu0 0.0
        %3340 = vmatmul.mubr.f32.gmra.mrb[0].mxu0 %v2286
        %v3341 = vpop.f32.mrb[0].mxu0
        %v3342 = vadd.f32 %v909, %v3341
        %v3343 = vpop.f32.mrb[0].mxu0
        %3344 = vdwg.mxu0
        %v3345 = vsel %vm1137, %v3342, -inf
        %3346 = vmax.xlane.f32.xlu0 %v3345
        %v3347 = vpop.xlane.xlu0 %3346
        %v3348 = vsub.f32 %v3342, %v3347
        %v3349 = vmul.f32 %v3348, 1.442695
        %v3350 = vpow.pop %v3349
        %v3351 = vsel %vm1137, %v3350, 0.0
        %3352 = vadd.xlane.f32.xlu0 %v3351
        %v3353 = vpop.xlane.xlu0 %3352
        %v3354 = vrcp.pop %v3353
        %v3355 = vmul.f32 %v3350, %v3354
        %3356 = vrot.lane.b32.xlu0 %v1123, 96
        %v3357 = vpop.permute.xlu0 %3356
        %v3360 = vsel %vm1137, %v3355, 0
        %3362 = vmatprep.subr.mxu0 0.0
        %3363 = vmatpush1.msra.mxu0 %v3357
        %3364 = vmatprep.subr.mxu0 0.0
        %3365 = vmatpush1.msra.mxu0 0.0
        %3366 = vmatprep.subr.mxu0 0.0
        %3367 = vmatpush1.msra.mxu0 0.0
        %3368 = vmatprep.subr.mxu0 0.0
        %3369 = vmatpush1.msra.mxu0 0.0
        %3370 = vmatprep.subr.mxu0 0.0
        %3371 = vmatpush1.msra.mxu0 0.0
        %3372 = vmatprep.subr.mxu0 0.0
        %3373 = vmatpush1.msra.mxu0 0.0
        %3374 = vmatprep.subr.mxu0 0.0
        %3375 = vmatpush1.msra.mxu0 0.0
        %3376 = vmatprep.subr.mxu0 0.0
        %3377 = vmatpush1.msra.mxu0 0.0
        %3378 = vmatprep.subr.mxu0 0.0
        %3379 = vmatpush1.msra.mxu0 0.0
        %3380 = vmatprep.subr.mxu0 0.0
        %3381 = vmatpush1.msra.mxu0 0.0
        %3382 = vmatprep.subr.mxu0 0.0
        %3383 = vmatpush1.msra.mxu0 0.0
        %3384 = vmatprep.subr.mxu0 0.0
        %3385 = vmatpush1.msra.mxu0 0.0
        %3386 = vmatprep.subr.mxu0 0.0
        %3387 = vmatpush1.msra.mxu0 0.0
        %3388 = vmatprep.subr.mxu0 0.0
        %3389 = vmatpush1.msra.mxu0 0.0
        %3390 = vmatprep.subr.mxu0 0.0
        %3391 = vmatpush1.msra.mxu0 0.0
        %3392 = vmatprep.subr.mxu0 0.0
        %3393 = vmatpush1.msra.mxu0 0.0
        %3394 = vmatprep.subr.mxu0 0.0
        %3395 = vmatpush1.msra.mxu0 0.0
        %3396 = vmatprep.subr.mxu0 0.0
        %3397 = vmatpush1.msra.mxu0 0.0
        %3398 = vmatprep.subr.mxu0 0.0
        %3399 = vmatpush1.msra.mxu0 0.0
        %3400 = vmatprep.subr.mxu0 0.0
        %3401 = vmatpush1.msra.mxu0 0.0
        %3402 = vmatprep.subr.mxu0 0.0
        %3403 = vmatpush1.msra.mxu0 0.0
        %3404 = vmatprep.subr.mxu0 0.0
        %3405 = vmatpush1.msra.mxu0 0.0
        %3406 = vmatprep.subr.mxu0 0.0
        %3407 = vmatpush1.msra.mxu0 0.0
        %3408 = vmatprep.subr.mxu0 0.0
        %3409 = vmatpush1.msra.mxu0 0.0
        %3410 = vmatprep.subr.mxu0 0.0
        %3411 = vmatpush1.msra.mxu0 0.0
        %3412 = vmatprep.subr.mxu0 0.0
        %3413 = vmatpush1.msra.mxu0 0.0
        %3414 = vmatprep.subr.mxu0 0.0
        %3415 = vmatpush1.msra.mxu0 0.0
        %3416 = vmatprep.subr.mxu0 0.0
        %3417 = vmatpush1.msra.mxu0 0.0
        %3418 = vmatprep.subr.mxu0 0.0
        %3419 = vmatpush1.msra.mxu0 0.0
        %3420 = vmatprep.subr.mxu0 0.0
        %3421 = vmatpush1.msra.mxu0 0.0
        %3422 = vmatprep.subr.mxu0 0.0
        %3423 = vmatpush1.msra.mxu0 0.0
        %3424 = vmatprep.subr.mxu0 0.0
        %3425 = vmatpush1.msra.mxu0 0.0
        %3426 = vmatprep.mubr.f32.mxu0 0.0
        %3427 = vmatmul.mubr.f32.gmra.mrb[0].mxu0 %v3360
        %v3428 = vpop.f32.mrb[0].mxu0
        %v3429 = vadd.f32 0.0, %v3428
        %v3430 = vpop.f32.mrb[0].mxu0
        %3431 = vdwg.mxu0
        %3432 = vrot.lane.b32.xlu0 %v1123, 120
        %v3433 = vpop.permute.xlu0 %3432
        %v3434 = vsel %vm1137, %v3433, 0
        %3436 = vmatprep.subr.mxu0 0.0
        %3437 = vmatpush1.xpose.msra.mxu0 %v3434
        %3438 = vmatprep.subr.mxu0 0.0
        %3439 = vmatpush1.xpose.msra.mxu0 0.0
        %3440 = vmatprep.subr.mxu0 0.0
        %3441 = vmatpush1.xpose.msra.mxu0 0.0
        %3442 = vmatprep.subr.mxu0 0.0
        %3443 = vmatpush1.xpose.msra.mxu0 0.0
        %3444 = vmatprep.subr.mxu0 0.0
        %3445 = vmatpush1.xpose.msra.mxu0 0.0
        %3446 = vmatprep.subr.mxu0 0.0
        %3447 = vmatpush1.xpose.msra.mxu0 0.0
        %3448 = vmatprep.subr.mxu0 0.0
        %3449 = vmatpush1.xpose.msra.mxu0 0.0
        %3450 = vmatprep.subr.mxu0 0.0
        %3451 = vmatpush1.xpose.msra.mxu0 0.0
        %3452 = vmatprep.subr.mxu0 0.0
        %3453 = vmatpush1.xpose.msra.mxu0 0.0
        %3454 = vmatprep.subr.mxu0 0.0
        %3455 = vmatpush1.xpose.msra.mxu0 0.0
        %3456 = vmatprep.subr.mxu0 0.0
        %3457 = vmatpush1.xpose.msra.mxu0 0.0
        %3458 = vmatprep.subr.mxu0 0.0
        %3459 = vmatpush1.xpose.msra.mxu0 0.0
        %3460 = vmatprep.subr.mxu0 0.0
        %3461 = vmatpush1.xpose.msra.mxu0 0.0
        %3462 = vmatprep.subr.mxu0 0.0
        %3463 = vmatpush1.xpose.msra.mxu0 0.0
        %3464 = vmatprep.subr.mxu0 0.0
        %3465 = vmatpush1.xpose.msra.mxu0 0.0
        %3466 = vmatprep.subr.mxu0 0.0
        %3467 = vmatpush1.xpose.msra.mxu0 0.0
        %3468 = vmatprep.subr.mxu0 0.0
        %3469 = vmatpush1.xpose.msra.mxu0 0.0
        %3470 = vmatprep.subr.mxu0 0.0
        %3471 = vmatpush1.xpose.msra.mxu0 0.0
        %3472 = vmatprep.subr.mxu0 0.0
        %3473 = vmatpush1.xpose.msra.mxu0 0.0
        %3474 = vmatprep.subr.mxu0 0.0
        %3475 = vmatpush1.xpose.msra.mxu0 0.0
        %3476 = vmatprep.subr.mxu0 0.0
        %3477 = vmatpush1.xpose.msra.mxu0 0.0
        %3478 = vmatprep.subr.mxu0 0.0
        %3479 = vmatpush1.xpose.msra.mxu0 0.0
        %3480 = vmatprep.subr.mxu0 0.0
        %3481 = vmatpush1.xpose.msra.mxu0 0.0
        %3482 = vmatprep.subr.mxu0 0.0
        %3483 = vmatpush1.xpose.msra.mxu0 0.0
        %3484 = vmatprep.subr.mxu0 0.0
        %3485 = vmatpush1.xpose.msra.mxu0 0.0
        %3486 = vmatprep.subr.mxu0 0.0
        %3487 = vmatpush1.xpose.msra.mxu0 0.0
        %3488 = vmatprep.subr.mxu0 0.0
        %3489 = vmatpush1.xpose.msra.mxu0 0.0
        %3490 = vmatprep.subr.mxu0 0.0
        %3491 = vmatpush1.xpose.msra.mxu0 0.0
        %3492 = vmatprep.subr.mxu0 0.0
        %3493 = vmatpush1.xpose.msra.mxu0 0.0
        %3494 = vmatprep.subr.mxu0 0.0
        %3495 = vmatpush1.xpose.msra.mxu0 0.0
        %3496 = vmatprep.subr.mxu0 0.0
        %3497 = vmatpush1.xpose.msra.mxu0 0.0
        %3498 = vmatprep.subr.mxu0 0.0
        %3499 = vmatpush1.xpose.msra.mxu0 0.0
        %3500 = vmatprep.mubr.f32.mxu0 0.0
        %3501 = vmatmul.mubr.f32.gmra.mrb[0].mxu0 %v2452
        %v3502 = vpop.f32.mrb[0].mxu0
        %v3503 = vadd.f32 %v909, %v3502
        %v3504 = vpop.f32.mrb[0].mxu0
        %3505 = vdwg.mxu0
        %v3506 = vsel %vm1137, %v3503, -inf
        %3507 = vmax.xlane.f32.xlu0 %v3506
        %v3508 = vpop.xlane.xlu0 %3507
        %v3509 = vsub.f32 %v3503, %v3508
        %v3510 = vmul.f32 %v3509, 1.442695
        %v3511 = vpow.pop %v3510
        %v3512 = vsel %vm1137, %v3511, 0.0
        %3513 = vadd.xlane.f32.xlu0 %v3512
        %v3514 = vpop.xlane.xlu0 %3513
        %v3515 = vrcp.pop %v3514
        %v3516 = vmul.f32 %v3511, %v3515
        %3517 = vrot.lane.b32.xlu0 %v1123, 88
        %v3518 = vpop.permute.xlu0 %3517
        %v3521 = vsel %vm1137, %v3516, 0
        %3523 = vmatprep.subr.mxu0 0.0
        %3524 = vmatpush1.msra.mxu0 %v3518
        %3525 = vmatprep.subr.mxu0 0.0
        %3526 = vmatpush1.msra.mxu0 0.0
        %3527 = vmatprep.subr.mxu0 0.0
        %3528 = vmatpush1.msra.mxu0 0.0
        %3529 = vmatprep.subr.mxu0 0.0
        %3530 = vmatpush1.msra.mxu0 0.0
        %3531 = vmatprep.subr.mxu0 0.0
        %3532 = vmatpush1.msra.mxu0 0.0
        %3533 = vmatprep.subr.mxu0 0.0
        %3534 = vmatpush1.msra.mxu0 0.0
        %3535 = vmatprep.subr.mxu0 0.0
        %3536 = vmatpush1.msra.mxu0 0.0
        %3537 = vmatprep.subr.mxu0 0.0
        %3538 = vmatpush1.msra.mxu0 0.0
        %3539 = vmatprep.subr.mxu0 0.0
        %3540 = vmatpush1.msra.mxu0 0.0
        %3541 = vmatprep.subr.mxu0 0.0
        %3542 = vmatpush1.msra.mxu0 0.0
        %3543 = vmatprep.subr.mxu0 0.0
        %3544 = vmatpush1.msra.mxu0 0.0
        %3545 = vmatprep.subr.mxu0 0.0
        %3546 = vmatpush1.msra.mxu0 0.0
        %3547 = vmatprep.subr.mxu0 0.0
        %3548 = vmatpush1.msra.mxu0 0.0
        %3549 = vmatprep.subr.mxu0 0.0
        %3550 = vmatpush1.msra.mxu0 0.0
        %3551 = vmatprep.subr.mxu0 0.0
        %3552 = vmatpush1.msra.mxu0 0.0
        %3553 = vmatprep.subr.mxu0 0.0
        %3554 = vmatpush1.msra.mxu0 0.0
        %3555 = vmatprep.subr.mxu0 0.0
        %3556 = vmatpush1.msra.mxu0 0.0
        %3557 = vmatprep.subr.mxu0 0.0
        %3558 = vmatpush1.msra.mxu0 0.0
        %3559 = vmatprep.subr.mxu0 0.0
        %3560 = vmatpush1.msra.mxu0 0.0
        %3561 = vmatprep.subr.mxu0 0.0
        %3562 = vmatpush1.msra.mxu0 0.0
        %3563 = vmatprep.subr.mxu0 0.0
        %3564 = vmatpush1.msra.mxu0 0.0
        %3565 = vmatprep.subr.mxu0 0.0
        %3566 = vmatpush1.msra.mxu0 0.0
        %3567 = vmatprep.subr.mxu0 0.0
        %3568 = vmatpush1.msra.mxu0 0.0
        %3569 = vmatprep.subr.mxu0 0.0
        %3570 = vmatpush1.msra.mxu0 0.0
        %3571 = vmatprep.subr.mxu0 0.0
        %3572 = vmatpush1.msra.mxu0 0.0
        %3573 = vmatprep.subr.mxu0 0.0
        %3574 = vmatpush1.msra.mxu0 0.0
        %3575 = vmatprep.subr.mxu0 0.0
        %3576 = vmatpush1.msra.mxu0 0.0
        %3577 = vmatprep.subr.mxu0 0.0
        %3578 = vmatpush1.msra.mxu0 0.0
        %3579 = vmatprep.subr.mxu0 0.0
        %3580 = vmatpush1.msra.mxu0 0.0
        %3581 = vmatprep.subr.mxu0 0.0
        %3582 = vmatpush1.msra.mxu0 0.0
        %3583 = vmatprep.subr.mxu0 0.0
        %3584 = vmatpush1.msra.mxu0 0.0
        %3585 = vmatprep.subr.mxu0 0.0
        %3586 = vmatpush1.msra.mxu0 0.0
        %3587 = vmatprep.mubr.f32.mxu0 0.0
        %3588 = vmatmul.mubr.f32.gmra.mrb[0].mxu0 %v3521
        %v3589 = vpop.f32.mrb[0].mxu0
        %v3590 = vadd.f32 0.0, %v3589
        %v3591 = vpop.f32.mrb[0].mxu0
        %3592 = vdwg.mxu0
        %v3594 = vsel %vm1137, %v3590, 0
        %3596 = vmatprep.subr.mxu0 0.0
        %3597 = vmatpush1.msra.mxu0 %v919
        %3598 = vmatprep.subr.mxu0 0.0
        %3599 = vmatpush1.msra.mxu0 0.0
        %3600 = vmatprep.subr.mxu0 0.0
        %3601 = vmatpush1.msra.mxu0 0.0
        %3602 = vmatprep.subr.mxu0 0.0
        %3603 = vmatpush1.msra.mxu0 0.0
        %3604 = vmatprep.subr.mxu0 0.0
        %3605 = vmatpush1.msra.mxu0 0.0
        %3606 = vmatprep.subr.mxu0 0.0
        %3607 = vmatpush1.msra.mxu0 0.0
        %3608 = vmatprep.subr.mxu0 0.0
        %3609 = vmatpush1.msra.mxu0 0.0
        %3610 = vmatprep.subr.mxu0 0.0
        %3611 = vmatpush1.msra.mxu0 0.0
        %3612 = vmatprep.subr.mxu0 0.0
        %3613 = vmatpush1.msra.mxu0 0.0
        %3614 = vmatprep.subr.mxu0 0.0
        %3615 = vmatpush1.msra.mxu0 0.0
        %3616 = vmatprep.subr.mxu0 0.0
        %3617 = vmatpush1.msra.mxu0 0.0
        %3618 = vmatprep.subr.mxu0 0.0
        %3619 = vmatpush1.msra.mxu0 0.0
        %3620 = vmatprep.subr.mxu0 0.0
        %3621 = vmatpush1.msra.mxu0 0.0
        %3622 = vmatprep.subr.mxu0 0.0
        %3623 = vmatpush1.msra.mxu0 0.0
        %3624 = vmatprep.subr.mxu0 0.0
        %3625 = vmatpush1.msra.mxu0 0.0
        %3626 = vmatprep.subr.mxu0 0.0
        %3627 = vmatpush1.msra.mxu0 0.0
        %3628 = vmatprep.subr.mxu0 0.0
        %3629 = vmatpush1.msra.mxu0 0.0
        %3630 = vmatprep.subr.mxu0 0.0
        %3631 = vmatpush1.msra.mxu0 0.0
        %3632 = vmatprep.subr.mxu0 0.0
        %3633 = vmatpush1.msra.mxu0 0.0
        %3634 = vmatprep.subr.mxu0 0.0
        %3635 = vmatpush1.msra.mxu0 0.0
        %3636 = vmatprep.subr.mxu0 0.0
        %3637 = vmatpush1.msra.mxu0 0.0
        %3638 = vmatprep.subr.mxu0 0.0
        %3639 = vmatpush1.msra.mxu0 0.0
        %3640 = vmatprep.subr.mxu0 0.0
        %3641 = vmatpush1.msra.mxu0 0.0
        %3642 = vmatprep.subr.mxu0 0.0
        %3643 = vmatpush1.msra.mxu0 0.0
        %3644 = vmatprep.subr.mxu0 0.0
        %3645 = vmatpush1.msra.mxu0 0.0
        %3646 = vmatprep.subr.mxu0 0.0
        %3647 = vmatpush1.msra.mxu0 0.0
        %3648 = vmatprep.subr.mxu0 0.0
        %3649 = vmatpush1.msra.mxu0 0.0
        %3650 = vmatprep.subr.mxu0 0.0
        %3651 = vmatpush1.msra.mxu0 0.0
        %3652 = vmatprep.subr.mxu0 0.0
        %3653 = vmatpush1.msra.mxu0 0.0
        %3654 = vmatprep.subr.mxu0 0.0
        %3655 = vmatpush1.msra.mxu0 0.0
        %3656 = vmatprep.subr.mxu0 0.0
        %3657 = vmatpush1.msra.mxu0 0.0
        %3658 = vmatprep.subr.mxu0 0.0
        %3659 = vmatpush1.msra.mxu0 0.0
        %3660 = vmatprep.mubr.f32.mxu0 0.0
        %3661 = vmatmul.mubr.f32.gmra.mrb[0].mxu0 %v3594
        %v3662 = vpop.f32.mrb[0].mxu0
        %v3663 = vadd.f32 0.0, %v3662
        %v3664 = vpop.f32.mrb[0].mxu0
        %3665 = vdwg.mxu0
        %v3667 = vsel %vm1137, %v3429, 0
        %3669 = vmatprep.subr.mxu0 0.0
        %3670 = vmatpush1.msra.mxu0 %v918
        %3671 = vmatprep.subr.mxu0 0.0
        %3672 = vmatpush1.msra.mxu0 0.0
        %3673 = vmatprep.subr.mxu0 0.0
        %3674 = vmatpush1.msra.mxu0 0.0
        %3675 = vmatprep.subr.mxu0 0.0
        %3676 = vmatpush1.msra.mxu0 0.0
        %3677 = vmatprep.subr.mxu0 0.0
        %3678 = vmatpush1.msra.mxu0 0.0
        %3679 = vmatprep.subr.mxu0 0.0
        %3680 = vmatpush1.msra.mxu0 0.0
        %3681 = vmatprep.subr.mxu0 0.0
        %3682 = vmatpush1.msra.mxu0 0.0
        %3683 = vmatprep.subr.mxu0 0.0
        %3684 = vmatpush1.msra.mxu0 0.0
        %3685 = vmatprep.subr.mxu0 0.0
        %3686 = vmatpush1.msra.mxu0 0.0
        %3687 = vmatprep.subr.mxu0 0.0
        %3688 = vmatpush1.msra.mxu0 0.0
        %3689 = vmatprep.subr.mxu0 0.0
        %3690 = vmatpush1.msra.mxu0 0.0
        %3691 = vmatprep.subr.mxu0 0.0
        %3692 = vmatpush1.msra.mxu0 0.0
        %3693 = vmatprep.subr.mxu0 0.0
        %3694 = vmatpush1.msra.mxu0 0.0
        %3695 = vmatprep.subr.mxu0 0.0
        %3696 = vmatpush1.msra.mxu0 0.0
        %3697 = vmatprep.subr.mxu0 0.0
        %3698 = vmatpush1.msra.mxu0 0.0
        %3699 = vmatprep.subr.mxu0 0.0
        %3700 = vmatpush1.msra.mxu0 0.0
        %3701 = vmatprep.subr.mxu0 0.0
        %3702 = vmatpush1.msra.mxu0 0.0
        %3703 = vmatprep.subr.mxu0 0.0
        %3704 = vmatpush1.msra.mxu0 0.0
        %3705 = vmatprep.subr.mxu0 0.0
        %3706 = vmatpush1.msra.mxu0 0.0
        %3707 = vmatprep.subr.mxu0 0.0
        %3708 = vmatpush1.msra.mxu0 0.0
        %3709 = vmatprep.subr.mxu0 0.0
        %3710 = vmatpush1.msra.mxu0 0.0
        %3711 = vmatprep.subr.mxu0 0.0
        %3712 = vmatpush1.msra.mxu0 0.0
        %3713 = vmatprep.subr.mxu0 0.0
        %3714 = vmatpush1.msra.mxu0 0.0
        %3715 = vmatprep.subr.mxu0 0.0
        %3716 = vmatpush1.msra.mxu0 0.0
        %3717 = vmatprep.subr.mxu0 0.0
        %3718 = vmatpush1.msra.mxu0 0.0
        %3719 = vmatprep.subr.mxu0 0.0
        %3720 = vmatpush1.msra.mxu0 0.0
        %3721 = vmatprep.subr.mxu0 0.0
        %3722 = vmatpush1.msra.mxu0 0.0
        %3723 = vmatprep.subr.mxu0 0.0
        %3724 = vmatpush1.msra.mxu0 0.0
        %3725 = vmatprep.subr.mxu0 0.0
        %3726 = vmatpush1.msra.mxu0 0.0
        %3727 = vmatprep.subr.mxu0 0.0
        %3728 = vmatpush1.msra.mxu0 0.0
        %3729 = vmatprep.subr.mxu0 0.0
        %3730 = vmatpush1.msra.mxu0 0.0
        %3731 = vmatprep.subr.mxu0 0.0
        %3732 = vmatpush1.msra.mxu0 0.0
        %3733 = vmatprep.mubr.f32.mxu0 0.0
        %3734 = vmatmul.mubr.f32.gmra.mrb[0].mxu0 %v3667
        %v3735 = vpop.f32.mrb[0].mxu0
        %v3736 = vadd.f32 %v3663, %v3735
        %v3737 = vpop.f32.mrb[0].mxu0
        %3738 = vdwg.mxu0
        %3739 = vrot.lane.b32.xlu0 %v1123, 112
        %v3740 = vpop.permute.xlu0 %3739
        %v3741 = vsel %vm1137, %v3740, 0
        %3743 = vmatprep.subr.mxu0 0.0
        %3744 = vmatpush1.xpose.msra.mxu0 %v3741
        %3745 = vmatprep.subr.mxu0 0.0
        %3746 = vmatpush1.xpose.msra.mxu0 0.0
        %3747 = vmatprep.subr.mxu0 0.0
        %3748 = vmatpush1.xpose.msra.mxu0 0.0
        %3749 = vmatprep.subr.mxu0 0.0
        %3750 = vmatpush1.xpose.msra.mxu0 0.0
        %3751 = vmatprep.subr.mxu0 0.0
        %3752 = vmatpush1.xpose.msra.mxu0 0.0
        %3753 = vmatprep.subr.mxu0 0.0
        %3754 = vmatpush1.xpose.msra.mxu0 0.0
        %3755 = vmatprep.subr.mxu0 0.0
        %3756 = vmatpush1.xpose.msra.mxu0 0.0
        %3757 = vmatprep.subr.mxu0 0.0
        %3758 = vmatpush1.xpose.msra.mxu0 0.0
        %3759 = vmatprep.subr.mxu0 0.0
        %3760 = vmatpush1.xpose.msra.mxu0 0.0
        %3761 = vmatprep.subr.mxu0 0.0
        %3762 = vmatpush1.xpose.msra.mxu0 0.0
        %3763 = vmatprep.subr.mxu0 0.0
        %3764 = vmatpush1.xpose.msra.mxu0 0.0
        %3765 = vmatprep.subr.mxu0 0.0
        %3766 = vmatpush1.xpose.msra.mxu0 0.0
        %3767 = vmatprep.subr.mxu0 0.0
        %3768 = vmatpush1.xpose.msra.mxu0 0.0
        %3769 = vmatprep.subr.mxu0 0.0
        %3770 = vmatpush1.xpose.msra.mxu0 0.0
        %3771 = vmatprep.subr.mxu0 0.0
        %3772 = vmatpush1.xpose.msra.mxu0 0.0
        %3773 = vmatprep.subr.mxu0 0.0
        %3774 = vmatpush1.xpose.msra.mxu0 0.0
        %3775 = vmatprep.subr.mxu0 0.0
        %3776 = vmatpush1.xpose.msra.mxu0 0.0
        %3777 = vmatprep.subr.mxu0 0.0
        %3778 = vmatpush1.xpose.msra.mxu0 0.0
        %3779 = vmatprep.subr.mxu0 0.0
        %3780 = vmatpush1.xpose.msra.mxu0 0.0
        %3781 = vmatprep.subr.mxu0 0.0
        %3782 = vmatpush1.xpose.msra.mxu0 0.0
        %3783 = vmatprep.subr.mxu0 0.0
        %3784 = vmatpush1.xpose.msra.mxu0 0.0
        %3785 = vmatprep.subr.mxu0 0.0
        %3786 = vmatpush1.xpose.msra.mxu0 0.0
        %3787 = vmatprep.subr.mxu0 0.0
        %3788 = vmatpush1.xpose.msra.mxu0 0.0
        %3789 = vmatprep.subr.mxu0 0.0
        %3790 = vmatpush1.xpose.msra.mxu0 0.0
        %3791 = vmatprep.subr.mxu0 0.0
        %3792 = vmatpush1.xpose.msra.mxu0 0.0
        %3793 = vmatprep.subr.mxu0 0.0
        %3794 = vmatpush1.xpose.msra.mxu0 0.0
        %3795 = vmatprep.subr.mxu0 0.0
        %3796 = vmatpush1.xpose.msra.mxu0 0.0
        %3797 = vmatprep.subr.mxu0 0.0
        %3798 = vmatpush1.xpose.msra.mxu0 0.0
        %3799 = vmatprep.subr.mxu0 0.0
        %3800 = vmatpush1.xpose.msra.mxu0 0.0
        %3801 = vmatprep.subr.mxu0 0.0
        %3802 = vmatpush1.xpose.msra.mxu0 0.0
        %3803 = vmatprep.subr.mxu0 0.0
        %3804 = vmatpush1.xpose.msra.mxu0 0.0
        %3805 = vmatprep.subr.mxu0 0.0
        %3806 = vmatpush1.xpose.msra.mxu0 0.0
        %3807 = vmatprep.mubr.f32.mxu0 0.0
        %3808 = vmatmul.mubr.f32.gmra.mrb[0].mxu0 %v2763
        %v3809 = vpop.f32.mrb[0].mxu0
        %v3810 = vadd.f32 %v909, %v3809
        %v3811 = vpop.f32.mrb[0].mxu0
        %3812 = vdwg.mxu0
        %v3813 = vsel %vm1137, %v3810, -inf
        %3814 = vmax.xlane.f32.xlu0 %v3813
        %v3815 = vpop.xlane.xlu0 %3814
        %v3816 = vsub.f32 %v3810, %v3815
        %v3817 = vmul.f32 %v3816, 1.442695
        %v3818 = vpow.pop %v3817
        %v3819 = vsel %vm1137, %v3818, 0.0
        %3820 = vadd.xlane.f32.xlu0 %v3819
        %v3821 = vpop.xlane.xlu0 %3820
        %v3822 = vrcp.pop %v3821
        %v3823 = vmul.f32 %v3818, %v3822
        %3824 = vrot.lane.b32.xlu0 %v1123, 80
        %v3825 = vpop.permute.xlu0 %3824
        %v3828 = vsel %vm1137, %v3823, 0
        %3830 = vmatprep.subr.mxu0 0.0
        %3831 = vmatpush1.msra.mxu0 %v3825
        %3832 = vmatprep.subr.mxu0 0.0
        %3833 = vmatpush1.msra.mxu0 0.0
        %3834 = vmatprep.subr.mxu0 0.0
        %3835 = vmatpush1.msra.mxu0 0.0
        %3836 = vmatprep.subr.mxu0 0.0
        %3837 = vmatpush1.msra.mxu0 0.0
        %3838 = vmatprep.subr.mxu0 0.0
        %3839 = vmatpush1.msra.mxu0 0.0
        %3840 = vmatprep.subr.mxu0 0.0
        %3841 = vmatpush1.msra.mxu0 0.0
        %3842 = vmatprep.subr.mxu0 0.0
        %3843 = vmatpush1.msra.mxu0 0.0
        %3844 = vmatprep.subr.mxu0 0.0
        %3845 = vmatpush1.msra.mxu0 0.0
        %3846 = vmatprep.subr.mxu0 0.0
        %3847 = vmatpush1.msra.mxu0 0.0
        %3848 = vmatprep.subr.mxu0 0.0
        %3849 = vmatpush1.msra.mxu0 0.0
        %3850 = vmatprep.subr.mxu0 0.0
        %3851 = vmatpush1.msra.mxu0 0.0
        %3852 = vmatprep.subr.mxu0 0.0
        %3853 = vmatpush1.msra.mxu0 0.0
        %3854 = vmatprep.subr.mxu0 0.0
        %3855 = vmatpush1.msra.mxu0 0.0
        %3856 = vmatprep.subr.mxu0 0.0
        %3857 = vmatpush1.msra.mxu0 0.0
        %3858 = vmatprep.subr.mxu0 0.0
        %3859 = vmatpush1.msra.mxu0 0.0
        %3860 = vmatprep.subr.mxu0 0.0
        %3861 = vmatpush1.msra.mxu0 0.0
        %3862 = vmatprep.subr.mxu0 0.0
        %3863 = vmatpush1.msra.mxu0 0.0
        %3864 = vmatprep.subr.mxu0 0.0
        %3865 = vmatpush1.msra.mxu0 0.0
        %3866 = vmatprep.subr.mxu0 0.0
        %3867 = vmatpush1.msra.mxu0 0.0
        %3868 = vmatprep.subr.mxu0 0.0
        %3869 = vmatpush1.msra.mxu0 0.0
        %3870 = vmatprep.subr.mxu0 0.0
        %3871 = vmatpush1.msra.mxu0 0.0
        %3872 = vmatprep.subr.mxu0 0.0
        %3873 = vmatpush1.msra.mxu0 0.0
        %3874 = vmatprep.subr.mxu0 0.0
        %3875 = vmatpush1.msra.mxu0 0.0
        %3876 = vmatprep.subr.mxu0 0.0
        %3877 = vmatpush1.msra.mxu0 0.0
        %3878 = vmatprep.subr.mxu0 0.0
        %3879 = vmatpush1.msra.mxu0 0.0
        %3880 = vmatprep.subr.mxu0 0.0
        %3881 = vmatpush1.msra.mxu0 0.0
        %3882 = vmatprep.subr.mxu0 0.0
        %3883 = vmatpush1.msra.mxu0 0.0
        %3884 = vmatprep.subr.mxu0 0.0
        %3885 = vmatpush1.msra.mxu0 0.0
        %3886 = vmatprep.subr.mxu0 0.0
        %3887 = vmatpush1.msra.mxu0 0.0
        %3888 = vmatprep.subr.mxu0 0.0
        %3889 = vmatpush1.msra.mxu0 0.0
        %3890 = vmatprep.subr.mxu0 0.0
        %3891 = vmatpush1.msra.mxu0 0.0
        %3892 = vmatprep.subr.mxu0 0.0
        %3893 = vmatpush1.msra.mxu0 0.0
        %3894 = vmatprep.mubr.f32.mxu0 0.0
        %3895 = vmatmul.mubr.f32.gmra.mrb[0].mxu0 %v3828
        %v3896 = vpop.f32.mrb[0].mxu0
        %v3897 = vadd.f32 0.0, %v3896
        %v3898 = vpop.f32.mrb[0].mxu0
        %3899 = vdwg.mxu0
        %v3901 = vsel %vm1137, %v3897, 0
        %3903 = vmatprep.subr.mxu0 0.0
        %3904 = vmatpush1.msra.mxu0 %v920
        %3905 = vmatprep.subr.mxu0 0.0
        %3906 = vmatpush1.msra.mxu0 0.0
        %3907 = vmatprep.subr.mxu0 0.0
        %3908 = vmatpush1.msra.mxu0 0.0
        %3909 = vmatprep.subr.mxu0 0.0
        %3910 = vmatpush1.msra.mxu0 0.0
        %3911 = vmatprep.subr.mxu0 0.0
        %3912 = vmatpush1.msra.mxu0 0.0
        %3913 = vmatprep.subr.mxu0 0.0
        %3914 = vmatpush1.msra.mxu0 0.0
        %3915 = vmatprep.subr.mxu0 0.0
        %3916 = vmatpush1.msra.mxu0 0.0
        %3917 = vmatprep.subr.mxu0 0.0
        %3918 = vmatpush1.msra.mxu0 0.0
        %3919 = vmatprep.subr.mxu0 0.0
        %3920 = vmatpush1.msra.mxu0 0.0
        %3921 = vmatprep.subr.mxu0 0.0
        %3922 = vmatpush1.msra.mxu0 0.0
        %3923 = vmatprep.subr.mxu0 0.0
        %3924 = vmatpush1.msra.mxu0 0.0
        %3925 = vmatprep.subr.mxu0 0.0
        %3926 = vmatpush1.msra.mxu0 0.0
        %3927 = vmatprep.subr.mxu0 0.0
        %3928 = vmatpush1.msra.mxu0 0.0
        %3929 = vmatprep.subr.mxu0 0.0
        %3930 = vmatpush1.msra.mxu0 0.0
        %3931 = vmatprep.subr.mxu0 0.0
        %3932 = vmatpush1.msra.mxu0 0.0
        %3933 = vmatprep.subr.mxu0 0.0
        %3934 = vmatpush1.msra.mxu0 0.0
        %3935 = vmatprep.subr.mxu0 0.0
        %3936 = vmatpush1.msra.mxu0 0.0
        %3937 = vmatprep.subr.mxu0 0.0
        %3938 = vmatpush1.msra.mxu0 0.0
        %3939 = vmatprep.subr.mxu0 0.0
        %3940 = vmatpush1.msra.mxu0 0.0
        %3941 = vmatprep.subr.mxu0 0.0
        %3942 = vmatpush1.msra.mxu0 0.0
        %3943 = vmatprep.subr.mxu0 0.0
        %3944 = vmatpush1.msra.mxu0 0.0
        %3945 = vmatprep.subr.mxu0 0.0
        %3946 = vmatpush1.msra.mxu0 0.0
        %3947 = vmatprep.subr.mxu0 0.0
        %3948 = vmatpush1.msra.mxu0 0.0
        %3949 = vmatprep.subr.mxu0 0.0
        %3950 = vmatpush1.msra.mxu0 0.0
        %3951 = vmatprep.subr.mxu0 0.0
        %3952 = vmatpush1.msra.mxu0 0.0
        %3953 = vmatprep.subr.mxu0 0.0
        %3954 = vmatpush1.msra.mxu0 0.0
        %3955 = vmatprep.subr.mxu0 0.0
        %3956 = vmatpush1.msra.mxu0 0.0
        %3957 = vmatprep.subr.mxu0 0.0
        %3958 = vmatpush1.msra.mxu0 0.0
        %3959 = vmatprep.subr.mxu0 0.0
        %3960 = vmatpush1.msra.mxu0 0.0
        %3961 = vmatprep.subr.mxu0 0.0
        %3962 = vmatpush1.msra.mxu0 0.0
        %3963 = vmatprep.subr.mxu0 0.0
        %3964 = vmatpush1.msra.mxu0 0.0
        %3965 = vmatprep.subr.mxu0 0.0
        %3966 = vmatpush1.msra.mxu0 0.0
        %3967 = vmatprep.mubr.f32.mxu0 0.0
        %3968 = vmatmul.mubr.f32.gmra.mrb[0].mxu0 %v3901
        %v3969 = vpop.f32.mrb[0].mxu0
        %v3970 = vadd.f32 0.0, %v3969
        %v3971 = vpop.f32.mrb[0].mxu0
        %3972 = vdwg.mxu0
        %v3973 = vadd.f32 %v3736, %v3970
        %3974 = vrot.lane.b32.xlu0 %v1123, 104
        %v3975 = vpop.permute.xlu0 %3974
        %v3976 = vsel %vm1137, %v3975, 0
        %3978 = vmatprep.subr.mxu0 0.0
        %3979 = vmatpush1.xpose.msra.mxu0 %v3976
        %3980 = vmatprep.subr.mxu0 0.0
        %3981 = vmatpush1.xpose.msra.mxu0 0.0
        %3982 = vmatprep.subr.mxu0 0.0
        %3983 = vmatpush1.xpose.msra.mxu0 0.0
        %3984 = vmatprep.subr.mxu0 0.0
        %3985 = vmatpush1.xpose.msra.mxu0 0.0
        %3986 = vmatprep.subr.mxu0 0.0
        %3987 = vmatpush1.xpose.msra.mxu0 0.0
        %3988 = vmatprep.subr.mxu0 0.0
        %3989 = vmatpush1.xpose.msra.mxu0 0.0
        %3990 = vmatprep.subr.mxu0 0.0
        %3991 = vmatpush1.xpose.msra.mxu0 0.0
        %3992 = vmatprep.subr.mxu0 0.0
        %3993 = vmatpush1.xpose.msra.mxu0 0.0
        %3994 = vmatprep.subr.mxu0 0.0
        %3995 = vmatpush1.xpose.msra.mxu0 0.0
        %3996 = vmatprep.subr.mxu0 0.0
        %3997 = vmatpush1.xpose.msra.mxu0 0.0
        %3998 = vmatprep.subr.mxu0 0.0
        %3999 = vmatpush1.xpose.msra.mxu0 0.0
        %4000 = vmatprep.subr.mxu0 0.0
        %4001 = vmatpush1.xpose.msra.mxu0 0.0
        %4002 = vmatprep.subr.mxu0 0.0
        %4003 = vmatpush1.xpose.msra.mxu0 0.0
        %4004 = vmatprep.subr.mxu0 0.0
        %4005 = vmatpush1.xpose.msra.mxu0 0.0
        %4006 = vmatprep.subr.mxu0 0.0
        %4007 = vmatpush1.xpose.msra.mxu0 0.0
        %4008 = vmatprep.subr.mxu0 0.0
        %4009 = vmatpush1.xpose.msra.mxu0 0.0
        %4010 = vmatprep.subr.mxu0 0.0
        %4011 = vmatpush1.xpose.msra.mxu0 0.0
        %4012 = vmatprep.subr.mxu0 0.0
        %4013 = vmatpush1.xpose.msra.mxu0 0.0
        %4014 = vmatprep.subr.mxu0 0.0
        %4015 = vmatpush1.xpose.msra.mxu0 0.0
        %4016 = vmatprep.subr.mxu0 0.0
        %4017 = vmatpush1.xpose.msra.mxu0 0.0
        %4018 = vmatprep.subr.mxu0 0.0
        %4019 = vmatpush1.xpose.msra.mxu0 0.0
        %4020 = vmatprep.subr.mxu0 0.0
        %4021 = vmatpush1.xpose.msra.mxu0 0.0
        %4022 = vmatprep.subr.mxu0 0.0
        %4023 = vmatpush1.xpose.msra.mxu0 0.0
        %4024 = vmatprep.subr.mxu0 0.0
        %4025 = vmatpush1.xpose.msra.mxu0 0.0
        %4026 = vmatprep.subr.mxu0 0.0
        %4027 = vmatpush1.xpose.msra.mxu0 0.0
        %4028 = vmatprep.subr.mxu0 0.0
        %4029 = vmatpush1.xpose.msra.mxu0 0.0
        %4030 = vmatprep.subr.mxu0 0.0
        %4031 = vmatpush1.xpose.msra.mxu0 0.0
        %4032 = vmatprep.subr.mxu0 0.0
        %4033 = vmatpush1.xpose.msra.mxu0 0.0
        %4034 = vmatprep.subr.mxu0 0.0
        %4035 = vmatpush1.xpose.msra.mxu0 0.0
        %4036 = vmatprep.subr.mxu0 0.0
        %4037 = vmatpush1.xpose.msra.mxu0 0.0
        %4038 = vmatprep.subr.mxu0 0.0
        %4039 = vmatpush1.xpose.msra.mxu0 0.0
        %4040 = vmatprep.subr.mxu0 0.0
        %4041 = vmatpush1.xpose.msra.mxu0 0.0
        %4042 = vmatprep.mubr.f32.mxu0 0.0
        %4043 = vmatmul.mubr.f32.gmra.mrb[0].mxu0 %v3002
        %v4044 = vpop.f32.mrb[0].mxu0
        %v4045 = vadd.f32 %v909, %v4044
        %v4046 = vpop.f32.mrb[0].mxu0
        %4047 = vdwg.mxu0
        %v4048 = vsel %vm1137, %v4045, -inf
        %4049 = vmax.xlane.f32.xlu0 %v4048
        %v4050 = vpop.xlane.xlu0 %4049
        %v4051 = vsub.f32 %v4045, %v4050
        %v4052 = vmul.f32 %v4051, 1.442695
        %v4053 = vpow.pop %v4052
        %v4054 = vsel %vm1137, %v4053, 0.0
        %4055 = vadd.xlane.f32.xlu0 %v4054
        %v4056 = vpop.xlane.xlu0 %4055
        %v4057 = vrcp.pop %v4056
        %v4058 = vmul.f32 %v4053, %v4057
        %4059 = vrot.lane.b32.xlu0 %v1123, 72
        %v4060 = vpop.permute.xlu0 %4059
        %v4063 = vsel %vm1137, %v4058, 0
        %4065 = vmatprep.subr.mxu0 0.0
        %4066 = vmatpush1.msra.mxu0 %v4060
        %4067 = vmatprep.subr.mxu0 0.0
        %4068 = vmatpush1.msra.mxu0 0.0
        %4069 = vmatprep.subr.mxu0 0.0
        %4070 = vmatpush1.msra.mxu0 0.0
        %4071 = vmatprep.subr.mxu0 0.0
        %4072 = vmatpush1.msra.mxu0 0.0
        %4073 = vmatprep.subr.mxu0 0.0
        %4074 = vmatpush1.msra.mxu0 0.0
        %4075 = vmatprep.subr.mxu0 0.0
        %4076 = vmatpush1.msra.mxu0 0.0
        %4077 = vmatprep.subr.mxu0 0.0
        %4078 = vmatpush1.msra.mxu0 0.0
        %4079 = vmatprep.subr.mxu0 0.0
        %4080 = vmatpush1.msra.mxu0 0.0
        %4081 = vmatprep.subr.mxu0 0.0
        %4082 = vmatpush1.msra.mxu0 0.0
        %4083 = vmatprep.subr.mxu0 0.0
        %4084 = vmatpush1.msra.mxu0 0.0
        %4085 = vmatprep.subr.mxu0 0.0
        %4086 = vmatpush1.msra.mxu0 0.0
        %4087 = vmatprep.subr.mxu0 0.0
        %4088 = vmatpush1.msra.mxu0 0.0
        %4089 = vmatprep.subr.mxu0 0.0
        %4090 = vmatpush1.msra.mxu0 0.0
        %4091 = vmatprep.subr.mxu0 0.0
        %4092 = vmatpush1.msra.mxu0 0.0
        %4093 = vmatprep.subr.mxu0 0.0
        %4094 = vmatpush1.msra.mxu0 0.0
        %4095 = vmatprep.subr.mxu0 0.0
        %4096 = vmatpush1.msra.mxu0 0.0
        %4097 = vmatprep.subr.mxu0 0.0
        %4098 = vmatpush1.msra.mxu0 0.0
        %4099 = vmatprep.subr.mxu0 0.0
        %4100 = vmatpush1.msra.mxu0 0.0
        %4101 = vmatprep.subr.mxu0 0.0
        %4102 = vmatpush1.msra.mxu0 0.0
        %4103 = vmatprep.subr.mxu0 0.0
        %4104 = vmatpush1.msra.mxu0 0.0
        %4105 = vmatprep.subr.mxu0 0.0
        %4106 = vmatpush1.msra.mxu0 0.0
        %4107 = vmatprep.subr.mxu0 0.0
        %4108 = vmatpush1.msra.mxu0 0.0
        %4109 = vmatprep.subr.mxu0 0.0
        %4110 = vmatpush1.msra.mxu0 0.0
        %4111 = vmatprep.subr.mxu0 0.0
        %4112 = vmatpush1.msra.mxu0 0.0
        %4113 = vmatprep.subr.mxu0 0.0
        %4114 = vmatpush1.msra.mxu0 0.0
        %4115 = vmatprep.subr.mxu0 0.0
        %4116 = vmatpush1.msra.mxu0 0.0
        %4117 = vmatprep.subr.mxu0 0.0
        %4118 = vmatpush1.msra.mxu0 0.0
        %4119 = vmatprep.subr.mxu0 0.0
        %4120 = vmatpush1.msra.mxu0 0.0
        %4121 = vmatprep.subr.mxu0 0.0
        %4122 = vmatpush1.msra.mxu0 0.0
        %4123 = vmatprep.subr.mxu0 0.0
        %4124 = vmatpush1.msra.mxu0 0.0
        %4125 = vmatprep.subr.mxu0 0.0
        %4126 = vmatpush1.msra.mxu0 0.0
        %4127 = vmatprep.subr.mxu0 0.0
        %4128 = vmatpush1.msra.mxu0 0.0
        %4129 = vmatprep.mubr.f32.mxu0 0.0
        %4130 = vmatmul.mubr.f32.gmra.mrb[0].mxu0 %v4063
        %v4131 = vpop.f32.mrb[0].mxu0
        %v4132 = vadd.f32 0.0, %v4131
        %v4133 = vpop.f32.mrb[0].mxu0
        %4134 = vdwg.mxu0
        %v4136 = vsel %vm1137, %v4132, 0
        %4138 = vmatprep.subr.mxu0 0.0
        %4139 = vmatpush1.msra.mxu0 %v921
        %4140 = vmatprep.subr.mxu0 0.0
        %4141 = vmatpush1.msra.mxu0 0.0
        %4142 = vmatprep.subr.mxu0 0.0
        %4143 = vmatpush1.msra.mxu0 0.0
        %4144 = vmatprep.subr.mxu0 0.0
        %4145 = vmatpush1.msra.mxu0 0.0
        %4146 = vmatprep.subr.mxu0 0.0
        %4147 = vmatpush1.msra.mxu0 0.0
        %4148 = vmatprep.subr.mxu0 0.0
        %4149 = vmatpush1.msra.mxu0 0.0
        %4150 = vmatprep.subr.mxu0 0.0
        %4151 = vmatpush1.msra.mxu0 0.0
        %4152 = vmatprep.subr.mxu0 0.0
        %4153 = vmatpush1.msra.mxu0 0.0
        %4154 = vmatprep.subr.mxu0 0.0
        %4155 = vmatpush1.msra.mxu0 0.0
        %4156 = vmatprep.subr.mxu0 0.0
        %4157 = vmatpush1.msra.mxu0 0.0
        %4158 = vmatprep.subr.mxu0 0.0
        %4159 = vmatpush1.msra.mxu0 0.0
        %4160 = vmatprep.subr.mxu0 0.0
        %4161 = vmatpush1.msra.mxu0 0.0
        %4162 = vmatprep.subr.mxu0 0.0
        %4163 = vmatpush1.msra.mxu0 0.0
        %4164 = vmatprep.subr.mxu0 0.0
        %4165 = vmatpush1.msra.mxu0 0.0
        %4166 = vmatprep.subr.mxu0 0.0
        %4167 = vmatpush1.msra.mxu0 0.0
        %4168 = vmatprep.subr.mxu0 0.0
        %4169 = vmatpush1.msra.mxu0 0.0
        %4170 = vmatprep.subr.mxu0 0.0
        %4171 = vmatpush1.msra.mxu0 0.0
        %4172 = vmatprep.subr.mxu0 0.0
        %4173 = vmatpush1.msra.mxu0 0.0
        %4174 = vmatprep.subr.mxu0 0.0
        %4175 = vmatpush1.msra.mxu0 0.0
        %4176 = vmatprep.subr.mxu0 0.0
        %4177 = vmatpush1.msra.mxu0 0.0
        %4178 = vmatprep.subr.mxu0 0.0
        %4179 = vmatpush1.msra.mxu0 0.0
        %4180 = vmatprep.subr.mxu0 0.0
        %4181 = vmatpush1.msra.mxu0 0.0
        %4182 = vmatprep.subr.mxu0 0.0
        %4183 = vmatpush1.msra.mxu0 0.0
        %4184 = vmatprep.subr.mxu0 0.0
        %4185 = vmatpush1.msra.mxu0 0.0
        %4186 = vmatprep.subr.mxu0 0.0
        %4187 = vmatpush1.msra.mxu0 0.0
        %4188 = vmatprep.subr.mxu0 0.0
        %4189 = vmatpush1.msra.mxu0 0.0
        %4190 = vmatprep.subr.mxu0 0.0
        %4191 = vmatpush1.msra.mxu0 0.0
        %4192 = vmatprep.subr.mxu0 0.0
        %4193 = vmatpush1.msra.mxu0 0.0
        %4194 = vmatprep.subr.mxu0 0.0
        %4195 = vmatpush1.msra.mxu0 0.0
        %4196 = vmatprep.subr.mxu0 0.0
        %4197 = vmatpush1.msra.mxu0 0.0
        %4198 = vmatprep.subr.mxu0 0.0
        %4199 = vmatpush1.msra.mxu0 0.0
        %4200 = vmatprep.subr.mxu0 0.0
        %4201 = vmatpush1.msra.mxu0 0.0
        %4202 = vmatprep.mubr.f32.mxu0 0.0
        %4203 = vmatmul.mubr.f32.gmra.mrb[0].mxu0 %v4136
        %v4204 = vpop.f32.mrb[0].mxu0
        %v4205 = vadd.f32 0.0, %v4204
        %v4206 = vpop.f32.mrb[0].mxu0
        %4207 = vdwg.mxu0
        %v4208 = vadd.f32 %v3973, %v4205
        %v4209 = vadd.f32 %v4208, %v3241
        %v4210 = vadd.f32 %v4209, %v901
        %v4211 = vsel %vm959, %v4210, 0.0
        %4212 = vadd.xlane.f32.xlu0 %v4211
        %v4213 = vpop.xlane.xlu0 %4212
        %v4214 = vmul.f32 %v4213, %v2248
        %v4215 = vsub.f32 %v4210, %v4214
        %v4216 = vmul.f32 %v4215, %v4215
        %v4217 = vsel %vm959, %v4216, 0.0
        %4218 = vadd.xlane.f32.xlu0 %v4217
        %v4219 = vpop.xlane.xlu0 %4218
        %v4220 = vmul.f32 %v4219, %v2248
        %v4221 = vadd.f32 %v4220, 1e-12
        %v4222 = vrsqrt.pop %v4221
        %v4223 = vmul.f32 %v4215, %v4222
        %v4224 = vmul.f32 %v4223, %v3262
        %v4225 = vadd.f32 %v4224, %v3269
        %v4227 = vsel %vm959, %v4225, 0
        %4229 = vmatprep.subr.mxu0 0.0
        %4230 = vmatpush1.msra.mxu0 %v936
        %4231 = vmatprep.subr.mxu0 0.0
        %4232 = vmatpush1.msra.mxu0 %v937
        %4233 = vmatprep.subr.mxu0 0.0
        %4234 = vmatpush1.msra.mxu0 %v938
        %4235 = vmatprep.subr.mxu0 0.0
        %4236 = vmatpush1.msra.mxu0 %v939
        %4237 = vmatprep.subr.mxu0 0.0
        %4238 = vmatpush1.msra.mxu0 0.0
        %4239 = vmatprep.subr.mxu0 0.0
        %4240 = vmatpush1.msra.mxu0 0.0
        %4241 = vmatprep.subr.mxu0 0.0
        %4242 = vmatpush1.msra.mxu0 0.0
        %4243 = vmatprep.subr.mxu0 0.0
        %4244 = vmatpush1.msra.mxu0 0.0
        %4245 = vmatprep.subr.mxu0 0.0
        %4246 = vmatpush1.msra.mxu0 0.0
        %4247 = vmatprep.subr.mxu0 0.0
        %4248 = vmatpush1.msra.mxu0 0.0
        %4249 = vmatprep.subr.mxu0 0.0
        %4250 = vmatpush1.msra.mxu0 0.0
        %4251 = vmatprep.subr.mxu0 0.0
        %4252 = vmatpush1.msra.mxu0 0.0
        %4253 = vmatprep.subr.mxu0 0.0
        %4254 = vmatpush1.msra.mxu0 0.0
        %4255 = vmatprep.subr.mxu0 0.0
        %4256 = vmatpush1.msra.mxu0 0.0
        %4257 = vmatprep.subr.mxu0 0.0
        %4258 = vmatpush1.msra.mxu0 0.0
        %4259 = vmatprep.subr.mxu0 0.0
        %4260 = vmatpush1.msra.mxu0 0.0
        %4261 = vmatprep.subr.mxu0 0.0
        %4262 = vmatpush1.msra.mxu0 0.0
        %4263 = vmatprep.subr.mxu0 0.0
        %4264 = vmatpush1.msra.mxu0 0.0
        %4265 = vmatprep.subr.mxu0 0.0
        %4266 = vmatpush1.msra.mxu0 0.0
        %4267 = vmatprep.subr.mxu0 0.0
        %4268 = vmatpush1.msra.mxu0 0.0
        %4269 = vmatprep.subr.mxu0 0.0
        %4270 = vmatpush1.msra.mxu0 0.0
        %4271 = vmatprep.subr.mxu0 0.0
        %4272 = vmatpush1.msra.mxu0 0.0
        %4273 = vmatprep.subr.mxu0 0.0
        %4274 = vmatpush1.msra.mxu0 0.0
        %4275 = vmatprep.subr.mxu0 0.0
        %4276 = vmatpush1.msra.mxu0 0.0
        %4277 = vmatprep.subr.mxu0 0.0
        %4278 = vmatpush1.msra.mxu0 0.0
        %4279 = vmatprep.subr.mxu0 0.0
        %4280 = vmatpush1.msra.mxu0 0.0
        %4281 = vmatprep.subr.mxu0 0.0
        %4282 = vmatpush1.msra.mxu0 0.0
        %4283 = vmatprep.subr.mxu0 0.0
        %4284 = vmatpush1.msra.mxu0 0.0
        %4285 = vmatprep.subr.mxu0 0.0
        %4286 = vmatpush1.msra.mxu0 0.0
        %4287 = vmatprep.subr.mxu0 0.0
        %4288 = vmatpush1.msra.mxu0 0.0
        %4289 = vmatprep.subr.mxu0 0.0
        %4290 = vmatpush1.msra.mxu0 0.0
        %4291 = vmatprep.subr.mxu0 0.0
        %4292 = vmatpush1.msra.mxu0 0.0
        %4293 = vmatprep.mubr.f32.mxu0 0.0
        %4294 = vmatmul.mubr.f32.gmra.mrb[0].mxu0 %v4227
        %v4295 = vpop.f32.mrb[0].mxu0
        %v4296 = vadd.f32 0.0, %v4295
        %v4297 = vpop.f32.mrb[0].mxu0
        %4298 = vdwg.mxu0
        %v4300 = vsel %vm959, %v3271, 0
        %4302 = vmatprep.subr.mxu0 0.0
        %4303 = vmatpush1.msra.mxu0 %v932
        %4304 = vmatprep.subr.mxu0 0.0
        %4305 = vmatpush1.msra.mxu0 %v933
        %4306 = vmatprep.subr.mxu0 0.0
        %4307 = vmatpush1.msra.mxu0 %v934
        %4308 = vmatprep.subr.mxu0 0.0
        %4309 = vmatpush1.msra.mxu0 %v935
        %4310 = vmatprep.subr.mxu0 0.0
        %4311 = vmatpush1.msra.mxu0 0.0
        %4312 = vmatprep.subr.mxu0 0.0
        %4313 = vmatpush1.msra.mxu0 0.0
        %4314 = vmatprep.subr.mxu0 0.0
        %4315 = vmatpush1.msra.mxu0 0.0
        %4316 = vmatprep.subr.mxu0 0.0
        %4317 = vmatpush1.msra.mxu0 0.0
        %4318 = vmatprep.subr.mxu0 0.0
        %4319 = vmatpush1.msra.mxu0 0.0
        %4320 = vmatprep.subr.mxu0 0.0
        %4321 = vmatpush1.msra.mxu0 0.0
        %4322 = vmatprep.subr.mxu0 0.0
        %4323 = vmatpush1.msra.mxu0 0.0
        %4324 = vmatprep.subr.mxu0 0.0
        %4325 = vmatpush1.msra.mxu0 0.0
        %4326 = vmatprep.subr.mxu0 0.0
        %4327 = vmatpush1.msra.mxu0 0.0
        %4328 = vmatprep.subr.mxu0 0.0
        %4329 = vmatpush1.msra.mxu0 0.0
        %4330 = vmatprep.subr.mxu0 0.0
        %4331 = vmatpush1.msra.mxu0 0.0
        %4332 = vmatprep.subr.mxu0 0.0
        %4333 = vmatpush1.msra.mxu0 0.0
        %4334 = vmatprep.subr.mxu0 0.0
        %4335 = vmatpush1.msra.mxu0 0.0
        %4336 = vmatprep.subr.mxu0 0.0
        %4337 = vmatpush1.msra.mxu0 0.0
        %4338 = vmatprep.subr.mxu0 0.0
        %4339 = vmatpush1.msra.mxu0 0.0
        %4340 = vmatprep.subr.mxu0 0.0
        %4341 = vmatpush1.msra.mxu0 0.0
        %4342 = vmatprep.subr.mxu0 0.0
        %4343 = vmatpush1.msra.mxu0 0.0
        %4344 = vmatprep.subr.mxu0 0.0
        %4345 = vmatpush1.msra.mxu0 0.0
        %4346 = vmatprep.subr.mxu0 0.0
        %4347 = vmatpush1.msra.mxu0 0.0
        %4348 = vmatprep.subr.mxu0 0.0
        %4349 = vmatpush1.msra.mxu0 0.0
        %4350 = vmatprep.subr.mxu0 0.0
        %4351 = vmatpush1.msra.mxu0 0.0
        %4352 = vmatprep.subr.mxu0 0.0
        %4353 = vmatpush1.msra.mxu0 0.0
        %4354 = vmatprep.subr.mxu0 0.0
        %4355 = vmatpush1.msra.mxu0 0.0
        %4356 = vmatprep.subr.mxu0 0.0
        %4357 = vmatpush1.msra.mxu0 0.0
        %4358 = vmatprep.subr.mxu0 0.0
        %4359 = vmatpush1.msra.mxu0 0.0
        %4360 = vmatprep.subr.mxu0 0.0
        %4361 = vmatpush1.msra.mxu0 0.0
        %4362 = vmatprep.subr.mxu0 0.0
        %4363 = vmatpush1.msra.mxu0 0.0
        %4364 = vmatprep.subr.mxu0 0.0
        %4365 = vmatpush1.msra.mxu0 0.0
        %4366 = vmatprep.mubr.f32.mxu0 0.0
        %4367 = vmatmul.mubr.f32.gmra.mrb[0].mxu0 %v4300
        %v4368 = vpop.f32.mrb[0].mxu0
        %v4369 = vadd.f32 %v4296, %v4368
        %v4370 = vpop.f32.mrb[0].mxu0
        %4371 = vdwg.mxu0
        %v4373 = vsel %vm959, %v2284, 0
        %4375 = vmatprep.subr.mxu0 0.0
        %4376 = vmatpush1.msra.mxu0 %v944
        %4377 = vmatprep.subr.mxu0 0.0
        %4378 = vmatpush1.msra.mxu0 %v945
        %4379 = vmatprep.subr.mxu0 0.0
        %4380 = vmatpush1.msra.mxu0 %v946
        %4381 = vmatprep.subr.mxu0 0.0
        %4382 = vmatpush1.msra.mxu0 %v947
        %4383 = vmatprep.subr.mxu0 0.0
        %4384 = vmatpush1.msra.mxu0 0.0
        %4385 = vmatprep.subr.mxu0 0.0
        %4386 = vmatpush1.msra.mxu0 0.0
        %4387 = vmatprep.subr.mxu0 0.0
        %4388 = vmatpush1.msra.mxu0 0.0
        %4389 = vmatprep.subr.mxu0 0.0
        %4390 = vmatpush1.msra.mxu0 0.0
        %4391 = vmatprep.subr.mxu0 0.0
        %4392 = vmatpush1.msra.mxu0 0.0
        %4393 = vmatprep.subr.mxu0 0.0
        %4394 = vmatpush1.msra.mxu0 0.0
        %4395 = vmatprep.subr.mxu0 0.0
        %4396 = vmatpush1.msra.mxu0 0.0
        %4397 = vmatprep.subr.mxu0 0.0
        %4398 = vmatpush1.msra.mxu0 0.0
        %4399 = vmatprep.subr.mxu0 0.0
        %4400 = vmatpush1.msra.mxu0 0.0
        %4401 = vmatprep.subr.mxu0 0.0
        %4402 = vmatpush1.msra.mxu0 0.0
        %4403 = vmatprep.subr.mxu0 0.0
        %4404 = vmatpush1.msra.mxu0 0.0
        %4405 = vmatprep.subr.mxu0 0.0
        %4406 = vmatpush1.msra.mxu0 0.0
        %4407 = vmatprep.subr.mxu0 0.0
        %4408 = vmatpush1.msra.mxu0 0.0
        %4409 = vmatprep.subr.mxu0 0.0
        %4410 = vmatpush1.msra.mxu0 0.0
        %4411 = vmatprep.subr.mxu0 0.0
        %4412 = vmatpush1.msra.mxu0 0.0
        %4413 = vmatprep.subr.mxu0 0.0
        %4414 = vmatpush1.msra.mxu0 0.0
        %4415 = vmatprep.subr.mxu0 0.0
        %4416 = vmatpush1.msra.mxu0 0.0
        %4417 = vmatprep.subr.mxu0 0.0
        %4418 = vmatpush1.msra.mxu0 0.0
        %4419 = vmatprep.subr.mxu0 0.0
        %4420 = vmatpush1.msra.mxu0 0.0
        %4421 = vmatprep.subr.mxu0 0.0
        %4422 = vmatpush1.msra.mxu0 0.0
        %4423 = vmatprep.subr.mxu0 0.0
        %4424 = vmatpush1.msra.mxu0 0.0
        %4425 = vmatprep.subr.mxu0 0.0
        %4426 = vmatpush1.msra.mxu0 0.0
        %4427 = vmatprep.subr.mxu0 0.0
        %4428 = vmatpush1.msra.mxu0 0.0
        %4429 = vmatprep.subr.mxu0 0.0
        %4430 = vmatpush1.msra.mxu0 0.0
        %4431 = vmatprep.subr.mxu0 0.0
        %4432 = vmatpush1.msra.mxu0 0.0
        %4433 = vmatprep.subr.mxu0 0.0
        %4434 = vmatpush1.msra.mxu0 0.0
        %4435 = vmatprep.subr.mxu0 0.0
        %4436 = vmatpush1.msra.mxu0 0.0
        %4437 = vmatprep.subr.mxu0 0.0
        %4438 = vmatpush1.msra.mxu0 0.0
        %4439 = vmatprep.mubr.f32.mxu0 0.0
        %4440 = vmatmul.mubr.f32.gmra.mrb[0].mxu0 %v4373
        %v4441 = vpop.f32.mrb[0].mxu0
        %v4442 = vadd.f32 0.0, %v4441
        %v4443 = vpop.f32.mrb[0].mxu0
        %4444 = vdwg.mxu0
        %v4446 = vsel %vm959, %v2283, 0
        %4448 = vmatprep.subr.mxu0 0.0
        %4449 = vmatpush1.msra.mxu0 %v940
        %4450 = vmatprep.subr.mxu0 0.0
        %4451 = vmatpush1.msra.mxu0 %v941
        %4452 = vmatprep.subr.mxu0 0.0
        %4453 = vmatpush1.msra.mxu0 %v942
        %4454 = vmatprep.subr.mxu0 0.0
        %4455 = vmatpush1.msra.mxu0 %v943
        %4456 = vmatprep.subr.mxu0 0.0
        %4457 = vmatpush1.msra.mxu0 0.0
        %4458 = vmatprep.subr.mxu0 0.0
        %4459 = vmatpush1.msra.mxu0 0.0
        %4460 = vmatprep.subr.mxu0 0.0
        %4461 = vmatpush1.msra.mxu0 0.0
        %4462 = vmatprep.subr.mxu0 0.0
        %4463 = vmatpush1.msra.mxu0 0.0
        %4464 = vmatprep.subr.mxu0 0.0
        %4465 = vmatpush1.msra.mxu0 0.0
        %4466 = vmatprep.subr.mxu0 0.0
        %4467 = vmatpush1.msra.mxu0 0.0
        %4468 = vmatprep.subr.mxu0 0.0
        %4469 = vmatpush1.msra.mxu0 0.0
        %4470 = vmatprep.subr.mxu0 0.0
        %4471 = vmatpush1.msra.mxu0 0.0
        %4472 = vmatprep.subr.mxu0 0.0
        %4473 = vmatpush1.msra.mxu0 0.0
        %4474 = vmatprep.subr.mxu0 0.0
        %4475 = vmatpush1.msra.mxu0 0.0
        %4476 = vmatprep.subr.mxu0 0.0
        %4477 = vmatpush1.msra.mxu0 0.0
        %4478 = vmatprep.subr.mxu0 0.0
        %4479 = vmatpush1.msra.mxu0 0.0
        %4480 = vmatprep.subr.mxu0 0.0
        %4481 = vmatpush1.msra.mxu0 0.0
        %4482 = vmatprep.subr.mxu0 0.0
        %4483 = vmatpush1.msra.mxu0 0.0
        %4484 = vmatprep.subr.mxu0 0.0
        %4485 = vmatpush1.msra.mxu0 0.0
        %4486 = vmatprep.subr.mxu0 0.0
        %4487 = vmatpush1.msra.mxu0 0.0
        %4488 = vmatprep.subr.mxu0 0.0
        %4489 = vmatpush1.msra.mxu0 0.0
        %4490 = vmatprep.subr.mxu0 0.0
        %4491 = vmatpush1.msra.mxu0 0.0
        %4492 = vmatprep.subr.mxu0 0.0
        %4493 = vmatpush1.msra.mxu0 0.0
        %4494 = vmatprep.subr.mxu0 0.0
        %4495 = vmatpush1.msra.mxu0 0.0
        %4496 = vmatprep.subr.mxu0 0.0
        %4497 = vmatpush1.msra.mxu0 0.0
        %4498 = vmatprep.subr.mxu0 0.0
        %4499 = vmatpush1.msra.mxu0 0.0
        %4500 = vmatprep.subr.mxu0 0.0
        %4501 = vmatpush1.msra.mxu0 0.0
        %4502 = vmatprep.subr.mxu0 0.0
        %4503 = vmatpush1.msra.mxu0 0.0
        %4504 = vmatprep.subr.mxu0 0.0
        %4505 = vmatpush1.msra.mxu0 0.0
        %4506 = vmatprep.subr.mxu0 0.0
        %4507 = vmatpush1.msra.mxu0 0.0
        %4508 = vmatprep.subr.mxu0 0.0
        %4509 = vmatpush1.msra.mxu0 0.0
        %4510 = vmatprep.subr.mxu0 0.0
        %4511 = vmatpush1.msra.mxu0 0.0
        %4512 = vmatprep.mubr.f32.mxu0 0.0
        %4513 = vmatmul.mubr.f32.gmra.mrb[0].mxu0 %v4446
        %v4514 = vpop.f32.mrb[0].mxu0
        %v4515 = vadd.f32 %v4442, %v4514
        %v4516 = vpop.f32.mrb[0].mxu0
        %4517 = vdwg.mxu0
        %v4518 = vld [vmem:[#allocation20] sm:$0x1]
        %v4520 = vlaneseq
        %v4521 = vshrl.u32 %v4520, 7
        %v4522 = vsub.s32 0, %v4521
        %v4523 = vrot.slane %v4518, %v4522
        %v4525 = vadd.f32 %v4369, %v4523
        %4526 = vst.msk [vmem:[%s885] sm:$0xff] %vm959, %v4525
        %v4527 = vld [vmem:[#allocation22] sm:$0x1]
        %v4529 = vlaneseq
        %v4530 = vshrl.u32 %v4529, 7
        %v4531 = vsub.s32 0, %v4530
        %v4532 = vrot.slane %v4527, %v4531
        %v4534 = vadd.f32 %v4515, %v4532
        %4535 = vst.msk [vmem:[%s900] sm:$0xff] %vm959, %v4534
        %s4536 = sand.u32 %s495, 1
        %s4537 = scalar_lea.sflag [#allocation4], %s4536
        %s4538 = sand.u32 %s495, 1
        %s4539 = smul.addr %s4538, 8
        %s4540 = scalar_lea.vmem [#allocation23], %s4539
        %p4541 = scmp.lt.s32.totalorder %s47, 1
        %s4542 = scalar_select %p4541, %s47, 1
        %s4543 = smul.addr %s4542, 8
        %s4544 = scalar_lea.vmem %s21, %s4543
        // Predicated region
        $region153: #{_lambda_.1} parent=99 // pred_check
          %p4545 = pneg %p505
        $region154: #{_lambda_.1} parent=99 // pred_check_branch
          %4547 = sbr.rel (%p4545) target = $region156
        $region155: #{_lambda_.1} parent=99 // pred_region
          %s4549 = ssub.s32 128, 128
          %4550 = vsyncadd %s4537, %s4549
          %s4551 = smul.addr %s47, 128
          %s4552 = scalar_lea.hbm %s20, %s4551
          %s4554 = sshll.u32 %s4540, 4
          %s4555 = int_to_ptr.vmem [resolvable:$true] %s4554
          %4557 = dma.vmem_to_hbm [thread:$0]  %s4555, 128, %s4552, %s4537
        $region156: #{_lambda_.1} parent=99 // pred_fallthru
          _
        // Predicated region
        $region157: #{_lambda_.1} parent=99 // pred_check
          %p4558 = pneg %p531
        $region158: #{_lambda_.1} parent=99 // pred_check_branch
          %4560 = sbr.rel (%p4558) target = $region160
        $region159: #{_lambda_.1} parent=99 // pred_region
          _
        $region160: #{_lambda_.1} parent=99 // pred_fallthru
          _
      $region100: #{_lambda_.1} parent=5 // pred_fallthru
        _
      %p4561 = scmp.le.s32.totalorder 2, %s42
      // Predicated region
      $region161: #{_lambda_.1} parent=5 // pred_check
        %p4562 = pneg %p4561
      $region162: #{_lambda_.1} parent=5 // pred_check_branch
        %4564 = sbr.rel (%p4562) target = $region164
      $region163: #{_lambda_.1} parent=5 // pred_region
        %s4565 = ssub.s32 %s42, 2
        // Predicated region
        $region165: #{_lambda_.1} parent=163 // pred_check
          %p4566 = pneg %p511
        $region166: #{_lambda_.1} parent=163 // pred_check_branch
          %4568 = sbr.rel (%p4566) target = $region168
        $region167: #{_lambda_.1} parent=163 // pred_region
          %s4569 = sand.u32 %s496, 1
          %s4570 = scalar_lea.sflag [#allocation4], %s4569
          %s4571 = sand.u32 %s496, 1
          %s4572 = smul.addr %s4571, 8
          %s4573 = scalar_lea.vmem [#allocation23], %s4572
          %4574 = dma.done %s4570, 128
        $region168: #{_lambda_.1} parent=163 // pred_fallthru
          _
        // Predicated region
        $region169: #{_lambda_.1} parent=163 // pred_check
          %p4575 = pneg %p537
        $region170: #{_lambda_.1} parent=163 // pred_check_branch
          %4577 = sbr.rel (%p4575) target = $region172
        $region171: #{_lambda_.1} parent=163 // pred_region
          %p4578 = scmp.lt.s32.totalorder %s48, 1
          %s4579 = scalar_select %p4578, %s48, 1
          %s4580 = smul.addr %s4579, 8
          %s4581 = scalar_lea.vmem %s21, %s4580
        $region172: #{_lambda_.1} parent=163 // pred_fallthru
          _
      $region164: #{_lambda_.1} parent=5 // pred_fallthru
        _
    $region6: #{_lambda_.1} parent=1 // loop_footer
      %s46 = sadd.s32 1, %s42
    $region7: #{_lambda_.1} parent=1 // loop_footer_branch
      %41 = sbr.rel target = $region3
    $region8: #{_lambda_.1} parent=1 // loop_exit
      _
    %4582 = vsyncpa [#allocation3], 1
    %s4583 = scalar_lea.sflag [#allocation3], 1
    %4584 = vsyncpa %s4583, 1
    %4585 = vsyncpa [#allocation6], 1
    %s4586 = scalar_lea.sflag [#allocation6], 1
    %4587 = vsyncpa %s4586, 1
    %4588 = vsyncpa [#allocation9], 1
    %4589 = vsyncpa [#allocation12], 1
    %4590 = vsyncpa [#allocation15], 1
    %4591 = vsyncpa [#allocation18], 1
    %4592 = vsyncpa [#allocation21], 1
    %4593 = vsyncpa [#allocation4], 1
    %s4594 = scalar_lea.sflag [#allocation4], 1
    %4595 = vsyncpa %s4594, 1

</llo_original>
